<compile_context>
chip_gen: v7x
topology: tpu7x:2x2x1
jax: 0.10.0
libtpu: 0.0.40
codegen_flags: <defaults>
</compile_context>

<pallas_src>
import math
import functools

import jax
import jax.numpy as jnp
from jax.experimental import pallas as pl
from jax.experimental.pallas import tpu as pltpu

_MEXHAT_C = 2.0 / (math.sqrt(3.0) * math.pi ** 0.25)


def _wavelet_mexican_hat(x):
    x2 = x * x
    return _MEXHAT_C * (x2 - 1.0) * jnp.exp(-0.5 * x2)


def _kernel(xp_ref, s_ref, b_ref, mask_ref, wk_ref, o_ref, acc_ref, *, K, Wp, Lv):
    # xp_ref  : (1, Hp*Wp, Cin)        zero-padded input, spatial flattened, channels last
    # s_ref   : (1, Cin, Ct*Cin)       selector * (1/scale) for this Cout tile
    # b_ref   : (1, 1, Ct*Cin)         translation/scale for this Cout tile
    # mask_ref: (Hp*Wp, 1)             1 in the interior, 0 on the conv-padding halo
    # wk_ref  : (1, K*K, Cout, Ct*Cin) fused (Conv3d x 1x1-conv x mexhat-const) weights
    # o_ref   : (1, Cout, Hp*Wp)       output in padded flat coords (cropped in wrapper)
    # acc_ref : (Cout, Hp*Wp) f32      accumulator across Cout tiles
    ot = pl.program_id(1)

    @pl.when(ot == 0)
    def _():
        acc_ref[...] = jnp.zeros_like(acc_ref)

    xp = xp_ref[0]                                             # (HpWp, Cin)
    # Cout-broadcast + 1/scale on the MXU, then the wavelet on lane-dense data.
    xs = jnp.dot(xp, s_ref[0], preferred_element_type=jnp.float32) - b_ref[0]
    x2 = xs * xs
    wav = (x2 - 1.0) * jnp.exp(-0.5 * x2)                      # mexhat const folded into Wk
    wav = wav * mask_ref[...]                                  # zero the padding halo

    # K*K taps: dense (Cout, Ct*Cin) x (Ct*Cin, HpWp) matmuls on the MXU, accumulated
    # with a static lane shift d = kh*Wp + kw (padded flat coordinates).
    for kh in range(K):
        for kw in range(K):
            wt = wk_ref[0, kh * K + kw]                        # (Cout, Ct*Cin)
            m = jax.lax.dot_general(
                wt, wav, (((1,), (1,)), ((), ())),
                preferred_element_type=jnp.float32)            # (Cout, HpWp)
            d = kh * Wp + kw
            acc_ref[:, :Lv] += m[:, d:d + Lv]

    @pl.when(ot == pl.num_programs(1) - 1)
    def _():
        o_ref[0] = acc_ref[...].astype(o_ref.dtype)


def wavelet_conv_fast_plus_one(x, scale, translation, w3, wout, *,
                               kernel_size, padding, cout_tile=None):
    """Forward pass of WaveletConvNDFastPlusOne (2D, stride=1, dilation=1)."""
    B, Cin, H, W = x.shape
    Cout = scale.shape[1]
    K, P = kernel_size, padding
    Hout = H + 2 * P - (K - 1)
    Wout = W + 2 * P - (K - 1)
    Hp, Wp = H + 2 * P, W + 2 * P
    HpWp = Hp * Wp
    Lv = (Hout - 1) * Wp + Wout            # flat columns actually accumulated
    f32 = jnp.float32

    # ---------------- plain-JAX glue (layout plumbing + weight fusion) ----------------
    xpad = jnp.pad(x.astype(f32), ((0, 0), (0, 0), (P, P), (P, P)))
    xp2d = jnp.transpose(xpad, (0, 2, 3, 1)).reshape(B, HpWp, Cin)      # NHWC, flat spatial
    # pad the tiny contraction dim of the selector matmul up to a sublane multiple
    Cin_p = max(8, ((Cin + 7) // 8) * 8)
    if Cin_p != Cin:
        xp2d = jnp.pad(xp2d, ((0, 0), (0, 0), (0, Cin_p - Cin)))

    maskf = jnp.pad(jnp.ones((H, W), f32), ((P, P), (P, P))).reshape(HpWp, 1)

    isc = 1.0 / scale.reshape(Cout, Cin).astype(f32)                    # exact reciprocal
    bia = translation.reshape(Cout, Cin).astype(f32) * isc

    # ---- Cout tiling (bounds the (HpWp, Ct*Cin) wavelet slab in VMEM) ----
    if cout_tile is None:
        budget = 20 * 1024 * 1024
        cout_tile = 1
        for cand in range(Cout, 0, -1):
            if Cout % cand:
                continue
            need = 4 * (HpWp * (cand * Cin + 2 * Cout) + K * K * Cout * cand * Cin)
            if need <= budget:
                cout_tile = cand
                break
    assert Cout % cout_tile == 0
    Cot = cout_tile
    n_ot = Cout // Cot
    CC = Cot * Cin

    # selector*scale: S[t, ci, oo*Cin+ci'] = isc[t*Cot+oo, ci] * (ci == ci')
    eye = jnp.eye(Cin, dtype=f32)
    S_full = isc[:, :, None] * eye[None, :, :]                          # (Cout, Cin, Cin)
    S_all = (S_full.reshape(n_ot, Cot, Cin, Cin)
             .transpose(0, 2, 1, 3)
             .reshape(n_ot, Cin, CC))
    if Cin_p != Cin:
        S_all = jnp.pad(S_all, ((0, 0), (0, Cin_p - Cin), (0, 0)))
    bia_all = bia.reshape(n_ot, 1, CC)

    # fused weights: Wk[t, p, oo*Cin+ci] = c * wout[p, o] * w3[o, ci, kh, kw]
    w3r = w3.reshape(Cout, Cin, K, K).astype(f32)
    woutr = wout.reshape(Cout, Cout).astype(f32)
    wk = _MEXHAT_C * jnp.einsum('po,ocij->ijpoc', woutr, w3r)           # (K,K,Cout,Cout,Cin)
    wk_all = (wk.reshape(K * K, Cout, n_ot, CC)
              .transpose(2, 0, 1, 3))                                   # (n_ot, K*K, Cout, CC)

    kernel = functools.partial(_kernel, K=K, Wp=Wp, Lv=Lv)

    out_flat = pl.pallas_call(
        kernel,
        out_shape=jax.ShapeDtypeStruct((B, Cout, HpWp), x.dtype),
        grid=(B, n_ot),
        in_specs=[
            pl.BlockSpec((1, HpWp, Cin_p), lambda b, t: (b, 0, 0)),
            pl.BlockSpec((1, Cin_p, CC), lambda b, t: (t, 0, 0)),
            pl.BlockSpec((1, 1, CC), lambda b, t: (t, 0, 0)),
            pl.BlockSpec((HpWp, 1), lambda b, t: (0, 0)),
            pl.BlockSpec((1, K * K, Cout, CC), lambda b, t: (t, 0, 0, 0)),
        ],
        out_specs=pl.BlockSpec((1, Cout, HpWp), lambda b, t: (b, 0, 0)),
        scratch_shapes=[pltpu.VMEM((Cout, HpWp), jnp.float32)],
        compiler_params=pltpu.CompilerParams(
            dimension_semantics=("parallel", "arbitrary"),
            vmem_limit_bytes=64 * 1024 * 1024,
        ),
    )(xp2d, S_all, bia_all, maskf, wk_all)

    # crop padded flat coords back to (Hout, Wout)
    return out_flat.reshape(B, Cout, Hp, Wp)[:, :, :Hout, :Wout]


def reference(x, scale, translation, w3, wout, kernel_size, padding):
    """Pure-JAX reference mirroring the PyTorch forward (for validation)."""
    B, Cin, H, W = x.shape
    Cout = scale.shape[1]
    K = kernel_size
    xs = (x[:, None] - translation) / scale            # (B, Cout, Cin, H, W)
    wav = _wavelet_mexican_hat(xs)
    wav2 = wav.reshape(B, Cout * Cin, H, W)
    kern = w3.reshape(Cout, Cin, K, K)                 # OIHW, groups=Cout
    y = jax.lax.conv_general_dilated(
        wav2, kern, window_strides=(1, 1),
        padding=((padding, padding), (padding, padding)),
        dimension_numbers=('NCHW', 'OIHW', 'NCHW'),
        feature_group_count=Cout,
        precision=jax.lax.Precision.HIGHEST)
    return jnp.einsum('po,bohw->bphw', wout.reshape(Cout, Cout), y,
                      precision=jax.lax.Precision.HIGHEST)


if __name__ == "__main__":
    B, Cin, Cout, H, W = 2, 4, 8, 16, 16
    K, P = 3, 1

    key = jax.random.PRNGKey(0)
    k1, k2, k3, k4, k5 = jax.random.split(key, 5)
    x = jax.random.normal(k1, (B, Cin, H, W), jnp.float32)

    # __init__ uses scale=ones, translation=zeros; perturb deterministically so the
    # broadcast / scaling path is actually exercised.
    scale = 1.0 + 0.25 * jax.random.uniform(k2, (1, Cout, Cin, 1, 1), jnp.float32)
    translation = 0.1 * jax.random.normal(k3, (1, Cout, Cin, 1, 1), jnp.float32)

    # kaiming_uniform_ (linear gain): bound = sqrt(3 / fan_in)
    fan3 = Cin * K * K
    w3 = jax.random.uniform(k4, (Cout, 1, Cin, K, K), jnp.float32,
                            -math.sqrt(3.0 / fan3), math.sqrt(3.0 / fan3))
    fan1 = Cout
    wout = jax.random.uniform(k5, (Cout, Cout, 1, 1), jnp.float32,
                              -math.sqrt(3.0 / fan1), math.sqrt(3.0 / fan1))

    y = wavelet_conv_fast_plus_one(x, scale, translation, w3, wout,
                                   kernel_size=K, padding=P)
    y = jax.block_until_ready(y)

    y_ref = reference(x, scale, translation, w3, wout, K, P)
    assert y.shape == (B, Cout, H, W), y.shape
    err = float(jnp.max(jnp.abs(y - y_ref)))
    assert jnp.allclose(y, y_ref, rtol=1e-3, atol=1e-3), err
    print("KERNEL_OK")
</pallas_src>

<mosaic_0001>
module attributes {stable_mosaic.version = 11 : i64} {
  func.func @_kernel(%arg0: i32, %arg1: i32, %arg2: memref<1x324x8xf32, #tpu.memory_space<vmem>>, %arg3: memref<1x8x32xf32, #tpu.memory_space<vmem>>, %arg4: memref<1x1x32xf32, #tpu.memory_space<vmem>>, %arg5: memref<324x1xf32, #tpu.memory_space<vmem>>, %arg6: memref<1x9x8x32xf32, #tpu.memory_space<vmem>>, %arg7: memref<1x8x324xf32, #tpu.memory_space<vmem>>, %arg8: memref<8x324xf32, #tpu.memory_space<vmem>>) attributes {dimension_semantics = [#tpu.dimension_semantics<parallel>, #tpu.dimension_semantics<arbitrary>], iteration_bounds = array<i64: 2, 1>, scalar_prefetch = 0 : i64, scratch_operands = 1 : i64, tpu.core_type = #tpu.core_type<tc>, window_params = [{transform_indices = @transform_0, window_bounds = array<i64: 1, 324, 8>}, {transform_indices = @transform_1, window_bounds = array<i64: 1, 8, 32>}, {transform_indices = @transform_2, window_bounds = array<i64: 1, 1, 32>}, {pipeline_mode = #tpu.pipeline_mode<synchronous>, transform_indices = @transform_3, window_bounds = array<i64: 324, 1>}, {transform_indices = @transform_4, window_bounds = array<i64: 1, 9, 8, 32>}, {transform_indices = @transform_5, window_bounds = array<i64: 1, 8, 324>}]} {
    %c0_i32 = arith.constant 0 : i32
    %0 = arith.cmpi eq, %arg1, %c0_i32 : i32
    %1 = arith.extui %0 : i1 to i32
    %c0_i32_0 = arith.constant 0 : i32
    %2 = arith.cmpi ne, %1, %c0_i32_0 : i32
    scf.if %2 {
      %cst_88 = arith.constant 0.000000e+00 : f32
      %88 = vector.broadcast %cst_88 : f32 to vector<8x324xf32>
      %c0_89 = arith.constant 0 : index
      %c0_90 = arith.constant 0 : index
      %89 = vector.load %arg8[%c0_89, %c0_90] : memref<8x324xf32, #tpu.memory_space<vmem>>, vector<8x324xf32>
      tpu.vector_store %arg8[%c0_89, %c0_90], %88 {strides = array<i32>} : memref<8x324xf32, #tpu.memory_space<vmem>>, vector<8x324xf32>,
    } else {
    }
    %c0 = arith.constant 0 : index
    %c0_1 = arith.constant 0 : index
    %c0_2 = arith.constant 0 : index
    %3 = vector.load %arg2[%c0, %c0_1, %c0_2] : memref<1x324x8xf32, #tpu.memory_space<vmem>>, vector<1x324x8xf32>
    %4 = vector.shape_cast %3 : vector<1x324x8xf32> to vector<324x8xf32>
    %c0_3 = arith.constant 0 : index
    %c0_4 = arith.constant 0 : index
    %c0_5 = arith.constant 0 : index
    %5 = vector.load %arg3[%c0_3, %c0_4, %c0_5] : memref<1x8x32xf32, #tpu.memory_space<vmem>>, vector<1x8x32xf32>
    %6 = vector.shape_cast %5 : vector<1x8x32xf32> to vector<8x32xf32>
    %cst = arith.constant dense<0.000000e+00> : vector<324x32xf32>
    %7 = tpu.matmul %4, %6, %cst {dimension_numbers = #tpu.dot_dimension_numbers<[1], [0], [0], [1], [0, 0, 1, 1], [], []>} : vector<324x8xf32>, vector<8x32xf32>, vector<324x32xf32> -> vector<324x32xf32>
    %c0_6 = arith.constant 0 : index
    %c0_7 = arith.constant 0 : index
    %c0_8 = arith.constant 0 : index
    %8 = vector.load %arg4[%c0_6, %c0_7, %c0_8] : memref<1x1x32xf32, #tpu.memory_space<vmem>>, vector<1x1x32xf32>
    %9 = vector.shape_cast %8 : vector<1x1x32xf32> to vector<1x32xf32>
    %10 = vector.broadcast %9 : vector<1x32xf32> to vector<324x32xf32>
    %11 = arith.subf %7, %10 : vector<324x32xf32>
    %12 = arith.mulf %11, %11 : vector<324x32xf32>
    %cst_9 = arith.constant 1.000000e+00 : f32
    %13 = vector.broadcast %cst_9 : f32 to vector<324x32xf32>
    %14 = arith.subf %12, %13 : vector<324x32xf32>
    %cst_10 = arith.constant -5.000000e-01 : f32
    %15 = vector.broadcast %cst_10 : f32 to vector<324x32xf32>
    %16 = arith.mulf %15, %12 : vector<324x32xf32>
    %17 = math.exp %16 : vector<324x32xf32>
    %18 = arith.mulf %14, %17 : vector<324x32xf32>
    %c0_11 = arith.constant 0 : index
    %c0_12 = arith.constant 0 : index
    %19 = vector.load %arg5[%c0_11, %c0_12] : memref<324x1xf32, #tpu.memory_space<vmem>>, vector<324x1xf32>
    %20 = vector.broadcast %19 : vector<324x1xf32> to vector<324x32xf32>
    %21 = arith.mulf %18, %20 : vector<324x32xf32>
    %c0_13 = arith.constant 0 : index
    %c0_14 = arith.constant 0 : index
    %c0_15 = arith.constant 0 : index
    %c0_16 = arith.constant 0 : index
    %22 = vector.load %arg6[%c0_13, %c0_14, %c0_15, %c0_16] : memref<1x9x8x32xf32, #tpu.memory_space<vmem>>, vector<1x1x8x32xf32>
    %23 = vector.shape_cast %22 : vector<1x1x8x32xf32> to vector<8x32xf32>
    %cst_17 = arith.constant dense<0.000000e+00> : vector<8x324xf32>
    %24 = tpu.matmul %23, %21, %cst_17 {dimension_numbers = #tpu.dot_dimension_numbers<[1], [1], [0], [0], [0, 0, 1, 0], [], []>} : vector<8x32xf32>, vector<324x32xf32>, vector<8x324xf32> -> vector<8x324xf32>
    %c0_18 = arith.constant 0 : index
    %c0_19 = arith.constant 0 : index
    %25 = vector.load %arg8[%c0_18, %c0_19] : memref<8x324xf32, #tpu.memory_space<vmem>>, vector<8x286xf32>
    %26 = vector.extract_strided_slice %24 {offsets = [0, 0], sizes = [8, 286], strides = [1, 1]} : vector<8x324xf32> to vector<8x286xf32>
    %27 = arith.addf %25, %26 : vector<8x286xf32>
    %c0_20 = arith.constant 0 : index
    %c0_21 = arith.constant 0 : index
    %28 = vector.load %arg8[%c0_20, %c0_21] : memref<8x324xf32, #tpu.memory_space<vmem>>, vector<8x286xf32>
    tpu.vector_store %arg8[%c0_20, %c0_21], %27 {strides = array<i32>} : memref<8x324xf32, #tpu.memory_space<vmem>>, vector<8x286xf32>,
    %c0_22 = arith.constant 0 : index
    %c1 = arith.constant 1 : index
    %c0_23 = arith.constant 0 : index
    %c0_24 = arith.constant 0 : index
    %29 = vector.load %arg6[%c0_22, %c1, %c0_23, %c0_24] : memref<1x9x8x32xf32, #tpu.memory_space<vmem>>, vector<1x1x8x32xf32>
    %30 = vector.shape_cast %29 : vector<1x1x8x32xf32> to vector<8x32xf32>
    %cst_25 = arith.constant dense<0.000000e+00> : vector<8x324xf32>
    %31 = tpu.matmul %30, %21, %cst_25 {dimension_numbers = #tpu.dot_dimension_numbers<[1], [1], [0], [0], [0, 0, 1, 0], [], []>} : vector<8x32xf32>, vector<324x32xf32>, vector<8x324xf32> -> vector<8x324xf32>
    %c0_26 = arith.constant 0 : index
    %c0_27 = arith.constant 0 : index
    %32 = vector.load %arg8[%c0_26, %c0_27] : memref<8x324xf32, #tpu.memory_space<vmem>>, vector<8x286xf32>
    %33 = vector.extract_strided_slice %31 {offsets = [0, 1], sizes = [8, 286], strides = [1, 1]} : vector<8x324xf32> to vector<8x286xf32>
    %34 = arith.addf %32, %33 : vector<8x286xf32>
    %c0_28 = arith.constant 0 : index
    %c0_29 = arith.constant 0 : index
    %35 = vector.load %arg8[%c0_28, %c0_29] : memref<8x324xf32, #tpu.memory_space<vmem>>, vector<8x286xf32>
    tpu.vector_store %arg8[%c0_28, %c0_29], %34 {strides = array<i32>} : memref<8x324xf32, #tpu.memory_space<vmem>>, vector<8x286xf32>,
    %c0_30 = arith.constant 0 : index
    %c2 = arith.constant 2 : index
    %c0_31 = arith.constant 0 : index
    %c0_32 = arith.constant 0 : index
    %36 = vector.load %arg6[%c0_30, %c2, %c0_31, %c0_32] : memref<1x9x8x32xf32, #tpu.memory_space<vmem>>, vector<1x1x8x32xf32>
    %37 = vector.shape_cast %36 : vector<1x1x8x32xf32> to vector<8x32xf32>
    %cst_33 = arith.constant dense<0.000000e+00> : vector<8x324xf32>
    %38 = tpu.matmul %37, %21, %cst_33 {dimension_numbers = #tpu.dot_dimension_numbers<[1], [1], [0], [0], [0, 0, 1, 0], [], []>} : vector<8x32xf32>, vector<324x32xf32>, vector<8x324xf32> -> vector<8x324xf32>
    %c0_34 = arith.constant 0 : index
    %c0_35 = arith.constant 0 : index
    %39 = vector.load %arg8[%c0_34, %c0_35] : memref<8x324xf32, #tpu.memory_space<vmem>>, vector<8x286xf32>
    %40 = vector.extract_strided_slice %38 {offsets = [0, 2], sizes = [8, 286], strides = [1, 1]} : vector<8x324xf32> to vector<8x286xf32>
    %41 = arith.addf %39, %40 : vector<8x286xf32>
    %c0_36 = arith.constant 0 : index
    %c0_37 = arith.constant 0 : index
    %42 = vector.load %arg8[%c0_36, %c0_37] : memref<8x324xf32, #tpu.memory_space<vmem>>, vector<8x286xf32>
    tpu.vector_store %arg8[%c0_36, %c0_37], %41 {strides = array<i32>} : memref<8x324xf32, #tpu.memory_space<vmem>>, vector<8x286xf32>,
    %c0_38 = arith.constant 0 : index
    %c3 = arith.constant 3 : index
    %c0_39 = arith.constant 0 : index
    %c0_40 = arith.constant 0 : index
    %43 = vector.load %arg6[%c0_38, %c3, %c0_39, %c0_40] : memref<1x9x8x32xf32, #tpu.memory_space<vmem>>, vector<1x1x8x32xf32>
    %44 = vector.shape_cast %43 : vector<1x1x8x32xf32> to vector<8x32xf32>
    %cst_41 = arith.constant dense<0.000000e+00> : vector<8x324xf32>
    %45 = tpu.matmul %44, %21, %cst_41 {dimension_numbers = #tpu.dot_dimension_numbers<[1], [1], [0], [0], [0, 0, 1, 0], [], []>} : vector<8x32xf32>, vector<324x32xf32>, vector<8x324xf32> -> vector<8x324xf32>
    %c0_42 = arith.constant 0 : index
    %c0_43 = arith.constant 0 : index
    %46 = vector.load %arg8[%c0_42, %c0_43] : memref<8x324xf32, #tpu.memory_space<vmem>>, vector<8x286xf32>
    %47 = vector.extract_strided_slice %45 {offsets = [0, 18], sizes = [8, 286], strides = [1, 1]} : vector<8x324xf32> to vector<8x286xf32>
    %48 = arith.addf %46, %47 : vector<8x286xf32>
    %c0_44 = arith.constant 0 : index
    %c0_45 = arith.constant 0 : index
    %49 = vector.load %arg8[%c0_44, %c0_45] : memref<8x324xf32, #tpu.memory_space<vmem>>, vector<8x286xf32>
    tpu.vector_store %arg8[%c0_44, %c0_45], %48 {strides = array<i32>} : memref<8x324xf32, #tpu.memory_space<vmem>>, vector<8x286xf32>,
    %c0_46 = arith.constant 0 : index
    %c4 = arith.constant 4 : index
    %c0_47 = arith.constant 0 : index
    %c0_48 = arith.constant 0 : index
    %50 = vector.load %arg6[%c0_46, %c4, %c0_47, %c0_48] : memref<1x9x8x32xf32, #tpu.memory_space<vmem>>, vector<1x1x8x32xf32>
    %51 = vector.shape_cast %50 : vector<1x1x8x32xf32> to vector<8x32xf32>
    %cst_49 = arith.constant dense<0.000000e+00> : vector<8x324xf32>
    %52 = tpu.matmul %51, %21, %cst_49 {dimension_numbers = #tpu.dot_dimension_numbers<[1], [1], [0], [0], [0, 0, 1, 0], [], []>} : vector<8x32xf32>, vector<324x32xf32>, vector<8x324xf32> -> vector<8x324xf32>
    %c0_50 = arith.constant 0 : index
    %c0_51 = arith.constant 0 : index
    %53 = vector.load %arg8[%c0_50, %c0_51] : memref<8x324xf32, #tpu.memory_space<vmem>>, vector<8x286xf32>
    %54 = vector.extract_strided_slice %52 {offsets = [0, 19], sizes = [8, 286], strides = [1, 1]} : vector<8x324xf32> to vector<8x286xf32>
    %55 = arith.addf %53, %54 : vector<8x286xf32>
    %c0_52 = arith.constant 0 : index
    %c0_53 = arith.constant 0 : index
    %56 = vector.load %arg8[%c0_52, %c0_53] : memref<8x324xf32, #tpu.memory_space<vmem>>, vector<8x286xf32>
    tpu.vector_store %arg8[%c0_52, %c0_53], %55 {strides = array<i32>} : memref<8x324xf32, #tpu.memory_space<vmem>>, vector<8x286xf32>,
    %c0_54 = arith.constant 0 : index
    %c5 = arith.constant 5 : index
    %c0_55 = arith.constant 0 : index
    %c0_56 = arith.constant 0 : index
    %57 = vector.load %arg6[%c0_54, %c5, %c0_55, %c0_56] : memref<1x9x8x32xf32, #tpu.memory_space<vmem>>, vector<1x1x8x32xf32>
    %58 = vector.shape_cast %57 : vector<1x1x8x32xf32> to vector<8x32xf32>
    %cst_57 = arith.constant dense<0.000000e+00> : vector<8x324xf32>
    %59 = tpu.matmul %58, %21, %cst_57 {dimension_numbers = #tpu.dot_dimension_numbers<[1], [1], [0], [0], [0, 0, 1, 0], [], []>} : vector<8x32xf32>, vector<324x32xf32>, vector<8x324xf32> -> vector<8x324xf32>
    %c0_58 = arith.constant 0 : index
    %c0_59 = arith.constant 0 : index
    %60 = vector.load %arg8[%c0_58, %c0_59] : memref<8x324xf32, #tpu.memory_space<vmem>>, vector<8x286xf32>
    %61 = vector.extract_strided_slice %59 {offsets = [0, 20], sizes = [8, 286], strides = [1, 1]} : vector<8x324xf32> to vector<8x286xf32>
    %62 = arith.addf %60, %61 : vector<8x286xf32>
    %c0_60 = arith.constant 0 : index
    %c0_61 = arith.constant 0 : index
    %63 = vector.load %arg8[%c0_60, %c0_61] : memref<8x324xf32, #tpu.memory_space<vmem>>, vector<8x286xf32>
    tpu.vector_store %arg8[%c0_60, %c0_61], %62 {strides = array<i32>} : memref<8x324xf32, #tpu.memory_space<vmem>>, vector<8x286xf32>,
    %c0_62 = arith.constant 0 : index
    %c6 = arith.constant 6 : index
    %c0_63 = arith.constant 0 : index
    %c0_64 = arith.constant 0 : index
    %64 = vector.load %arg6[%c0_62, %c6, %c0_63, %c0_64] : memref<1x9x8x32xf32, #tpu.memory_space<vmem>>, vector<1x1x8x32xf32>
    %65 = vector.shape_cast %64 : vector<1x1x8x32xf32> to vector<8x32xf32>
    %cst_65 = arith.constant dense<0.000000e+00> : vector<8x324xf32>
    %66 = tpu.matmul %65, %21, %cst_65 {dimension_numbers = #tpu.dot_dimension_numbers<[1], [1], [0], [0], [0, 0, 1, 0], [], []>} : vector<8x32xf32>, vector<324x32xf32>, vector<8x324xf32> -> vector<8x324xf32>
    %c0_66 = arith.constant 0 : index
    %c0_67 = arith.constant 0 : index
    %67 = vector.load %arg8[%c0_66, %c0_67] : memref<8x324xf32, #tpu.memory_space<vmem>>, vector<8x286xf32>
    %68 = vector.extract_strided_slice %66 {offsets = [0, 36], sizes = [8, 286], strides = [1, 1]} : vector<8x324xf32> to vector<8x286xf32>
    %69 = arith.addf %67, %68 : vector<8x286xf32>
    %c0_68 = arith.constant 0 : index
    %c0_69 = arith.constant 0 : index
    %70 = vector.load %arg8[%c0_68, %c0_69] : memref<8x324xf32, #tpu.memory_space<vmem>>, vector<8x286xf32>
    tpu.vector_store %arg8[%c0_68, %c0_69], %69 {strides = array<i32>} : memref<8x324xf32, #tpu.memory_space<vmem>>, vector<8x286xf32>,
    %c0_70 = arith.constant 0 : index
    %c7 = arith.constant 7 : index
    %c0_71 = arith.constant 0 : index
    %c0_72 = arith.constant 0 : index
    %71 = vector.load %arg6[%c0_70, %c7, %c0_71, %c0_72] : memref<1x9x8x32xf32, #tpu.memory_space<vmem>>, vector<1x1x8x32xf32>
    %72 = vector.shape_cast %71 : vector<1x1x8x32xf32> to vector<8x32xf32>
    %cst_73 = arith.constant dense<0.000000e+00> : vector<8x324xf32>
    %73 = tpu.matmul %72, %21, %cst_73 {dimension_numbers = #tpu.dot_dimension_numbers<[1], [1], [0], [0], [0, 0, 1, 0], [], []>} : vector<8x32xf32>, vector<324x32xf32>, vector<8x324xf32> -> vector<8x324xf32>
    %c0_74 = arith.constant 0 : index
    %c0_75 = arith.constant 0 : index
    %74 = vector.load %arg8[%c0_74, %c0_75] : memref<8x324xf32, #tpu.memory_space<vmem>>, vector<8x286xf32>
    %75 = vector.extract_strided_slice %73 {offsets = [0, 37], sizes = [8, 286], strides = [1, 1]} : vector<8x324xf32> to vector<8x286xf32>
    %76 = arith.addf %74, %75 : vector<8x286xf32>
    %c0_76 = arith.constant 0 : index
    %c0_77 = arith.constant 0 : index
    %77 = vector.load %arg8[%c0_76, %c0_77] : memref<8x324xf32, #tpu.memory_space<vmem>>, vector<8x286xf32>
    tpu.vector_store %arg8[%c0_76, %c0_77], %76 {strides = array<i32>} : memref<8x324xf32, #tpu.memory_space<vmem>>, vector<8x286xf32>,
    %c0_78 = arith.constant 0 : index
    %c8 = arith.constant 8 : index
    %c0_79 = arith.constant 0 : index
    %c0_80 = arith.constant 0 : index
    %78 = vector.load %arg6[%c0_78, %c8, %c0_79, %c0_80] : memref<1x9x8x32xf32, #tpu.memory_space<vmem>>, vector<1x1x8x32xf32>
    %79 = vector.shape_cast %78 : vector<1x1x8x32xf32> to vector<8x32xf32>
    %cst_81 = arith.constant dense<0.000000e+00> : vector<8x324xf32>
    %80 = tpu.matmul %79, %21, %cst_81 {dimension_numbers = #tpu.dot_dimension_numbers<[1], [1], [0], [0], [0, 0, 1, 0], [], []>} : vector<8x32xf32>, vector<324x32xf32>, vector<8x324xf32> -> vector<8x324xf32>
    %c0_82 = arith.constant 0 : index
    %c0_83 = arith.constant 0 : index
    %81 = vector.load %arg8[%c0_82, %c0_83] : memref<8x324xf32, #tpu.memory_space<vmem>>, vector<8x286xf32>
    %82 = vector.extract_strided_slice %80 {offsets = [0, 38], sizes = [8, 286], strides = [1, 1]} : vector<8x324xf32> to vector<8x286xf32>
    %83 = arith.addf %81, %82 : vector<8x286xf32>
    %c0_84 = arith.constant 0 : index
    %c0_85 = arith.constant 0 : index
    %84 = vector.load %arg8[%c0_84, %c0_85] : memref<8x324xf32, #tpu.memory_space<vmem>>, vector<8x286xf32>
    tpu.vector_store %arg8[%c0_84, %c0_85], %83 {strides = array<i32>} : memref<8x324xf32, #tpu.memory_space<vmem>>, vector<8x286xf32>,
    %c0_i32_86 = arith.constant 0 : i32
    %85 = arith.cmpi eq, %arg1, %c0_i32_86 : i32
    %86 = arith.extui %85 : i1 to i32
    %c0_i32_87 = arith.constant 0 : i32
    %87 = arith.cmpi ne, %86, %c0_i32_87 : i32
    scf.if %87 {
      %c0_88 = arith.constant 0 : index
      %c0_89 = arith.constant 0 : index
      %88 = vector.load %arg8[%c0_88, %c0_89] : memref<8x324xf32, #tpu.memory_space<vmem>>, vector<8x324xf32>
      %c0_90 = arith.constant 0 : index
      %c0_91 = arith.constant 0 : index
      %c0_92 = arith.constant 0 : index
      %89 = vector.load %arg7[%c0_90, %c0_91, %c0_92] : memref<1x8x324xf32, #tpu.memory_space<vmem>>, vector<1x8x324xf32>
      %90 = vector.shape_cast %89 : vector<1x8x324xf32> to vector<8x324xf32>
      %91 = vector.shape_cast %88 : vector<8x324xf32> to vector<1x8x324xf32>
      tpu.vector_store %arg7[%c0_90, %c0_91, %c0_92], %91 {strides = array<i32>} : memref<1x8x324xf32, #tpu.memory_space<vmem>>, vector<1x8x324xf32>,
    } else {
    }
    return
  }
  func.func @transform_0(%arg0: i32, %arg1: i32) -> (i32, i32, i32) {
    %c0_i32 = arith.constant 0 : i32
    %c0_i32_0 = arith.constant 0 : i32
    %c0_i32_1 = arith.constant 0 : i32
    return %arg0, %c0_i32, %c0_i32_0 : i32, i32, i32
  }
  func.func @transform_1(%arg0: i32, %arg1: i32) -> (i32, i32, i32) {
    %c0_i32 = arith.constant 0 : i32
    %c0_i32_0 = arith.constant 0 : i32
    %c0_i32_1 = arith.constant 0 : i32
    return %arg1, %c0_i32, %c0_i32_0 : i32, i32, i32
  }
  func.func @transform_2(%arg0: i32, %arg1: i32) -> (i32, i32, i32) {
    %c0_i32 = arith.constant 0 : i32
    %c0_i32_0 = arith.constant 0 : i32
    %c0_i32_1 = arith.constant 0 : i32
    return %arg1, %c0_i32, %c0_i32_0 : i32, i32, i32
  }
  func.func @transform_3(%arg0: i32, %arg1: i32) -> (i32, i32) {
    %c0_i32 = arith.constant 0 : i32
    %c0_i32_0 = arith.constant 0 : i32
    %c0_i32_1 = arith.constant 0 : i32
    return %c0_i32, %c0_i32_0 : i32, i32
  }
  func.func @transform_4(%arg0: i32, %arg1: i32) -> (i32, i32, i32, i32) {
    %c0_i32 = arith.constant 0 : i32
    %c0_i32_0 = arith.constant 0 : i32
    %c0_i32_1 = arith.constant 0 : i32
    %c0_i32_2 = arith.constant 0 : i32
    return %arg1, %c0_i32, %c0_i32_0, %c0_i32_1 : i32, i32, i32, i32
  }
  func.func @transform_5(%arg0: i32, %arg1: i32) -> (i32, i32, i32) {
    %c0_i32 = arith.constant 0 : i32
    %c0_i32_0 = arith.constant 0 : i32
    %c0_i32_1 = arith.constant 0 : i32
    return %arg0, %c0_i32, %c0_i32_0 : i32, i32, i32
  }
}

</mosaic_0001>

<llo_original>
// kernel: tpu_custom_call.1
$region0: #{tpu_custom_call.1}
  #allocation0 [shape = 'u32[]', space=smem, size = 0x4, offset = 0x4, fixed_abs, tag = 'smem constant byte address 0x4 - core index']
  #allocation1 [shape = 'u32[144,128]{1,0:T(1,128)}', space=vmem, size = 0x12000, scoped, tag = 'internal scratch']
  #allocation2 [shape = 'f32[8,324]{1,0:T(8,128)}', space=vmem, size = 0x3000, scoped, tag = 'scratch operand']
  %s0 = inlined_call_operand.hbm [shape: f32[2,324,8], index: 0, kind: input, shape index: {}]
  %s1 = inlined_call_operand.hbm [shape: f32[1,8,32], index: 1, kind: input, shape index: {}]
  %s2 = inlined_call_operand.hbm [shape: f32[1,1,32], index: 2, kind: input, shape index: {}]
  %s3 = inlined_call_operand.hbm [shape: f32[324,1], index: 3, kind: input, shape index: {}]
  %s4 = inlined_call_operand.hbm [shape: f32[1,9,8,32], index: 4, kind: input, shape index: {}]
  %s5 = inlined_call_operand.hbm [shape: f32[2,8,324], index: 5, kind: output, shape index: {}]
  %s6 = sld [smem:[#allocation0]]
  $region81: #{tpu_custom_call.1} parent=0
    _
  %s8 = ssub.s32 1, %s6
  %s9 = scalar_select 0, %s8, %s6
  $region1: #{tpu_custom_call.1} parent=0
    #allocation3 [shape = 'u8[335872]{0}', space=vmem, size = 0x52000, scoped, tag = 'input window, operand 0']
    #allocation4 [shape = 's32[2]{0}', space=sflag, size = 0x8, scoped, tag = 'scoped memory for tpu_custom_call.1']
    #allocation5 [shape = 's32[2]{0}', space=sflag, size = 0x8, scoped, tag = 'scoped memory for tpu_custom_call.1']
    #allocation6 [shape = 'u8[4096]{0}', space=vmem, size = 0x1000, scoped, tag = 'input window, operand 1, single buffered']
    #allocation7 [shape = 's32[1]{0}', space=sflag, size = 0x4, scoped, tag = 'scoped memory for tpu_custom_call.1']
    #allocation8 [shape = 'u8[512]{0}', space=vmem, size = 0x400, scoped, tag = 'input window, operand 2, single buffered']
    #allocation9 [shape = 'u8[167936]{0}', space=vmem, size = 0x29000, scoped, tag = 'input window, operand 3, single buffered']
    #allocation10 [shape = 's32[1]{0}', space=sflag, size = 0x4, scoped, tag = 'scoped memory for tpu_custom_call.1']
    #allocation11 [shape = 'u8[36864]{0}', space=vmem, size = 0x9000, scoped, tag = 'input window, operand 4, single buffered']
    #allocation12 [shape = 'u8[24576]{0}', space=vmem, size = 0x6000, scoped, tag = 'output window, operand 0']
    %10 = vsyncpa [#allocation4], 0
    %s11 = scalar_lea.sflag [#allocation4], 1
    %12 = vsyncpa %s11, 0
    %13 = vsyncpa [#allocation7], 0
    %14 = vsyncpa [#allocation10], 0
    %15 = vsyncpa [#allocation5], 0
    %s16 = scalar_lea.sflag [#allocation5], 1
    %17 = vsyncpa %s16, 0
    loop: start=0, step=1, limit=4
    $region2: #{tpu_custom_call.1} parent=1 // loop_pre_header
      _
    $region3: #{tpu_custom_call.1} parent=1 // loop_header
      %s19 = sphi 0, %s23
      %p20 = scmp.ge.s32.totalorder %s19, 4
      %s26 = sphi 0, %s38
      %s27 = sphi 0, %s34
      %s28 = sphi 0, %s26
      %s29 = sphi 0, %s27
      %s30 = sphi 0, %s28
      %s31 = sphi 0, %s29
      %s41 = sphi 0, %s43
      %s44 = sphi 0, %s41
      %s45 = sphi 0, %s44
      %s61 = sphi 0, %s45
      %s67 = sphi 0, %s69
      %s70 = sphi 0, %s67
      %s71 = sphi 0, %s70
      %s87 = sphi 0, %s71
      %s93 = sphi 0, %s95
      %s96 = sphi 0, %s93
      %s97 = sphi 0, %s96
      %s113 = sphi 0, %s97
      %s117 = sphi 0, %s117
      %s119 = sphi 0, %s117
      %s120 = sphi 0, %s119
      %s134 = sphi 0, %s120
      %s140 = sphi 0, %s142
      %s143 = sphi 0, %s140
      %s144 = sphi 0, %s143
      %s160 = sphi 0, %s144
      %s166 = sphi 0, %s168
      %s169 = sphi 0, %s166
      %s170 = sphi 0, %s169
      %s186 = sphi 0, %s170
    $region4: #{tpu_custom_call.1} parent=1 // loop_header_branch
      %22 = sbr.rel (%p20) target = $region8
    $region5: #{tpu_custom_call.1} parent=1 // loop_body
      %s24 = ssub.s32 %s19, 1
      %s25 = ssub.s32 %s19, 2
      %s32 = sadd.s32 1, %s27
      %p33 = scmp.ge.s32.totalorder %s32, 1
      %s34 = scalar_select %p33, 0, %s32
      %s35 = sadd.s32 1, %s26
      %s36 = scalar_select %p33, %s35, %s26
      %p37 = scmp.ge.s32.totalorder %s36, 2
      %s38 = scalar_select %p37, 0, %s36
      %s39 = ssub.s32 %s26, %s38
      %p40 = scmp.eq.s32.totalorder %s39, 0
      %s42 = sadd.s32 %s41, 1
      %s43 = scalar_select %p40, %s41, %s42
      %p46 = pneg %p40
      %p47 = scmp.eq.s32.totalorder %s19, 1
      %p48 = por %p46, %p47
      %p49 = scmp.ne.s32.totalorder %s41, %s44
      %p50 = scmp.eq.s32.totalorder %s19, 0
      %p51 = por %p49, %p50
      %p52 = scmp.ne.s32.totalorder %s41, %s44
      %p53 = scmp.eq.s32.totalorder %s24, 1
      %p54 = por %p52, %p53
      %p55 = scmp.ne.s32.totalorder %s44, %s45
      %p56 = scmp.eq.s32.totalorder %s24, 0
      %p57 = por %p55, %p56
      %p58 = scmp.ne.s32.totalorder %s44, %s45
      %p59 = scmp.eq.s32.totalorder %s25, 1
      %p60 = por %p58, %p59
      %p62 = scmp.ne.s32.totalorder %s45, %s61
      %p63 = scmp.eq.s32.totalorder %s25, 0
      %p64 = por %p62, %p63
      %s65 = ssub.s32 %s27, %s34
      %p66 = scmp.eq.s32.totalorder %s65, 0
      %s68 = sadd.s32 %s67, 1
      %s69 = scalar_select %p66, %s67, %s68
      %p72 = pneg %p66
      %p73 = scmp.eq.s32.totalorder %s19, 1
      %p74 = por %p72, %p73
      %p75 = scmp.ne.s32.totalorder %s67, %s70
      %p76 = scmp.eq.s32.totalorder %s19, 0
      %p77 = por %p75, %p76
      %p78 = scmp.ne.s32.totalorder %s67, %s70
      %p79 = scmp.eq.s32.totalorder %s24, 1
      %p80 = por %p78, %p79
      %p81 = scmp.ne.s32.totalorder %s70, %s71
      %p82 = scmp.eq.s32.totalorder %s24, 0
      %p83 = por %p81, %p82
      %p84 = scmp.ne.s32.totalorder %s70, %s71
      %p85 = scmp.eq.s32.totalorder %s25, 1
      %p86 = por %p84, %p85
      %p88 = scmp.ne.s32.totalorder %s71, %s87
      %p89 = scmp.eq.s32.totalorder %s25, 0
      %p90 = por %p88, %p89
      %s91 = ssub.s32 %s27, %s34
      %p92 = scmp.eq.s32.totalorder %s91, 0
      %s94 = sadd.s32 %s93, 1
      %s95 = scalar_select %p92, %s93, %s94
      %p98 = pneg %p92
      %p99 = scmp.eq.s32.totalorder %s19, 1
      %p100 = por %p98, %p99
      %p101 = scmp.ne.s32.totalorder %s93, %s96
      %p102 = scmp.eq.s32.totalorder %s19, 0
      %p103 = por %p101, %p102
      %p104 = scmp.ne.s32.totalorder %s93, %s96
      %p105 = scmp.eq.s32.totalorder %s24, 1
      %p106 = por %p104, %p105
      %p107 = scmp.ne.s32.totalorder %s96, %s97
      %p108 = scmp.eq.s32.totalorder %s24, 0
      %p109 = por %p107, %p108
      %p110 = scmp.ne.s32.totalorder %s96, %s97
      %p111 = scmp.eq.s32.totalorder %s25, 1
      %p112 = por %p110, %p111
      %p114 = scmp.ne.s32.totalorder %s97, %s113
      %p115 = scmp.eq.s32.totalorder %s25, 0
      %p116 = por %p114, %p115
      %s118 = sadd.s32 %s117, 1
      %p121 = scmp.eq.s32.totalorder %s19, 1
      %p122 = scmp.ne.s32.totalorder %s117, %s119
      %p123 = scmp.eq.s32.totalorder %s19, 0
      %p124 = por %p122, %p123
      %p125 = scmp.ne.s32.totalorder %s117, %s119
      %p126 = scmp.eq.s32.totalorder %s24, 1
      %p127 = por %p125, %p126
      %p128 = scmp.ne.s32.totalorder %s119, %s120
      %p129 = scmp.eq.s32.totalorder %s24, 0
      %p130 = por %p128, %p129
      %p131 = scmp.ne.s32.totalorder %s119, %s120
      %p132 = scmp.eq.s32.totalorder %s25, 1
      %p133 = por %p131, %p132
      %p135 = scmp.ne.s32.totalorder %s120, %s134
      %p136 = scmp.eq.s32.totalorder %s25, 0
      %p137 = por %p135, %p136
      %s138 = ssub.s32 %s27, %s34
      %p139 = scmp.eq.s32.totalorder %s138, 0
      %s141 = sadd.s32 %s140, 1
      %s142 = scalar_select %p139, %s140, %s141
      %p145 = pneg %p139
      %p146 = scmp.eq.s32.totalorder %s19, 1
      %p147 = por %p145, %p146
      %p148 = scmp.ne.s32.totalorder %s140, %s143
      %p149 = scmp.eq.s32.totalorder %s19, 0
      %p150 = por %p148, %p149
      %p151 = scmp.ne.s32.totalorder %s140, %s143
      %p152 = scmp.eq.s32.totalorder %s24, 1
      %p153 = por %p151, %p152
      %p154 = scmp.ne.s32.totalorder %s143, %s144
      %p155 = scmp.eq.s32.totalorder %s24, 0
      %p156 = por %p154, %p155
      %p157 = scmp.ne.s32.totalorder %s143, %s144
      %p158 = scmp.eq.s32.totalorder %s25, 1
      %p159 = por %p157, %p158
      %p161 = scmp.ne.s32.totalorder %s144, %s160
      %p162 = scmp.eq.s32.totalorder %s25, 0
      %p163 = por %p161, %p162
      %s164 = ssub.s32 %s26, %s38
      %p165 = scmp.eq.s32.totalorder %s164, 0
      %s167 = sadd.s32 %s166, 1
      %s168 = scalar_select %p165, %s166, %s167
      %p171 = pneg %p165
      %p172 = scmp.eq.s32.totalorder %s19, 1
      %p173 = por %p171, %p172
      %p174 = scmp.ne.s32.totalorder %s166, %s169
      %p175 = scmp.eq.s32.totalorder %s19, 0
      %p176 = por %p174, %p175
      %p177 = scmp.ne.s32.totalorder %s166, %s169
      %p178 = scmp.eq.s32.totalorder %s24, 1
      %p179 = por %p177, %p178
      %p180 = scmp.ne.s32.totalorder %s169, %s170
      %p181 = scmp.eq.s32.totalorder %s24, 0
      %p182 = por %p180, %p181
      %p183 = scmp.ne.s32.totalorder %s169, %s170
      %p184 = scmp.eq.s32.totalorder %s25, 1
      %p185 = por %p183, %p184
      %p187 = scmp.ne.s32.totalorder %s170, %s186
      %p188 = scmp.eq.s32.totalorder %s25, 0
      %p189 = por %p187, %p188
      %p190 = scmp.le.s32.totalorder 1, %s19
      %p191 = scmp.lt.s32.totalorder %s19, 3
      %p192 = pnand %p190, %p191
      %p193 = pneg %p192
      // Predicated region
      $region9: #{tpu_custom_call.1} parent=5 // pred_check
        _
      $region10: #{tpu_custom_call.1} parent=5 // pred_check_branch
        %195 = sbr.rel (%p192) target = $region12
      $region11: #{tpu_custom_call.1} parent=5 // pred_region
        %s196 = ssub.s32 %s19, 1
        // Predicated region
        $region13: #{tpu_custom_call.1} parent=11 // pred_check
          %p197 = pneg %p83
        $region14: #{tpu_custom_call.1} parent=11 // pred_check_branch
          %199 = sbr.rel (%p197) target = $region16
        $region15: #{tpu_custom_call.1} parent=11 // pred_region
          %s201 = ssub.s32 128, 128
          %202 = vsyncadd [#allocation7], %s201
          %s203 = smul.addr %s29, 128
          %s204 = scalar_lea.hbm %s1, %s203
          %s206 = sshll.u32 [#allocation6], 4
          %s207 = int_to_ptr.vmem [resolvable:$true] %s206
          %209 = dma.hbm_to_vmem [thread:$0]  %s204, 128, %s207, [#allocation7]
        $region16: #{tpu_custom_call.1} parent=11 // pred_fallthru
          _
        // Predicated region
        $region17: #{tpu_custom_call.1} parent=11 // pred_check
          %p210 = pneg %p109
        $region18: #{tpu_custom_call.1} parent=11 // pred_check_branch
          %212 = sbr.rel (%p210) target = $region20
        $region19: #{tpu_custom_call.1} parent=11 // pred_region
          %s214 = ssub.s32 16, 16
          %215 = vsyncadd [#allocation7], %s214
          %s216 = smul.addr %s29, 16
          %s217 = scalar_lea.hbm %s2, %s216
          %s219 = sshll.u32 [#allocation8], 4
          %s220 = int_to_ptr.vmem [resolvable:$true] %s219
          %222 = dma.hbm_to_vmem [thread:$0]  %s217, 16, %s220, [#allocation7]
        $region20: #{tpu_custom_call.1} parent=11 // pred_fallthru
          _
        // Predicated region
        $region21: #{tpu_custom_call.1} parent=11 // pred_check
          %p223 = pneg %p130
        $region22: #{tpu_custom_call.1} parent=11 // pred_check_branch
          %225 = sbr.rel (%p223) target = $region24
        $region23: #{tpu_custom_call.1} parent=11 // pred_region
          %s227 = ssub.s32 5248, 5248
          %228 = vsyncadd [#allocation10], %s227
          %s229 = sshll.u32 [#allocation9], 4
          %s230 = int_to_ptr.vmem [resolvable:$true] %s229
          %235 = dma.hbm_to_vmem [thread:$0]  %s3, 5248, %s230, [#allocation10], 128, 128, 8
        $region24: #{tpu_custom_call.1} parent=11 // pred_fallthru
          _
        // Predicated region
        $region25: #{tpu_custom_call.1} parent=11 // pred_check
          %p236 = pneg %p156
        $region26: #{tpu_custom_call.1} parent=11 // pred_check_branch
          %238 = sbr.rel (%p236) target = $region28
        $region27: #{tpu_custom_call.1} parent=11 // pred_region
          %s240 = ssub.s32 1152, 1152
          %241 = vsyncadd [#allocation10], %s240
          %s242 = smul.addr %s29, 9
          %s243 = smul.addr %s242, 128
          %s244 = scalar_lea.hbm %s4, %s243
          %s245 = sshll.u32 [#allocation11], 4
          %s246 = int_to_ptr.vmem [resolvable:$true] %s245
          %251 = dma.hbm_to_vmem [thread:$0]  %s244, 1152, %s246, [#allocation10], 128, 128, 8
        $region28: #{tpu_custom_call.1} parent=11 // pred_fallthru
          _
      $region12: #{tpu_custom_call.1} parent=5 // pred_fallthru
        _
      %p252 = scmp.lt.s32.totalorder %s19, 2
      // Predicated region
      $region29: #{tpu_custom_call.1} parent=5 // pred_check
        %p253 = pneg %p252
      $region30: #{tpu_custom_call.1} parent=5 // pred_check_branch
        %255 = sbr.rel (%p253) target = $region32
      $region31: #{tpu_custom_call.1} parent=5 // pred_region
        // Predicated region
        $region33: #{tpu_custom_call.1} parent=31 // pred_check
          %p256 = pneg %p51
        $region34: #{tpu_custom_call.1} parent=31 // pred_check_branch
          %258 = sbr.rel (%p256) target = $region36
        $region35: #{tpu_custom_call.1} parent=31 // pred_region
          %s259 = sand.u32 %s41, 1
          %s260 = scalar_lea.sflag [#allocation4], %s259
          %s261 = sand.u32 %s41, 1
          %s262 = smul.addr %s261, 328
          %s263 = scalar_lea.vmem [#allocation3], %s262
          %s265 = ssub.s32 5248, 5248
          %266 = vsyncadd %s260, %s265
          %s267 = smul.addr %s26, 41
          %s268 = smul.addr %s267, 128
          %s269 = scalar_lea.hbm %s0, %s268
          %s270 = sshll.u32 %s263, 4
          %s271 = int_to_ptr.vmem [resolvable:$true] %s270
          %276 = dma.hbm_to_vmem [thread:$0]  %s269, 5248, %s271, %s260, 128, 128, 8
        $region36: #{tpu_custom_call.1} parent=31 // pred_fallthru
          _
      $region32: #{tpu_custom_call.1} parent=5 // pred_fallthru
        _
      %p277 = scmp.le.s32.totalorder 1, %s19
      %p278 = scmp.lt.s32.totalorder %s19, 3
      %p279 = pnand %p277, %p278
      %p280 = pneg %p279
      // Predicated region
      $region37: #{tpu_custom_call.1} parent=5 // pred_check
        _
      $region38: #{tpu_custom_call.1} parent=5 // pred_check_branch
        %282 = sbr.rel (%p279) target = $region40
      $region39: #{tpu_custom_call.1} parent=5 // pred_region
        %s283 = ssub.s32 %s19, 1
        %s284 = sand.u32 %s44, 1
        %s285 = scalar_lea.sflag [#allocation4], %s284
        %s286 = sand.u32 %s44, 1
        %s287 = smul.addr %s286, 328
        %s288 = scalar_lea.vmem [#allocation3], %s287
        // Predicated region
        $region41: #{tpu_custom_call.1} parent=39 // pred_check
          %p289 = pneg %p57
        $region42: #{tpu_custom_call.1} parent=39 // pred_check_branch
          %291 = sbr.rel (%p289) target = $region44
        $region43: #{tpu_custom_call.1} parent=39 // pred_region
          %292 = dma.done %s285, 5248
        $region44: #{tpu_custom_call.1} parent=39 // pred_fallthru
          _
        // Predicated region
        $region45: #{tpu_custom_call.1} parent=39 // pred_check
          %p293 = pneg %p83
        $region46: #{tpu_custom_call.1} parent=39 // pred_check_branch
          %295 = sbr.rel (%p293) target = $region48
        $region47: #{tpu_custom_call.1} parent=39 // pred_region
          %296 = dma.done [#allocation7], 128
        $region48: #{tpu_custom_call.1} parent=39 // pred_fallthru
          _
        // Predicated region
        $region49: #{tpu_custom_call.1} parent=39 // pred_check
          %p297 = pneg %p109
        $region50: #{tpu_custom_call.1} parent=39 // pred_check_branch
          %299 = sbr.rel (%p297) target = $region52
        $region51: #{tpu_custom_call.1} parent=39 // pred_region
          %300 = dma.done [#allocation7], 16
        $region52: #{tpu_custom_call.1} parent=39 // pred_fallthru
          _
        // Predicated region
        $region53: #{tpu_custom_call.1} parent=39 // pred_check
          %p301 = pneg %p130
        $region54: #{tpu_custom_call.1} parent=39 // pred_check_branch
          %303 = sbr.rel (%p301) target = $region56
        $region55: #{tpu_custom_call.1} parent=39 // pred_region
          %304 = dma.done [#allocation10], 5248
        $region56: #{tpu_custom_call.1} parent=39 // pred_fallthru
          _
        // Predicated region
        $region57: #{tpu_custom_call.1} parent=39 // pred_check
          %p305 = pneg %p156
        $region58: #{tpu_custom_call.1} parent=39 // pred_check_branch
          %307 = sbr.rel (%p305) target = $region60
        $region59: #{tpu_custom_call.1} parent=39 // pred_region
          %308 = dma.done [#allocation10], 1152
        $region60: #{tpu_custom_call.1} parent=39 // pred_fallthru
          _
        %s309 = sand.u32 %s44, 1
        %s310 = scalar_lea.sflag [#allocation4], %s309
        %s311 = sand.u32 %s44, 1
        %s312 = smul.addr %s311, 328
        %s313 = scalar_lea.vmem [#allocation3], %s312
        %p314 = pneg %p57
        %p315 = pneg %p54
        %p316 = pneg %p83
        %p317 = pneg %p80
        %p318 = pneg %p109
        %p319 = pneg %p106
        %p320 = pneg %p130
        %p321 = pneg %p127
        %p322 = pneg %p156
        %p323 = pneg %p153
        %p324 = pneg %p182
        %p325 = pneg %p179
        %s326 = sand.u32 %s169, 1
        %s327 = scalar_lea.sflag [#allocation5], %s326
        %s328 = sand.u32 %s169, 1
        %s329 = smul.addr %s328, 24
        %s330 = scalar_lea.vmem [#allocation12], %s329
        %p331 = scmp.eq.s32.totalorder %s29, 0
        // Predicated region
        $region61: #{tpu_custom_call.1} parent=39 // pred_check
          %p332 = pneg %p331
        $region62: #{tpu_custom_call.1} parent=39 // pred_check_branch
          %334 = sbr.rel (%p332) target = $region64
        $region63: #{tpu_custom_call.1} parent=39 // pred_region
          %335 = vst [vmem:[#allocation2] sm:$0xff] 0.0
          %336 = vst [vmem:[#allocation2 + $0x8] sm:$0xff] 0.0
          %vm337 = vcmask 556032
          %338 = vst.msk [vmem:[#allocation2 + $0x10] sm:$0xff] %vm337, 0.0
        $region64: #{tpu_custom_call.1} parent=39 // pred_fallthru
          _
        %v339 = vld [vmem:[%s288] sm:$0xff]
        %v340 = vld [vmem:[%s288 + $0x8] sm:$0xff]
        %v341 = vld [vmem:[%s288 + $0x10] sm:$0xff]
        %v342 = vld [vmem:[%s288 + $0x18] sm:$0xff]
        %v343 = vld [vmem:[%s288 + $0x20] sm:$0xff]
        %v344 = vld [vmem:[%s288 + $0x28] sm:$0xff]
        %v345 = vld [vmem:[%s288 + $0x30] sm:$0xff]
        %v346 = vld [vmem:[%s288 + $0x38] sm:$0xff]
        %v347 = vld [vmem:[%s288 + $0x40] sm:$0xff]
        %v348 = vld [vmem:[%s288 + $0x48] sm:$0xff]
        %v349 = vld [vmem:[%s288 + $0x50] sm:$0xff]
        %v350 = vld [vmem:[%s288 + $0x58] sm:$0xff]
        %v351 = vld [vmem:[%s288 + $0x60] sm:$0xff]
        %v352 = vld [vmem:[%s288 + $0x68] sm:$0xff]
        %v353 = vld [vmem:[%s288 + $0x70] sm:$0xff]
        %v354 = vld [vmem:[%s288 + $0x78] sm:$0xff]
        %v355 = vld [vmem:[%s288 + $0x80] sm:$0xff]
        %v356 = vld [vmem:[%s288 + $0x88] sm:$0xff]
        %v357 = vld [vmem:[%s288 + $0x90] sm:$0xff]
        %v358 = vld [vmem:[%s288 + $0x98] sm:$0xff]
        %v359 = vld [vmem:[%s288 + $0xa0] sm:$0xff]
        %v360 = vld [vmem:[%s288 + $0xa8] sm:$0xff]
        %v361 = vld [vmem:[%s288 + $0xb0] sm:$0xff]
        %v362 = vld [vmem:[%s288 + $0xb8] sm:$0xff]
        %v363 = vld [vmem:[%s288 + $0xc0] sm:$0xff]
        %v364 = vld [vmem:[%s288 + $0xc8] sm:$0xff]
        %v365 = vld [vmem:[%s288 + $0xd0] sm:$0xff]
        %v366 = vld [vmem:[%s288 + $0xd8] sm:$0xff]
        %v367 = vld [vmem:[%s288 + $0xe0] sm:$0xff]
        %v368 = vld [vmem:[%s288 + $0xe8] sm:$0xff]
        %v369 = vld [vmem:[%s288 + $0xf0] sm:$0xff]
        %v370 = vld [vmem:[%s288 + $0xf8] sm:$0xff]
        %v371 = vld [vmem:[%s288 + $0x100] sm:$0xff]
        %v372 = vld [vmem:[%s288 + $0x108] sm:$0xff]
        %v373 = vld [vmem:[%s288 + $0x110] sm:$0xff]
        %v374 = vld [vmem:[%s288 + $0x118] sm:$0xff]
        %v375 = vld [vmem:[%s288 + $0x120] sm:$0xff]
        %v376 = vld [vmem:[%s288 + $0x128] sm:$0xff]
        %v377 = vld [vmem:[%s288 + $0x130] sm:$0xff]
        %v378 = vld [vmem:[%s288 + $0x138] sm:$0xff]
        %v379 = vld [vmem:[%s288 + $0x140] sm:$0xf]
        %v380 = vld [vmem:[#allocation6] sm:$0xff]
        %vm381 = vcmask 64512
        %v383 = vsel %vm381, %v339, 0
        %v386 = vsel %vm381, %v340, 0
        %v389 = vsel %vm381, %v341, 0
        %v392 = vsel %vm381, %v342, 0
        %v395 = vsel %vm381, %v343, 0
        %v398 = vsel %vm381, %v344, 0
        %v401 = vsel %vm381, %v345, 0
        %v404 = vsel %vm381, %v346, 0
        %v407 = vsel %vm381, %v347, 0
        %v410 = vsel %vm381, %v348, 0
        %v413 = vsel %vm381, %v349, 0
        %v416 = vsel %vm381, %v350, 0
        %v419 = vsel %vm381, %v351, 0
        %v422 = vsel %vm381, %v352, 0
        %v425 = vsel %vm381, %v353, 0
        %v428 = vsel %vm381, %v354, 0
        %v431 = vsel %vm381, %v355, 0
        %v434 = vsel %vm381, %v356, 0
        %v437 = vsel %vm381, %v357, 0
        %v440 = vsel %vm381, %v358, 0
        %v443 = vsel %vm381, %v359, 0
        %v446 = vsel %vm381, %v360, 0
        %v449 = vsel %vm381, %v361, 0
        %v452 = vsel %vm381, %v362, 0
        %v455 = vsel %vm381, %v363, 0
        %v458 = vsel %vm381, %v364, 0
        %v461 = vsel %vm381, %v365, 0
        %v464 = vsel %vm381, %v366, 0
        %v467 = vsel %vm381, %v367, 0
        %v470 = vsel %vm381, %v368, 0
        %v473 = vsel %vm381, %v369, 0
        %v476 = vsel %vm381, %v370, 0
        %v479 = vsel %vm381, %v371, 0
        %v482 = vsel %vm381, %v372, 0
        %v485 = vsel %vm381, %v373, 0
        %v488 = vsel %vm381, %v374, 0
        %v491 = vsel %vm381, %v375, 0
        %v494 = vsel %vm381, %v376, 0
        %v497 = vsel %vm381, %v377, 0
        %v500 = vsel %vm381, %v378, 0
        %v503 = vsel %vm381, %v379, 0
        %505 = vmatprep.subr.mxu0 0.0
        %506 = vmatpush1.msra.mxu0 %v380
        %507 = vmatprep.subr.mxu0 0.0
        %508 = vmatpush1.msra.mxu0 0.0
        %509 = vmatprep.subr.mxu0 0.0
        %510 = vmatpush1.msra.mxu0 0.0
        %511 = vmatprep.subr.mxu0 0.0
        %512 = vmatpush1.msra.mxu0 0.0
        %513 = vmatprep.subr.mxu0 0.0
        %514 = vmatpush1.msra.mxu0 0.0
        %515 = vmatprep.subr.mxu0 0.0
        %516 = vmatpush1.msra.mxu0 0.0
        %517 = vmatprep.subr.mxu0 0.0
        %518 = vmatpush1.msra.mxu0 0.0
        %519 = vmatprep.subr.mxu0 0.0
        %520 = vmatpush1.msra.mxu0 0.0
        %521 = vmatprep.subr.mxu0 0.0
        %522 = vmatpush1.msra.mxu0 0.0
        %523 = vmatprep.subr.mxu0 0.0
        %524 = vmatpush1.msra.mxu0 0.0
        %525 = vmatprep.subr.mxu0 0.0
        %526 = vmatpush1.msra.mxu0 0.0
        %527 = vmatprep.subr.mxu0 0.0
        %528 = vmatpush1.msra.mxu0 0.0
        %529 = vmatprep.subr.mxu0 0.0
        %530 = vmatpush1.msra.mxu0 0.0
        %531 = vmatprep.subr.mxu0 0.0
        %532 = vmatpush1.msra.mxu0 0.0
        %533 = vmatprep.subr.mxu0 0.0
        %534 = vmatpush1.msra.mxu0 0.0
        %535 = vmatprep.subr.mxu0 0.0
        %536 = vmatpush1.msra.mxu0 0.0
        %537 = vmatprep.subr.mxu0 0.0
        %538 = vmatpush1.msra.mxu0 0.0
        %539 = vmatprep.subr.mxu0 0.0
        %540 = vmatpush1.msra.mxu0 0.0
        %541 = vmatprep.subr.mxu0 0.0
        %542 = vmatpush1.msra.mxu0 0.0
        %543 = vmatprep.subr.mxu0 0.0
        %544 = vmatpush1.msra.mxu0 0.0
        %545 = vmatprep.subr.mxu0 0.0
        %546 = vmatpush1.msra.mxu0 0.0
        %547 = vmatprep.subr.mxu0 0.0
        %548 = vmatpush1.msra.mxu0 0.0
        %549 = vmatprep.subr.mxu0 0.0
        %550 = vmatpush1.msra.mxu0 0.0
        %551 = vmatprep.subr.mxu0 0.0
        %552 = vmatpush1.msra.mxu0 0.0
        %553 = vmatprep.subr.mxu0 0.0
        %554 = vmatpush1.msra.mxu0 0.0
        %555 = vmatprep.subr.mxu0 0.0
        %556 = vmatpush1.msra.mxu0 0.0
        %557 = vmatprep.subr.mxu0 0.0
        %558 = vmatpush1.msra.mxu0 0.0
        %559 = vmatprep.subr.mxu0 0.0
        %560 = vmatpush1.msra.mxu0 0.0
        %561 = vmatprep.subr.mxu0 0.0
        %562 = vmatpush1.msra.mxu0 0.0
        %563 = vmatprep.subr.mxu0 0.0
        %564 = vmatpush1.msra.mxu0 0.0
        %565 = vmatprep.subr.mxu0 0.0
        %566 = vmatpush1.msra.mxu0 0.0
        %567 = vmatprep.subr.mxu0 0.0
        %568 = vmatpush1.msra.mxu0 0.0
        %569 = vmatprep.mubr.f32.mxu0 0.0
        %570 = vmatmul.mubr.f32.gmra.mrb[0].mxu0 %v383
        %v571 = vpop.f32.mrb[0].mxu0
        %v572 = vadd.f32 0.0, %v571
        %v573 = vpop.f32.mrb[0].mxu0
        %574 = vmatprep.mubr.f32.mxu0 0.0
        %575 = vmatmul.mubr.f32.gmra.mrb[0].mxu0 %v386
        %v576 = vpop.f32.mrb[0].mxu0
        %v577 = vadd.f32 0.0, %v576
        %v578 = vpop.f32.mrb[0].mxu0
        %579 = vmatprep.mubr.f32.mxu0 0.0
        %580 = vmatmul.mubr.f32.gmra.mrb[0].mxu0 %v389
        %v581 = vpop.f32.mrb[0].mxu0
        %v582 = vadd.f32 0.0, %v581
        %v583 = vpop.f32.mrb[0].mxu0
        %584 = vmatprep.mubr.f32.mxu0 0.0
        %585 = vmatmul.mubr.f32.gmra.mrb[0].mxu0 %v392
        %v586 = vpop.f32.mrb[0].mxu0
        %v587 = vadd.f32 0.0, %v586
        %v588 = vpop.f32.mrb[0].mxu0
        %589 = vmatprep.mubr.f32.mxu0 0.0
        %590 = vmatmul.mubr.f32.gmra.mrb[0].mxu0 %v395
        %v591 = vpop.f32.mrb[0].mxu0
        %v592 = vadd.f32 0.0, %v591
        %v593 = vpop.f32.mrb[0].mxu0
        %594 = vmatprep.mubr.f32.mxu0 0.0
        %595 = vmatmul.mubr.f32.gmra.mrb[0].mxu0 %v398
        %v596 = vpop.f32.mrb[0].mxu0
        %v597 = vadd.f32 0.0, %v596
        %v598 = vpop.f32.mrb[0].mxu0
        %599 = vmatprep.mubr.f32.mxu0 0.0
        %600 = vmatmul.mubr.f32.gmra.mrb[0].mxu0 %v401
        %v601 = vpop.f32.mrb[0].mxu0
        %v602 = vadd.f32 0.0, %v601
        %v603 = vpop.f32.mrb[0].mxu0
        %604 = vmatprep.mubr.f32.mxu0 0.0
        %605 = vmatmul.mubr.f32.gmra.mrb[0].mxu0 %v404
        %v606 = vpop.f32.mrb[0].mxu0
        %v607 = vadd.f32 0.0, %v606
        %v608 = vpop.f32.mrb[0].mxu0
        %609 = vmatprep.mubr.f32.mxu0 0.0
        %610 = vmatmul.mubr.f32.gmra.mrb[0].mxu0 %v407
        %v611 = vpop.f32.mrb[0].mxu0
        %v612 = vadd.f32 0.0, %v611
        %v613 = vpop.f32.mrb[0].mxu0
        %614 = vmatprep.mubr.f32.mxu0 0.0
        %615 = vmatmul.mubr.f32.gmra.mrb[0].mxu0 %v410
        %v616 = vpop.f32.mrb[0].mxu0
        %v617 = vadd.f32 0.0, %v616
        %v618 = vpop.f32.mrb[0].mxu0
        %619 = vmatprep.mubr.f32.mxu0 0.0
        %620 = vmatmul.mubr.f32.gmra.mrb[0].mxu0 %v413
        %v621 = vpop.f32.mrb[0].mxu0
        %v622 = vadd.f32 0.0, %v621
        %v623 = vpop.f32.mrb[0].mxu0
        %624 = vmatprep.mubr.f32.mxu0 0.0
        %625 = vmatmul.mubr.f32.gmra.mrb[0].mxu0 %v416
        %v626 = vpop.f32.mrb[0].mxu0
        %v627 = vadd.f32 0.0, %v626
        %v628 = vpop.f32.mrb[0].mxu0
        %629 = vmatprep.mubr.f32.mxu0 0.0
        %630 = vmatmul.mubr.f32.gmra.mrb[0].mxu0 %v419
        %v631 = vpop.f32.mrb[0].mxu0
        %v632 = vadd.f32 0.0, %v631
        %v633 = vpop.f32.mrb[0].mxu0
        %634 = vmatprep.mubr.f32.mxu0 0.0
        %635 = vmatmul.mubr.f32.gmra.mrb[0].mxu0 %v422
        %v636 = vpop.f32.mrb[0].mxu0
        %v637 = vadd.f32 0.0, %v636
        %v638 = vpop.f32.mrb[0].mxu0
        %639 = vmatprep.mubr.f32.mxu0 0.0
        %640 = vmatmul.mubr.f32.gmra.mrb[0].mxu0 %v425
        %v641 = vpop.f32.mrb[0].mxu0
        %v642 = vadd.f32 0.0, %v641
        %v643 = vpop.f32.mrb[0].mxu0
        %644 = vmatprep.mubr.f32.mxu0 0.0
        %645 = vmatmul.mubr.f32.gmra.mrb[0].mxu0 %v428
        %v646 = vpop.f32.mrb[0].mxu0
        %v647 = vadd.f32 0.0, %v646
        %v648 = vpop.f32.mrb[0].mxu0
        %649 = vmatprep.mubr.f32.mxu0 0.0
        %650 = vmatmul.mubr.f32.gmra.mrb[0].mxu0 %v431
        %v651 = vpop.f32.mrb[0].mxu0
        %v652 = vadd.f32 0.0, %v651
        %v653 = vpop.f32.mrb[0].mxu0
        %654 = vmatprep.mubr.f32.mxu0 0.0
        %655 = vmatmul.mubr.f32.gmra.mrb[0].mxu0 %v434
        %v656 = vpop.f32.mrb[0].mxu0
        %v657 = vadd.f32 0.0, %v656
        %v658 = vpop.f32.mrb[0].mxu0
        %659 = vmatprep.mubr.f32.mxu0 0.0
        %660 = vmatmul.mubr.f32.gmra.mrb[0].mxu0 %v437
        %v661 = vpop.f32.mrb[0].mxu0
        %v662 = vadd.f32 0.0, %v661
        %v663 = vpop.f32.mrb[0].mxu0
        %664 = vmatprep.mubr.f32.mxu0 0.0
        %665 = vmatmul.mubr.f32.gmra.mrb[0].mxu0 %v440
        %v666 = vpop.f32.mrb[0].mxu0
        %v667 = vadd.f32 0.0, %v666
        %v668 = vpop.f32.mrb[0].mxu0
        %669 = vmatprep.mubr.f32.mxu0 0.0
        %670 = vmatmul.mubr.f32.gmra.mrb[0].mxu0 %v443
        %v671 = vpop.f32.mrb[0].mxu0
        %v672 = vadd.f32 0.0, %v671
        %v673 = vpop.f32.mrb[0].mxu0
        %674 = vmatprep.mubr.f32.mxu0 0.0
        %675 = vmatmul.mubr.f32.gmra.mrb[0].mxu0 %v446
        %v676 = vpop.f32.mrb[0].mxu0
        %v677 = vadd.f32 0.0, %v676
        %v678 = vpop.f32.mrb[0].mxu0
        %679 = vmatprep.mubr.f32.mxu0 0.0
        %680 = vmatmul.mubr.f32.gmra.mrb[0].mxu0 %v449
        %v681 = vpop.f32.mrb[0].mxu0
        %v682 = vadd.f32 0.0, %v681
        %v683 = vpop.f32.mrb[0].mxu0
        %684 = vmatprep.mubr.f32.mxu0 0.0
        %685 = vmatmul.mubr.f32.gmra.mrb[0].mxu0 %v452
        %v686 = vpop.f32.mrb[0].mxu0
        %v687 = vadd.f32 0.0, %v686
        %v688 = vpop.f32.mrb[0].mxu0
        %689 = vmatprep.mubr.f32.mxu0 0.0
        %690 = vmatmul.mubr.f32.gmra.mrb[0].mxu0 %v455
        %v691 = vpop.f32.mrb[0].mxu0
        %v692 = vadd.f32 0.0, %v691
        %v693 = vpop.f32.mrb[0].mxu0
        %694 = vmatprep.mubr.f32.mxu0 0.0
        %695 = vmatmul.mubr.f32.gmra.mrb[0].mxu0 %v458
        %v696 = vpop.f32.mrb[0].mxu0
        %v697 = vadd.f32 0.0, %v696
        %v698 = vpop.f32.mrb[0].mxu0
        %699 = vmatprep.mubr.f32.mxu0 0.0
        %700 = vmatmul.mubr.f32.gmra.mrb[0].mxu0 %v461
        %v701 = vpop.f32.mrb[0].mxu0
        %v702 = vadd.f32 0.0, %v701
        %v703 = vpop.f32.mrb[0].mxu0
        %704 = vmatprep.mubr.f32.mxu0 0.0
        %705 = vmatmul.mubr.f32.gmra.mrb[0].mxu0 %v464
        %v706 = vpop.f32.mrb[0].mxu0
        %v707 = vadd.f32 0.0, %v706
        %v708 = vpop.f32.mrb[0].mxu0
        %709 = vmatprep.mubr.f32.mxu0 0.0
        %710 = vmatmul.mubr.f32.gmra.mrb[0].mxu0 %v467
        %v711 = vpop.f32.mrb[0].mxu0
        %v712 = vadd.f32 0.0, %v711
        %v713 = vpop.f32.mrb[0].mxu0
        %714 = vmatprep.mubr.f32.mxu0 0.0
        %715 = vmatmul.mubr.f32.gmra.mrb[0].mxu0 %v470
        %v716 = vpop.f32.mrb[0].mxu0
        %v717 = vadd.f32 0.0, %v716
        %v718 = vpop.f32.mrb[0].mxu0
        %719 = vmatprep.mubr.f32.mxu0 0.0
        %720 = vmatmul.mubr.f32.gmra.mrb[0].mxu0 %v473
        %v721 = vpop.f32.mrb[0].mxu0
        %v722 = vadd.f32 0.0, %v721
        %v723 = vpop.f32.mrb[0].mxu0
        %724 = vmatprep.mubr.f32.mxu0 0.0
        %725 = vmatmul.mubr.f32.gmra.mrb[0].mxu0 %v476
        %v726 = vpop.f32.mrb[0].mxu0
        %v727 = vadd.f32 0.0, %v726
        %v728 = vpop.f32.mrb[0].mxu0
        %729 = vmatprep.mubr.f32.mxu0 0.0
        %730 = vmatmul.mubr.f32.gmra.mrb[0].mxu0 %v479
        %v731 = vpop.f32.mrb[0].mxu0
        %v732 = vadd.f32 0.0, %v731
        %v733 = vpop.f32.mrb[0].mxu0
        %734 = vmatprep.mubr.f32.mxu0 0.0
        %735 = vmatmul.mubr.f32.gmra.mrb[0].mxu0 %v482
        %v736 = vpop.f32.mrb[0].mxu0
        %v737 = vadd.f32 0.0, %v736
        %v738 = vpop.f32.mrb[0].mxu0
        %739 = vmatprep.mubr.f32.mxu0 0.0
        %740 = vmatmul.mubr.f32.gmra.mrb[0].mxu0 %v485
        %v741 = vpop.f32.mrb[0].mxu0
        %v742 = vadd.f32 0.0, %v741
        %v743 = vpop.f32.mrb[0].mxu0
        %744 = vmatprep.mubr.f32.mxu0 0.0
        %745 = vmatmul.mubr.f32.gmra.mrb[0].mxu0 %v488
        %v746 = vpop.f32.mrb[0].mxu0
        %v747 = vadd.f32 0.0, %v746
        %v748 = vpop.f32.mrb[0].mxu0
        %749 = vmatprep.mubr.f32.mxu0 0.0
        %750 = vmatmul.mubr.f32.gmra.mrb[0].mxu0 %v491
        %v751 = vpop.f32.mrb[0].mxu0
        %v752 = vadd.f32 0.0, %v751
        %v753 = vpop.f32.mrb[0].mxu0
        %754 = vmatprep.mubr.f32.mxu0 0.0
        %755 = vmatmul.mubr.f32.gmra.mrb[0].mxu0 %v494
        %v756 = vpop.f32.mrb[0].mxu0
        %v757 = vadd.f32 0.0, %v756
        %v758 = vpop.f32.mrb[0].mxu0
        %759 = vmatprep.mubr.f32.mxu0 0.0
        %760 = vmatmul.mubr.f32.gmra.mrb[0].mxu0 %v497
        %v761 = vpop.f32.mrb[0].mxu0
        %v762 = vadd.f32 0.0, %v761
        %v763 = vpop.f32.mrb[0].mxu0
        %764 = vmatprep.mubr.f32.mxu0 0.0
        %765 = vmatmul.mubr.f32.gmra.mrb[0].mxu0 %v500
        %v766 = vpop.f32.mrb[0].mxu0
        %v767 = vadd.f32 0.0, %v766
        %v768 = vpop.f32.mrb[0].mxu0
        %769 = vmatprep.mubr.f32.mxu0 0.0
        %770 = vmatmul.mubr.f32.gmra.mrb[0].mxu0 %v503
        %v771 = vpop.f32.mrb[0].mxu0
        %v772 = vadd.f32 0.0, %v771
        %v773 = vpop.f32.mrb[0].mxu0
        %774 = vdwg.mxu0
        %v775 = vld [vmem:[#allocation8] sm:$0x1]
        %v777 = vlaneseq
        %v778 = vshrl.u32 %v777, 7
        %v779 = vsub.s32 0, %v778
        %v780 = vrot.slane %v775, %v779
        %v782 = vsub.f32 %v572, %v780
        %v783 = vsub.f32 %v577, %v780
        %v784 = vsub.f32 %v582, %v780
        %v785 = vsub.f32 %v587, %v780
        %v786 = vsub.f32 %v592, %v780
        %v787 = vsub.f32 %v597, %v780
        %v788 = vsub.f32 %v602, %v780
        %v789 = vsub.f32 %v607, %v780
        %v790 = vsub.f32 %v612, %v780
        %v791 = vsub.f32 %v617, %v780
        %v792 = vsub.f32 %v622, %v780
        %v793 = vsub.f32 %v627, %v780
        %v794 = vsub.f32 %v632, %v780
        %v795 = vsub.f32 %v637, %v780
        %v796 = vsub.f32 %v642, %v780
        %v797 = vsub.f32 %v647, %v780
        %v798 = vsub.f32 %v652, %v780
        %v799 = vsub.f32 %v657, %v780
        %v800 = vsub.f32 %v662, %v780
        %v801 = vsub.f32 %v667, %v780
        %v802 = vsub.f32 %v672, %v780
        %v803 = vsub.f32 %v677, %v780
        %v804 = vsub.f32 %v682, %v780
        %v805 = vsub.f32 %v687, %v780
        %v806 = vsub.f32 %v692, %v780
        %v807 = vsub.f32 %v697, %v780
        %v808 = vsub.f32 %v702, %v780
        %v809 = vsub.f32 %v707, %v780
        %v810 = vsub.f32 %v712, %v780
        %v811 = vsub.f32 %v717, %v780
        %v812 = vsub.f32 %v722, %v780
        %v813 = vsub.f32 %v727, %v780
        %v814 = vsub.f32 %v732, %v780
        %v815 = vsub.f32 %v737, %v780
        %v816 = vsub.f32 %v742, %v780
        %v817 = vsub.f32 %v747, %v780
        %v818 = vsub.f32 %v752, %v780
        %v819 = vsub.f32 %v757, %v780
        %v820 = vsub.f32 %v762, %v780
        %v821 = vsub.f32 %v767, %v780
        %v822 = vsub.f32 %v772, %v780
        %v823 = vmul.f32 %v782, %v782
        %v824 = vmul.f32 %v783, %v783
        %v825 = vmul.f32 %v784, %v784
        %v826 = vmul.f32 %v785, %v785
        %v827 = vmul.f32 %v786, %v786
        %v828 = vmul.f32 %v787, %v787
        %v829 = vmul.f32 %v788, %v788
        %v830 = vmul.f32 %v789, %v789
        %v831 = vmul.f32 %v790, %v790
        %v832 = vmul.f32 %v791, %v791
        %v833 = vmul.f32 %v792, %v792
        %v834 = vmul.f32 %v793, %v793
        %v835 = vmul.f32 %v794, %v794
        %v836 = vmul.f32 %v795, %v795
        %v837 = vmul.f32 %v796, %v796
        %v838 = vmul.f32 %v797, %v797
        %v839 = vmul.f32 %v798, %v798
        %v840 = vmul.f32 %v799, %v799
        %v841 = vmul.f32 %v800, %v800
        %v842 = vmul.f32 %v801, %v801
        %v843 = vmul.f32 %v802, %v802
        %v844 = vmul.f32 %v803, %v803
        %v845 = vmul.f32 %v804, %v804
        %v846 = vmul.f32 %v805, %v805
        %v847 = vmul.f32 %v806, %v806
        %v848 = vmul.f32 %v807, %v807
        %v849 = vmul.f32 %v808, %v808
        %v850 = vmul.f32 %v809, %v809
        %v851 = vmul.f32 %v810, %v810
        %v852 = vmul.f32 %v811, %v811
        %v853 = vmul.f32 %v812, %v812
        %v854 = vmul.f32 %v813, %v813
        %v855 = vmul.f32 %v814, %v814
        %v856 = vmul.f32 %v815, %v815
        %v857 = vmul.f32 %v816, %v816
        %v858 = vmul.f32 %v817, %v817
        %v859 = vmul.f32 %v818, %v818
        %v860 = vmul.f32 %v819, %v819
        %v861 = vmul.f32 %v820, %v820
        %v862 = vmul.f32 %v821, %v821
        %v863 = vmul.f32 %v822, %v822
        %v864 = vsub.f32 %v823, 1.0
        %v865 = vsub.f32 %v824, 1.0
        %v866 = vsub.f32 %v825, 1.0
        %v867 = vsub.f32 %v826, 1.0
        %v868 = vsub.f32 %v827, 1.0
        %v869 = vsub.f32 %v828, 1.0
        %v870 = vsub.f32 %v829, 1.0
        %v871 = vsub.f32 %v830, 1.0
        %v872 = vsub.f32 %v831, 1.0
        %v873 = vsub.f32 %v832, 1.0
        %v874 = vsub.f32 %v833, 1.0
        %v875 = vsub.f32 %v834, 1.0
        %v876 = vsub.f32 %v835, 1.0
        %v877 = vsub.f32 %v836, 1.0
        %v878 = vsub.f32 %v837, 1.0
        %v879 = vsub.f32 %v838, 1.0
        %v880 = vsub.f32 %v839, 1.0
        %v881 = vsub.f32 %v840, 1.0
        %v882 = vsub.f32 %v841, 1.0
        %v883 = vsub.f32 %v842, 1.0
        %v884 = vsub.f32 %v843, 1.0
        %v885 = vsub.f32 %v844, 1.0
        %v886 = vsub.f32 %v845, 1.0
        %v887 = vsub.f32 %v846, 1.0
        %v888 = vsub.f32 %v847, 1.0
        %v889 = vsub.f32 %v848, 1.0
        %v890 = vsub.f32 %v849, 1.0
        %v891 = vsub.f32 %v850, 1.0
        %v892 = vsub.f32 %v851, 1.0
        %v893 = vsub.f32 %v852, 1.0
        %v894 = vsub.f32 %v853, 1.0
        %v895 = vsub.f32 %v854, 1.0
        %v896 = vsub.f32 %v855, 1.0
        %v897 = vsub.f32 %v856, 1.0
        %v898 = vsub.f32 %v857, 1.0
        %v899 = vsub.f32 %v858, 1.0
        %v900 = vsub.f32 %v859, 1.0
        %v901 = vsub.f32 %v860, 1.0
        %v902 = vsub.f32 %v861, 1.0
        %v903 = vsub.f32 %v862, 1.0
        %v904 = vsub.f32 %v863, 1.0
        %v905 = vmul.f32 %v823, -0.5
        %v906 = vmul.f32 %v824, -0.5
        %v907 = vmul.f32 %v825, -0.5
        %v908 = vmul.f32 %v826, -0.5
        %v909 = vmul.f32 %v827, -0.5
        %v910 = vmul.f32 %v828, -0.5
        %v911 = vmul.f32 %v829, -0.5
        %v912 = vmul.f32 %v830, -0.5
        %v913 = vmul.f32 %v831, -0.5
        %v914 = vmul.f32 %v832, -0.5
        %v915 = vmul.f32 %v833, -0.5
        %v916 = vmul.f32 %v834, -0.5
        %v917 = vmul.f32 %v835, -0.5
        %v918 = vmul.f32 %v836, -0.5
        %v919 = vmul.f32 %v837, -0.5
        %v920 = vmul.f32 %v838, -0.5
        %v921 = vmul.f32 %v839, -0.5
        %v922 = vmul.f32 %v840, -0.5
        %v923 = vmul.f32 %v841, -0.5
        %v924 = vmul.f32 %v842, -0.5
        %v925 = vmul.f32 %v843, -0.5
        %v926 = vmul.f32 %v844, -0.5
        %v927 = vmul.f32 %v845, -0.5
        %v928 = vmul.f32 %v846, -0.5
        %v929 = vmul.f32 %v847, -0.5
        %v930 = vmul.f32 %v848, -0.5
        %v931 = vmul.f32 %v849, -0.5
        %v932 = vmul.f32 %v850, -0.5
        %v933 = vmul.f32 %v851, -0.5
        %v934 = vmul.f32 %v852, -0.5
        %v935 = vmul.f32 %v853, -0.5
        %v936 = vmul.f32 %v854, -0.5
        %v937 = vmul.f32 %v855, -0.5
        %v938 = vmul.f32 %v856, -0.5
        %v939 = vmul.f32 %v857, -0.5
        %v940 = vmul.f32 %v858, -0.5
        %v941 = vmul.f32 %v859, -0.5
        %v942 = vmul.f32 %v860, -0.5
        %v943 = vmul.f32 %v861, -0.5
        %v944 = vmul.f32 %v862, -0.5
        %v945 = vmul.f32 %v863, -0.5
        %v946 = vmul.f32 %v905, 1.442695
        %v947 = vpow.pop %v946
        %v948 = vmul.f32 %v906, 1.442695
        %v949 = vpow.pop %v948
        %v950 = vmul.f32 %v907, 1.442695
        %v951 = vpow.pop %v950
        %v952 = vmul.f32 %v908, 1.442695
        %v953 = vpow.pop %v952
        %v954 = vmul.f32 %v909, 1.442695
        %v955 = vpow.pop %v954
        %v956 = vmul.f32 %v910, 1.442695
        %v957 = vpow.pop %v956
        %v958 = vmul.f32 %v911, 1.442695
        %v959 = vpow.pop %v958
        %v960 = vmul.f32 %v912, 1.442695
        %v961 = vpow.pop %v960
        %v962 = vmul.f32 %v913, 1.442695
        %v963 = vpow.pop %v962
        %v964 = vmul.f32 %v914, 1.442695
        %v965 = vpow.pop %v964
        %v966 = vmul.f32 %v915, 1.442695
        %v967 = vpow.pop %v966
        %v968 = vmul.f32 %v916, 1.442695
        %v969 = vpow.pop %v968
        %v970 = vmul.f32 %v917, 1.442695
        %v971 = vpow.pop %v970
        %v972 = vmul.f32 %v918, 1.442695
        %v973 = vpow.pop %v972
        %v974 = vmul.f32 %v919, 1.442695
        %v975 = vpow.pop %v974
        %v976 = vmul.f32 %v920, 1.442695
        %v977 = vpow.pop %v976
        %v978 = vmul.f32 %v921, 1.442695
        %v979 = vpow.pop %v978
        %v980 = vmul.f32 %v922, 1.442695
        %v981 = vpow.pop %v980
        %v982 = vmul.f32 %v923, 1.442695
        %v983 = vpow.pop %v982
        %v984 = vmul.f32 %v924, 1.442695
        %v985 = vpow.pop %v984
        %v986 = vmul.f32 %v925, 1.442695
        %v987 = vpow.pop %v986
        %v988 = vmul.f32 %v926, 1.442695
        %v989 = vpow.pop %v988
        %v990 = vmul.f32 %v927, 1.442695
        %v991 = vpow.pop %v990
        %v992 = vmul.f32 %v928, 1.442695
        %v993 = vpow.pop %v992
        %v994 = vmul.f32 %v929, 1.442695
        %v995 = vpow.pop %v994
        %v996 = vmul.f32 %v930, 1.442695
        %v997 = vpow.pop %v996
        %v998 = vmul.f32 %v931, 1.442695
        %v999 = vpow.pop %v998
        %v1000 = vmul.f32 %v932, 1.442695
        %v1001 = vpow.pop %v1000
        %v1002 = vmul.f32 %v933, 1.442695
        %v1003 = vpow.pop %v1002
        %v1004 = vmul.f32 %v934, 1.442695
        %v1005 = vpow.pop %v1004
        %v1006 = vmul.f32 %v935, 1.442695
        %v1007 = vpow.pop %v1006
        %v1008 = vmul.f32 %v936, 1.442695
        %v1009 = vpow.pop %v1008
        %v1010 = vmul.f32 %v937, 1.442695
        %v1011 = vpow.pop %v1010
        %v1012 = vmul.f32 %v938, 1.442695
        %v1013 = vpow.pop %v1012
        %v1014 = vmul.f32 %v939, 1.442695
        %v1015 = vpow.pop %v1014
        %v1016 = vmul.f32 %v940, 1.442695
        %v1017 = vpow.pop %v1016
        %v1018 = vmul.f32 %v941, 1.442695
        %v1019 = vpow.pop %v1018
        %v1020 = vmul.f32 %v942, 1.442695
        %v1021 = vpow.pop %v1020
        %v1022 = vmul.f32 %v943, 1.442695
        %v1023 = vpow.pop %v1022
        %v1024 = vmul.f32 %v944, 1.442695
        %v1025 = vpow.pop %v1024
        %v1026 = vmul.f32 %v945, 1.442695
        %v1027 = vpow.pop %v1026
        %v1028 = vmul.f32 %v864, %v947
        %v1029 = vmul.f32 %v865, %v949
        %v1030 = vmul.f32 %v866, %v951
        %v1031 = vmul.f32 %v867, %v953
        %v1032 = vmul.f32 %v868, %v955
        %v1033 = vmul.f32 %v869, %v957
        %v1034 = vmul.f32 %v870, %v959
        %v1035 = vmul.f32 %v871, %v961
        %v1036 = vmul.f32 %v872, %v963
        %v1037 = vmul.f32 %v873, %v965
        %v1038 = vmul.f32 %v874, %v967
        %v1039 = vmul.f32 %v875, %v969
        %v1040 = vmul.f32 %v876, %v971
        %v1041 = vmul.f32 %v877, %v973
        %v1042 = vmul.f32 %v878, %v975
        %v1043 = vmul.f32 %v879, %v977
        %v1044 = vmul.f32 %v880, %v979
        %v1045 = vmul.f32 %v881, %v981
        %v1046 = vmul.f32 %v882, %v983
        %v1047 = vmul.f32 %v883, %v985
        %v1048 = vmul.f32 %v884, %v987
        %v1049 = vmul.f32 %v885, %v989
        %v1050 = vmul.f32 %v886, %v991
        %v1051 = vmul.f32 %v887, %v993
        %v1052 = vmul.f32 %v888, %v995
        %v1053 = vmul.f32 %v889, %v997
        %v1054 = vmul.f32 %v890, %v999
        %v1055 = vmul.f32 %v891, %v1001
        %v1056 = vmul.f32 %v892, %v1003
        %v1057 = vmul.f32 %v893, %v1005
        %v1058 = vmul.f32 %v894, %v1007
        %v1059 = vmul.f32 %v895, %v1009
        %v1060 = vmul.f32 %v896, %v1011
        %v1061 = vmul.f32 %v897, %v1013
        %v1062 = vmul.f32 %v898, %v1015
        %v1063 = vmul.f32 %v899, %v1017
        %v1064 = vmul.f32 %v900, %v1019
        %v1065 = vmul.f32 %v901, %v1021
        %v1066 = vmul.f32 %v902, %v1023
        %v1067 = vmul.f32 %v903, %v1025
        %v1068 = vmul.f32 %v904, %v1027
        %v1069 = vld [vmem:[#allocation9] sm:$0xff]
        %v1070 = vld [vmem:[#allocation9 + $0x8] sm:$0xff]
        %v1071 = vld [vmem:[#allocation9 + $0x10] sm:$0xff]
        %v1072 = vld [vmem:[#allocation9 + $0x18] sm:$0xff]
        %v1073 = vld [vmem:[#allocation9 + $0x20] sm:$0xff]
        %v1074 = vld [vmem:[#allocation9 + $0x28] sm:$0xff]
        %v1075 = vld [vmem:[#allocation9 + $0x30] sm:$0xff]
        %v1076 = vld [vmem:[#allocation9 + $0x38] sm:$0xff]
        %v1077 = vld [vmem:[#allocation9 + $0x40] sm:$0xff]
        %v1078 = vld [vmem:[#allocation9 + $0x48] sm:$0xff]
        %v1079 = vld [vmem:[#allocation9 + $0x50] sm:$0xff]
        %v1080 = vld [vmem:[#allocation9 + $0x58] sm:$0xff]
        %v1081 = vld [vmem:[#allocation9 + $0x60] sm:$0xff]
        %v1082 = vld [vmem:[#allocation9 + $0x68] sm:$0xff]
        %v1083 = vld [vmem:[#allocation9 + $0x70] sm:$0xff]
        %v1084 = vld [vmem:[#allocation9 + $0x78] sm:$0xff]
        %v1085 = vld [vmem:[#allocation9 + $0x80] sm:$0xff]
        %v1086 = vld [vmem:[#allocation9 + $0x88] sm:$0xff]
        %v1087 = vld [vmem:[#allocation9 + $0x90] sm:$0xff]
        %v1088 = vld [vmem:[#allocation9 + $0x98] sm:$0xff]
        %v1089 = vld [vmem:[#allocation9 + $0xa0] sm:$0xff]
        %v1090 = vld [vmem:[#allocation9 + $0xa8] sm:$0xff]
        %v1091 = vld [vmem:[#allocation9 + $0xb0] sm:$0xff]
        %v1092 = vld [vmem:[#allocation9 + $0xb8] sm:$0xff]
        %v1093 = vld [vmem:[#allocation9 + $0xc0] sm:$0xff]
        %v1094 = vld [vmem:[#allocation9 + $0xc8] sm:$0xff]
        %v1095 = vld [vmem:[#allocation9 + $0xd0] sm:$0xff]
        %v1096 = vld [vmem:[#allocation9 + $0xd8] sm:$0xff]
        %v1097 = vld [vmem:[#allocation9 + $0xe0] sm:$0xff]
        %v1098 = vld [vmem:[#allocation9 + $0xe8] sm:$0xff]
        %v1099 = vld [vmem:[#allocation9 + $0xf0] sm:$0xff]
        %v1100 = vld [vmem:[#allocation9 + $0xf8] sm:$0xff]
        %v1101 = vld [vmem:[#allocation9 + $0x100] sm:$0xff]
        %v1102 = vld [vmem:[#allocation9 + $0x108] sm:$0xff]
        %v1103 = vld [vmem:[#allocation9 + $0x110] sm:$0xff]
        %v1104 = vld [vmem:[#allocation9 + $0x118] sm:$0xff]
        %v1105 = vld [vmem:[#allocation9 + $0x120] sm:$0xff]
        %v1106 = vld [vmem:[#allocation9 + $0x128] sm:$0xff]
        %v1107 = vld [vmem:[#allocation9 + $0x130] sm:$0xff]
        %v1108 = vld [vmem:[#allocation9 + $0x138] sm:$0xff]
        %v1109 = vld [vmem:[#allocation9 + $0x140] sm:$0xf]
        %1111 = vset.pattern.permute.xlu0 0
        %1112 = vperm.xlu0 %1111, %v1069
        %v1113 = vpop.permute.xlu0 %1112
        %1116 = vset.pattern.permute.xlu0 0
        %1117 = vperm.xlu0 %1116, %v1070
        %v1118 = vpop.permute.xlu0 %1117
        %1121 = vset.pattern.permute.xlu0 0
        %1122 = vperm.xlu0 %1121, %v1071
        %v1123 = vpop.permute.xlu0 %1122
        %1126 = vset.pattern.permute.xlu0 0
        %1127 = vperm.xlu0 %1126, %v1072
        %v1128 = vpop.permute.xlu0 %1127
        %1131 = vset.pattern.permute.xlu0 0
        %1132 = vperm.xlu0 %1131, %v1073
        %v1133 = vpop.permute.xlu0 %1132
        %1136 = vset.pattern.permute.xlu0 0
        %1137 = vperm.xlu0 %1136, %v1074
        %v1138 = vpop.permute.xlu0 %1137
        %1141 = vset.pattern.permute.xlu0 0
        %1142 = vperm.xlu0 %1141, %v1075
        %v1143 = vpop.permute.xlu0 %1142
        %1146 = vset.pattern.permute.xlu0 0
        %1147 = vperm.xlu0 %1146, %v1076
        %v1148 = vpop.permute.xlu0 %1147
        %1151 = vset.pattern.permute.xlu0 0
        %1152 = vperm.xlu0 %1151, %v1077
        %v1153 = vpop.permute.xlu0 %1152
        %1156 = vset.pattern.permute.xlu0 0
        %1157 = vperm.xlu0 %1156, %v1078
        %v1158 = vpop.permute.xlu0 %1157
        %1161 = vset.pattern.permute.xlu0 0
        %1162 = vperm.xlu0 %1161, %v1079
        %v1163 = vpop.permute.xlu0 %1162
        %1166 = vset.pattern.permute.xlu0 0
        %1167 = vperm.xlu0 %1166, %v1080
        %v1168 = vpop.permute.xlu0 %1167
        %1171 = vset.pattern.permute.xlu0 0
        %1172 = vperm.xlu0 %1171, %v1081
        %v1173 = vpop.permute.xlu0 %1172
        %1176 = vset.pattern.permute.xlu0 0
        %1177 = vperm.xlu0 %1176, %v1082
        %v1178 = vpop.permute.xlu0 %1177
        %1181 = vset.pattern.permute.xlu0 0
        %1182 = vperm.xlu0 %1181, %v1083
        %v1183 = vpop.permute.xlu0 %1182
        %1186 = vset.pattern.permute.xlu0 0
        %1187 = vperm.xlu0 %1186, %v1084
        %v1188 = vpop.permute.xlu0 %1187
        %1191 = vset.pattern.permute.xlu0 0
        %1192 = vperm.xlu0 %1191, %v1085
        %v1193 = vpop.permute.xlu0 %1192
        %1196 = vset.pattern.permute.xlu0 0
        %1197 = vperm.xlu0 %1196, %v1086
        %v1198 = vpop.permute.xlu0 %1197
        %1201 = vset.pattern.permute.xlu0 0
        %1202 = vperm.xlu0 %1201, %v1087
        %v1203 = vpop.permute.xlu0 %1202
        %1206 = vset.pattern.permute.xlu0 0
        %1207 = vperm.xlu0 %1206, %v1088
        %v1208 = vpop.permute.xlu0 %1207
        %1211 = vset.pattern.permute.xlu0 0
        %1212 = vperm.xlu0 %1211, %v1089
        %v1213 = vpop.permute.xlu0 %1212
        %1216 = vset.pattern.permute.xlu0 0
        %1217 = vperm.xlu0 %1216, %v1090
        %v1218 = vpop.permute.xlu0 %1217
        %1221 = vset.pattern.permute.xlu0 0
        %1222 = vperm.xlu0 %1221, %v1091
        %v1223 = vpop.permute.xlu0 %1222
        %1226 = vset.pattern.permute.xlu0 0
        %1227 = vperm.xlu0 %1226, %v1092
        %v1228 = vpop.permute.xlu0 %1227
        %1231 = vset.pattern.permute.xlu0 0
        %1232 = vperm.xlu0 %1231, %v1093
        %v1233 = vpop.permute.xlu0 %1232
        %1236 = vset.pattern.permute.xlu0 0
        %1237 = vperm.xlu0 %1236, %v1094
        %v1238 = vpop.permute.xlu0 %1237
        %1241 = vset.pattern.permute.xlu0 0
        %1242 = vperm.xlu0 %1241, %v1095
        %v1243 = vpop.permute.xlu0 %1242
        %1246 = vset.pattern.permute.xlu0 0
        %1247 = vperm.xlu0 %1246, %v1096
        %v1248 = vpop.permute.xlu0 %1247
        %1251 = vset.pattern.permute.xlu0 0
        %1252 = vperm.xlu0 %1251, %v1097
        %v1253 = vpop.permute.xlu0 %1252
        %1256 = vset.pattern.permute.xlu0 0
        %1257 = vperm.xlu0 %1256, %v1098
        %v1258 = vpop.permute.xlu0 %1257
        %1261 = vset.pattern.permute.xlu0 0
        %1262 = vperm.xlu0 %1261, %v1099
        %v1263 = vpop.permute.xlu0 %1262
        %1266 = vset.pattern.permute.xlu0 0
        %1267 = vperm.xlu0 %1266, %v1100
        %v1268 = vpop.permute.xlu0 %1267
        %1271 = vset.pattern.permute.xlu0 0
        %1272 = vperm.xlu0 %1271, %v1101
        %v1273 = vpop.permute.xlu0 %1272
        %1276 = vset.pattern.permute.xlu0 0
        %1277 = vperm.xlu0 %1276, %v1102
        %v1278 = vpop.permute.xlu0 %1277
        %1281 = vset.pattern.permute.xlu0 0
        %1282 = vperm.xlu0 %1281, %v1103
        %v1283 = vpop.permute.xlu0 %1282
        %1286 = vset.pattern.permute.xlu0 0
        %1287 = vperm.xlu0 %1286, %v1104
        %v1288 = vpop.permute.xlu0 %1287
        %1291 = vset.pattern.permute.xlu0 0
        %1292 = vperm.xlu0 %1291, %v1105
        %v1293 = vpop.permute.xlu0 %1292
        %1296 = vset.pattern.permute.xlu0 0
        %1297 = vperm.xlu0 %1296, %v1106
        %v1298 = vpop.permute.xlu0 %1297
        %1301 = vset.pattern.permute.xlu0 0
        %1302 = vperm.xlu0 %1301, %v1107
        %v1303 = vpop.permute.xlu0 %1302
        %1306 = vset.pattern.permute.xlu0 0
        %1307 = vperm.xlu0 %1306, %v1108
        %v1308 = vpop.permute.xlu0 %1307
        %1311 = vset.pattern.permute.xlu0 0
        %1312 = vperm.xlu0 %1311, %v1109
        %v1313 = vpop.permute.xlu0 %1312
        %v1315 = vmul.f32 %v1028, %v1113
        %v1316 = vmul.f32 %v1029, %v1118
        %v1317 = vmul.f32 %v1030, %v1123
        %v1318 = vmul.f32 %v1031, %v1128
        %v1319 = vmul.f32 %v1032, %v1133
        %v1320 = vmul.f32 %v1033, %v1138
        %v1321 = vmul.f32 %v1034, %v1143
        %v1322 = vmul.f32 %v1035, %v1148
        %v1323 = vmul.f32 %v1036, %v1153
        %v1324 = vmul.f32 %v1037, %v1158
        %v1325 = vmul.f32 %v1038, %v1163
        %v1326 = vmul.f32 %v1039, %v1168
        %v1327 = vmul.f32 %v1040, %v1173
        %v1328 = vmul.f32 %v1041, %v1178
        %v1329 = vmul.f32 %v1042, %v1183
        %v1330 = vmul.f32 %v1043, %v1188
        %v1331 = vmul.f32 %v1044, %v1193
        %v1332 = vmul.f32 %v1045, %v1198
        %v1333 = vmul.f32 %v1046, %v1203
        %v1334 = vmul.f32 %v1047, %v1208
        %v1335 = vmul.f32 %v1048, %v1213
        %v1336 = vmul.f32 %v1049, %v1218
        %v1337 = vmul.f32 %v1050, %v1223
        %v1338 = vmul.f32 %v1051, %v1228
        %v1339 = vmul.f32 %v1052, %v1233
        %v1340 = vmul.f32 %v1053, %v1238
        %v1341 = vmul.f32 %v1054, %v1243
        %v1342 = vmul.f32 %v1055, %v1248
        %v1343 = vmul.f32 %v1056, %v1253
        %v1344 = vmul.f32 %v1057, %v1258
        %v1345 = vmul.f32 %v1058, %v1263
        %v1346 = vmul.f32 %v1059, %v1268
        %v1347 = vmul.f32 %v1060, %v1273
        %v1348 = vmul.f32 %v1061, %v1278
        %v1349 = vmul.f32 %v1062, %v1283
        %v1350 = vmul.f32 %v1063, %v1288
        %v1351 = vmul.f32 %v1064, %v1293
        %v1352 = vmul.f32 %v1065, %v1298
        %v1353 = vmul.f32 %v1066, %v1303
        %v1354 = vmul.f32 %v1067, %v1308
        %v1355 = vmul.f32 %v1068, %v1313
        %v1356 = vld [vmem:[#allocation11] sm:$0xff]
        %vm1357 = vcmask 261120
        %v1359 = vsel %vm1357, %v1356, 0
        %v1362 = vsel %vm1357, %v1315, 0
        %v1365 = vsel %vm1357, %v1316, 0
        %v1368 = vsel %vm1357, %v1317, 0
        %v1371 = vsel %vm1357, %v1318, 0
        %v1374 = vsel %vm1357, %v1319, 0
        %v1377 = vsel %vm1357, %v1320, 0
        %v1380 = vsel %vm1357, %v1321, 0
        %v1383 = vsel %vm1357, %v1322, 0
        %v1386 = vsel %vm1357, %v1323, 0
        %v1389 = vsel %vm1357, %v1324, 0
        %v1392 = vsel %vm1357, %v1325, 0
        %v1395 = vsel %vm1357, %v1326, 0
        %v1398 = vsel %vm1357, %v1327, 0
        %v1401 = vsel %vm1357, %v1328, 0
        %v1404 = vsel %vm1357, %v1329, 0
        %v1407 = vsel %vm1357, %v1330, 0
        %v1410 = vsel %vm1357, %v1331, 0
        %v1413 = vsel %vm1357, %v1332, 0
        %v1416 = vsel %vm1357, %v1333, 0
        %v1419 = vsel %vm1357, %v1334, 0
        %v1422 = vsel %vm1357, %v1335, 0
        %v1425 = vsel %vm1357, %v1336, 0
        %v1428 = vsel %vm1357, %v1337, 0
        %v1431 = vsel %vm1357, %v1338, 0
        %v1434 = vsel %vm1357, %v1339, 0
        %v1437 = vsel %vm1357, %v1340, 0
        %v1440 = vsel %vm1357, %v1341, 0
        %v1443 = vsel %vm1357, %v1342, 0
        %v1446 = vsel %vm1357, %v1343, 0
        %v1449 = vsel %vm1357, %v1344, 0
        %v1452 = vsel %vm1357, %v1345, 0
        %v1455 = vsel %vm1357, %v1346, 0
        %v1458 = vsel %vm1357, %v1347, 0
        %v1461 = vsel %vm1357, %v1348, 0
        %v1464 = vsel %vm1357, %v1349, 0
        %v1467 = vsel %vm1357, %v1350, 0
        %v1470 = vsel %vm1357, %v1351, 0
        %v1473 = vsel %vm1357, %v1352, 0
        %v1476 = vsel %vm1357, %v1353, 0
        %v1479 = vsel %vm1357, %v1354, 0
        %v1482 = vsel %vm1357, %v1355, 0
        %1484 = vmatprep.subr.mxu0 0.0
        %1485 = vmatpush1.xpose.msra.mxu0 %v1362
        %1486 = vmatprep.subr.mxu0 0.0
        %1487 = vmatpush1.xpose.msra.mxu0 %v1365
        %1488 = vmatprep.subr.mxu0 0.0
        %1489 = vmatpush1.xpose.msra.mxu0 %v1368
        %1490 = vmatprep.subr.mxu0 0.0
        %1491 = vmatpush1.xpose.msra.mxu0 %v1371
        %1492 = vmatprep.subr.mxu0 0.0
        %1493 = vmatpush1.xpose.msra.mxu0 %v1374
        %1494 = vmatprep.subr.mxu0 0.0
        %1495 = vmatpush1.xpose.msra.mxu0 %v1377
        %1496 = vmatprep.subr.mxu0 0.0
        %1497 = vmatpush1.xpose.msra.mxu0 %v1380
        %1498 = vmatprep.subr.mxu0 0.0
        %1499 = vmatpush1.xpose.msra.mxu0 %v1383
        %1500 = vmatprep.subr.mxu0 0.0
        %1501 = vmatpush1.xpose.msra.mxu0 %v1386
        %1502 = vmatprep.subr.mxu0 0.0
        %1503 = vmatpush1.xpose.msra.mxu0 %v1389
        %1504 = vmatprep.subr.mxu0 0.0
        %1505 = vmatpush1.xpose.msra.mxu0 %v1392
        %1506 = vmatprep.subr.mxu0 0.0
        %1507 = vmatpush1.xpose.msra.mxu0 %v1395
        %1508 = vmatprep.subr.mxu0 0.0
        %1509 = vmatpush1.xpose.msra.mxu0 %v1398
        %1510 = vmatprep.subr.mxu0 0.0
        %1511 = vmatpush1.xpose.msra.mxu0 %v1401
        %1512 = vmatprep.subr.mxu0 0.0
        %1513 = vmatpush1.xpose.msra.mxu0 %v1404
        %1514 = vmatprep.subr.mxu0 0.0
        %1515 = vmatpush1.xpose.msra.mxu0 %v1407
        %1516 = vmatprep.subr.mxu0 0.0
        %1517 = vmatpush1.xpose.msra.mxu0 %v1410
        %1518 = vmatprep.subr.mxu0 0.0
        %1519 = vmatpush1.xpose.msra.mxu0 %v1413
        %1520 = vmatprep.subr.mxu0 0.0
        %1521 = vmatpush1.xpose.msra.mxu0 %v1416
        %1522 = vmatprep.subr.mxu0 0.0
        %1523 = vmatpush1.xpose.msra.mxu0 %v1419
        %1524 = vmatprep.subr.mxu0 0.0
        %1525 = vmatpush1.xpose.msra.mxu0 %v1422
        %1526 = vmatprep.subr.mxu0 0.0
        %1527 = vmatpush1.xpose.msra.mxu0 %v1425
        %1528 = vmatprep.subr.mxu0 0.0
        %1529 = vmatpush1.xpose.msra.mxu0 %v1428
        %1530 = vmatprep.subr.mxu0 0.0
        %1531 = vmatpush1.xpose.msra.mxu0 %v1431
        %1532 = vmatprep.subr.mxu0 0.0
        %1533 = vmatpush1.xpose.msra.mxu0 %v1434
        %1534 = vmatprep.subr.mxu0 0.0
        %1535 = vmatpush1.xpose.msra.mxu0 %v1437
        %1536 = vmatprep.subr.mxu0 0.0
        %1537 = vmatpush1.xpose.msra.mxu0 %v1440
        %1538 = vmatprep.subr.mxu0 0.0
        %1539 = vmatpush1.xpose.msra.mxu0 %v1443
        %1540 = vmatprep.subr.mxu0 0.0
        %1541 = vmatpush1.xpose.msra.mxu0 %v1446
        %1542 = vmatprep.subr.mxu0 0.0
        %1543 = vmatpush1.xpose.msra.mxu0 %v1449
        %1544 = vmatprep.subr.mxu0 0.0
        %1545 = vmatpush1.xpose.msra.mxu0 %v1452
        %1546 = vmatprep.subr.mxu0 0.0
        %1547 = vmatpush1.xpose.msra.mxu0 %v1455
        %1548 = vmatprep.mubr.f32.mxu0 0.0
        %1549 = vmatmul.mubr.f32.gmra.mrb[0].mxu0 %v1359
        %v1550 = vpop.f32.mrb[0].mxu0
        %v1551 = vadd.f32 0.0, %v1550
        %v1552 = vpop.f32.mrb[0].mxu0
        %v1553 = vadd.f32 0.0, %v1552
        %1554 = vdwg.mxu0
        %1555 = vmatprep.subr.mxu0 0.0
        %1556 = vmatpush1.xpose.msra.mxu0 %v1458
        %1557 = vmatprep.subr.mxu0 0.0
        %1558 = vmatpush1.xpose.msra.mxu0 %v1461
        %1559 = vmatprep.subr.mxu0 0.0
        %1560 = vmatpush1.xpose.msra.mxu0 %v1464
        %1561 = vmatprep.subr.mxu0 0.0
        %1562 = vmatpush1.xpose.msra.mxu0 %v1467
        %1563 = vmatprep.subr.mxu0 0.0
        %1564 = vmatpush1.xpose.msra.mxu0 %v1470
        %1565 = vmatprep.subr.mxu0 0.0
        %1566 = vmatpush1.xpose.msra.mxu0 %v1473
        %1567 = vmatprep.subr.mxu0 0.0
        %1568 = vmatpush1.xpose.msra.mxu0 %v1476
        %1569 = vmatprep.subr.mxu0 0.0
        %1570 = vmatpush1.xpose.msra.mxu0 %v1479
        %1571 = vmatprep.subr.mxu0 0.0
        %1572 = vmatpush1.xpose.msra.mxu0 %v1482
        %1573 = vmatprep.subr.mxu0 0.0
        %1574 = vmatpush1.xpose.msra.mxu0 0.0
        %1575 = vmatprep.subr.mxu0 0.0
        %1576 = vmatpush1.xpose.msra.mxu0 0.0
        %1577 = vmatprep.subr.mxu0 0.0
        %1578 = vmatpush1.xpose.msra.mxu0 0.0
        %1579 = vmatprep.subr.mxu0 0.0
        %1580 = vmatpush1.xpose.msra.mxu0 0.0
        %1581 = vmatprep.subr.mxu0 0.0
        %1582 = vmatpush1.xpose.msra.mxu0 0.0
        %1583 = vmatprep.subr.mxu0 0.0
        %1584 = vmatpush1.xpose.msra.mxu0 0.0
        %1585 = vmatprep.subr.mxu0 0.0
        %1586 = vmatpush1.xpose.msra.mxu0 0.0
        %1587 = vmatprep.subr.mxu0 0.0
        %1588 = vmatpush1.xpose.msra.mxu0 0.0
        %1589 = vmatprep.subr.mxu0 0.0
        %1590 = vmatpush1.xpose.msra.mxu0 0.0
        %1591 = vmatprep.subr.mxu0 0.0
        %1592 = vmatpush1.xpose.msra.mxu0 0.0
        %1593 = vmatprep.subr.mxu0 0.0
        %1594 = vmatpush1.xpose.msra.mxu0 0.0
        %1595 = vmatprep.subr.mxu0 0.0
        %1596 = vmatpush1.xpose.msra.mxu0 0.0
        %1597 = vmatprep.subr.mxu0 0.0
        %1598 = vmatpush1.xpose.msra.mxu0 0.0
        %1599 = vmatprep.subr.mxu0 0.0
        %1600 = vmatpush1.xpose.msra.mxu0 0.0
        %1601 = vmatprep.subr.mxu0 0.0
        %1602 = vmatpush1.xpose.msra.mxu0 0.0
        %1603 = vmatprep.subr.mxu0 0.0
        %1604 = vmatpush1.xpose.msra.mxu0 0.0
        %1605 = vmatprep.subr.mxu0 0.0
        %1606 = vmatpush1.xpose.msra.mxu0 0.0
        %1607 = vmatprep.subr.mxu0 0.0
        %1608 = vmatpush1.xpose.msra.mxu0 0.0
        %1609 = vmatprep.subr.mxu0 0.0
        %1610 = vmatpush1.xpose.msra.mxu0 0.0
        %1611 = vmatprep.subr.mxu0 0.0
        %1612 = vmatpush1.xpose.msra.mxu0 0.0
        %1613 = vmatprep.subr.mxu0 0.0
        %1614 = vmatpush1.xpose.msra.mxu0 0.0
        %1615 = vmatprep.subr.mxu0 0.0
        %1616 = vmatpush1.xpose.msra.mxu0 0.0
        %1617 = vmatprep.subr.mxu0 0.0
        %1618 = vmatpush1.xpose.msra.mxu0 0.0
        %1619 = vmatprep.mubr.f32.mxu0 0.0
        %1620 = vmatmul.mubr.f32.gmra.mrb[0].mxu0 %v1359
        %v1621 = vpop.f32.mrb[0].mxu0
        %v1622 = vadd.f32 0.0, %v1621
        %v1623 = vpop.f32.mrb[0].mxu0
        %1624 = vdwg.mxu0
        %v1625 = vld [vmem:[#allocation2] sm:$0xff]
        %v1626 = vld [vmem:[#allocation2 + $0x8] sm:$0xff]
        %v1627 = vld [vmem:[#allocation2 + $0x10] sm:$0xff]
        %v1628 = vadd.f32 %v1625, %v1551
        %v1629 = vadd.f32 %v1626, %v1553
        %v1630 = vadd.f32 %v1627, %v1622
        %1631 = vst [vmem:[#allocation2] sm:$0xff] %v1628
        %1632 = vst [vmem:[#allocation2 + $0x8] sm:$0xff] %v1629
        %vm1633 = vcmask 244736
        %1634 = vst.msk [vmem:[#allocation2 + $0x10] sm:$0xff] %vm1633, %v1630
        %s1635 = scalar_lea.vmem [#allocation11], 8
        %v1636 = vld [vmem:[%s1635] sm:$0xff]
        %v1638 = vsel %vm1357, %v1636, 0
        %1640 = vmatprep.subr.mxu0 0.0
        %1641 = vmatpush1.xpose.msra.mxu0 %v1362
        %1642 = vmatprep.subr.mxu0 0.0
        %1643 = vmatpush1.xpose.msra.mxu0 %v1365
        %1644 = vmatprep.subr.mxu0 0.0
        %1645 = vmatpush1.xpose.msra.mxu0 %v1368
        %1646 = vmatprep.subr.mxu0 0.0
        %1647 = vmatpush1.xpose.msra.mxu0 %v1371
        %1648 = vmatprep.subr.mxu0 0.0
        %1649 = vmatpush1.xpose.msra.mxu0 %v1374
        %1650 = vmatprep.subr.mxu0 0.0
        %1651 = vmatpush1.xpose.msra.mxu0 %v1377
        %1652 = vmatprep.subr.mxu0 0.0
        %1653 = vmatpush1.xpose.msra.mxu0 %v1380
        %1654 = vmatprep.subr.mxu0 0.0
        %1655 = vmatpush1.xpose.msra.mxu0 %v1383
        %1656 = vmatprep.subr.mxu0 0.0
        %1657 = vmatpush1.xpose.msra.mxu0 %v1386
        %1658 = vmatprep.subr.mxu0 0.0
        %1659 = vmatpush1.xpose.msra.mxu0 %v1389
        %1660 = vmatprep.subr.mxu0 0.0
        %1661 = vmatpush1.xpose.msra.mxu0 %v1392
        %1662 = vmatprep.subr.mxu0 0.0
        %1663 = vmatpush1.xpose.msra.mxu0 %v1395
        %1664 = vmatprep.subr.mxu0 0.0
        %1665 = vmatpush1.xpose.msra.mxu0 %v1398
        %1666 = vmatprep.subr.mxu0 0.0
        %1667 = vmatpush1.xpose.msra.mxu0 %v1401
        %1668 = vmatprep.subr.mxu0 0.0
        %1669 = vmatpush1.xpose.msra.mxu0 %v1404
        %1670 = vmatprep.subr.mxu0 0.0
        %1671 = vmatpush1.xpose.msra.mxu0 %v1407
        %1672 = vmatprep.subr.mxu0 0.0
        %1673 = vmatpush1.xpose.msra.mxu0 %v1410
        %1674 = vmatprep.subr.mxu0 0.0
        %1675 = vmatpush1.xpose.msra.mxu0 %v1413
        %1676 = vmatprep.subr.mxu0 0.0
        %1677 = vmatpush1.xpose.msra.mxu0 %v1416
        %1678 = vmatprep.subr.mxu0 0.0
        %1679 = vmatpush1.xpose.msra.mxu0 %v1419
        %1680 = vmatprep.subr.mxu0 0.0
        %1681 = vmatpush1.xpose.msra.mxu0 %v1422
        %1682 = vmatprep.subr.mxu0 0.0
        %1683 = vmatpush1.xpose.msra.mxu0 %v1425
        %1684 = vmatprep.subr.mxu0 0.0
        %1685 = vmatpush1.xpose.msra.mxu0 %v1428
        %1686 = vmatprep.subr.mxu0 0.0
        %1687 = vmatpush1.xpose.msra.mxu0 %v1431
        %1688 = vmatprep.subr.mxu0 0.0
        %1689 = vmatpush1.xpose.msra.mxu0 %v1434
        %1690 = vmatprep.subr.mxu0 0.0
        %1691 = vmatpush1.xpose.msra.mxu0 %v1437
        %1692 = vmatprep.subr.mxu0 0.0
        %1693 = vmatpush1.xpose.msra.mxu0 %v1440
        %1694 = vmatprep.subr.mxu0 0.0
        %1695 = vmatpush1.xpose.msra.mxu0 %v1443
        %1696 = vmatprep.subr.mxu0 0.0
        %1697 = vmatpush1.xpose.msra.mxu0 %v1446
        %1698 = vmatprep.subr.mxu0 0.0
        %1699 = vmatpush1.xpose.msra.mxu0 %v1449
        %1700 = vmatprep.subr.mxu0 0.0
        %1701 = vmatpush1.xpose.msra.mxu0 %v1452
        %1702 = vmatprep.subr.mxu0 0.0
        %1703 = vmatpush1.xpose.msra.mxu0 %v1455
        %1704 = vmatprep.mubr.f32.mxu0 0.0
        %1705 = vmatmul.mubr.f32.gmra.mrb[0].mxu0 %v1638
        %v1706 = vpop.f32.mrb[0].mxu0
        %v1707 = vadd.f32 0.0, %v1706
        %v1708 = vpop.f32.mrb[0].mxu0
        %v1709 = vadd.f32 0.0, %v1708
        %1710 = vdwg.mxu0
        %1711 = vmatprep.subr.mxu0 0.0
        %1712 = vmatpush1.xpose.msra.mxu0 %v1458
        %1713 = vmatprep.subr.mxu0 0.0
        %1714 = vmatpush1.xpose.msra.mxu0 %v1461
        %1715 = vmatprep.subr.mxu0 0.0
        %1716 = vmatpush1.xpose.msra.mxu0 %v1464
        %1717 = vmatprep.subr.mxu0 0.0
        %1718 = vmatpush1.xpose.msra.mxu0 %v1467
        %1719 = vmatprep.subr.mxu0 0.0
        %1720 = vmatpush1.xpose.msra.mxu0 %v1470
        %1721 = vmatprep.subr.mxu0 0.0
        %1722 = vmatpush1.xpose.msra.mxu0 %v1473
        %1723 = vmatprep.subr.mxu0 0.0
        %1724 = vmatpush1.xpose.msra.mxu0 %v1476
        %1725 = vmatprep.subr.mxu0 0.0
        %1726 = vmatpush1.xpose.msra.mxu0 %v1479
        %1727 = vmatprep.subr.mxu0 0.0
        %1728 = vmatpush1.xpose.msra.mxu0 %v1482
        %1729 = vmatprep.subr.mxu0 0.0
        %1730 = vmatpush1.xpose.msra.mxu0 0.0
        %1731 = vmatprep.subr.mxu0 0.0
        %1732 = vmatpush1.xpose.msra.mxu0 0.0
        %1733 = vmatprep.subr.mxu0 0.0
        %1734 = vmatpush1.xpose.msra.mxu0 0.0
        %1735 = vmatprep.subr.mxu0 0.0
        %1736 = vmatpush1.xpose.msra.mxu0 0.0
        %1737 = vmatprep.subr.mxu0 0.0
        %1738 = vmatpush1.xpose.msra.mxu0 0.0
        %1739 = vmatprep.subr.mxu0 0.0
        %1740 = vmatpush1.xpose.msra.mxu0 0.0
        %1741 = vmatprep.subr.mxu0 0.0
        %1742 = vmatpush1.xpose.msra.mxu0 0.0
        %1743 = vmatprep.subr.mxu0 0.0
        %1744 = vmatpush1.xpose.msra.mxu0 0.0
        %1745 = vmatprep.subr.mxu0 0.0
        %1746 = vmatpush1.xpose.msra.mxu0 0.0
        %1747 = vmatprep.subr.mxu0 0.0
        %1748 = vmatpush1.xpose.msra.mxu0 0.0
        %1749 = vmatprep.subr.mxu0 0.0
        %1750 = vmatpush1.xpose.msra.mxu0 0.0
        %1751 = vmatprep.subr.mxu0 0.0
        %1752 = vmatpush1.xpose.msra.mxu0 0.0
        %1753 = vmatprep.subr.mxu0 0.0
        %1754 = vmatpush1.xpose.msra.mxu0 0.0
        %1755 = vmatprep.subr.mxu0 0.0
        %1756 = vmatpush1.xpose.msra.mxu0 0.0
        %1757 = vmatprep.subr.mxu0 0.0
        %1758 = vmatpush1.xpose.msra.mxu0 0.0
        %1759 = vmatprep.subr.mxu0 0.0
        %1760 = vmatpush1.xpose.msra.mxu0 0.0
        %1761 = vmatprep.subr.mxu0 0.0
        %1762 = vmatpush1.xpose.msra.mxu0 0.0
        %1763 = vmatprep.subr.mxu0 0.0
        %1764 = vmatpush1.xpose.msra.mxu0 0.0
        %1765 = vmatprep.subr.mxu0 0.0
        %1766 = vmatpush1.xpose.msra.mxu0 0.0
        %1767 = vmatprep.subr.mxu0 0.0
        %1768 = vmatpush1.xpose.msra.mxu0 0.0
        %1769 = vmatprep.subr.mxu0 0.0
        %1770 = vmatpush1.xpose.msra.mxu0 0.0
        %1771 = vmatprep.subr.mxu0 0.0
        %1772 = vmatpush1.xpose.msra.mxu0 0.0
        %1773 = vmatprep.subr.mxu0 0.0
        %1774 = vmatpush1.xpose.msra.mxu0 0.0
        %1775 = vmatprep.mubr.f32.mxu0 0.0
        %1776 = vmatmul.mubr.f32.gmra.mrb[0].mxu0 %v1638
        %v1777 = vpop.f32.mrb[0].mxu0
        %v1778 = vadd.f32 0.0, %v1777
        %v1779 = vpop.f32.mrb[0].mxu0
        %1780 = vdwg.mxu0
        %v1781 = vld [vmem:[#allocation2] sm:$0xff]
        %v1782 = vld [vmem:[#allocation2 + $0x8] sm:$0xff]
        %v1783 = vld [vmem:[#allocation2 + $0x10] sm:$0xff]
        %1787 = vrot.lane.b32.xlu0 %v1707, 127
        %v1788 = vpop.permute.xlu0 %1787
        %1789 = vrot.lane.b32.xlu0 %v1709, 127
        %v1790 = vpop.permute.xlu0 %1789
        %1791 = vrot.lane.b32.xlu0 %v1778, 127
        %v1792 = vpop.permute.xlu0 %1791
        %vm1793 = vcmask 1039360
        %v1794 = vsel %vm1793, %v1788, %v1790
        %v1795 = vsel %vm1793, %v1790, %v1792
        %v1799 = vadd.f32 %v1781, %v1794
        %v1800 = vadd.f32 %v1782, %v1795
        %v1801 = vadd.f32 %v1783, %v1792
        %1802 = vst [vmem:[#allocation2] sm:$0xff] %v1799
        %1803 = vst [vmem:[#allocation2 + $0x8] sm:$0xff] %v1800
        %1804 = vst.msk [vmem:[#allocation2 + $0x10] sm:$0xff] %vm1633, %v1801
        %s1805 = scalar_lea.vmem [#allocation11], 16
        %v1806 = vld [vmem:[%s1805] sm:$0xff]
        %v1808 = vsel %vm1357, %v1806, 0
        %1810 = vmatprep.subr.mxu0 0.0
        %1811 = vmatpush1.xpose.msra.mxu0 %v1362
        %1812 = vmatprep.subr.mxu0 0.0
        %1813 = vmatpush1.xpose.msra.mxu0 %v1365
        %1814 = vmatprep.subr.mxu0 0.0
        %1815 = vmatpush1.xpose.msra.mxu0 %v1368
        %1816 = vmatprep.subr.mxu0 0.0
        %1817 = vmatpush1.xpose.msra.mxu0 %v1371
        %1818 = vmatprep.subr.mxu0 0.0
        %1819 = vmatpush1.xpose.msra.mxu0 %v1374
        %1820 = vmatprep.subr.mxu0 0.0
        %1821 = vmatpush1.xpose.msra.mxu0 %v1377
        %1822 = vmatprep.subr.mxu0 0.0
        %1823 = vmatpush1.xpose.msra.mxu0 %v1380
        %1824 = vmatprep.subr.mxu0 0.0
        %1825 = vmatpush1.xpose.msra.mxu0 %v1383
        %1826 = vmatprep.subr.mxu0 0.0
        %1827 = vmatpush1.xpose.msra.mxu0 %v1386
        %1828 = vmatprep.subr.mxu0 0.0
        %1829 = vmatpush1.xpose.msra.mxu0 %v1389
        %1830 = vmatprep.subr.mxu0 0.0
        %1831 = vmatpush1.xpose.msra.mxu0 %v1392
        %1832 = vmatprep.subr.mxu0 0.0
        %1833 = vmatpush1.xpose.msra.mxu0 %v1395
        %1834 = vmatprep.subr.mxu0 0.0
        %1835 = vmatpush1.xpose.msra.mxu0 %v1398
        %1836 = vmatprep.subr.mxu0 0.0
        %1837 = vmatpush1.xpose.msra.mxu0 %v1401
        %1838 = vmatprep.subr.mxu0 0.0
        %1839 = vmatpush1.xpose.msra.mxu0 %v1404
        %1840 = vmatprep.subr.mxu0 0.0
        %1841 = vmatpush1.xpose.msra.mxu0 %v1407
        %1842 = vmatprep.subr.mxu0 0.0
        %1843 = vmatpush1.xpose.msra.mxu0 %v1410
        %1844 = vmatprep.subr.mxu0 0.0
        %1845 = vmatpush1.xpose.msra.mxu0 %v1413
        %1846 = vmatprep.subr.mxu0 0.0
        %1847 = vmatpush1.xpose.msra.mxu0 %v1416
        %1848 = vmatprep.subr.mxu0 0.0
        %1849 = vmatpush1.xpose.msra.mxu0 %v1419
        %1850 = vmatprep.subr.mxu0 0.0
        %1851 = vmatpush1.xpose.msra.mxu0 %v1422
        %1852 = vmatprep.subr.mxu0 0.0
        %1853 = vmatpush1.xpose.msra.mxu0 %v1425
        %1854 = vmatprep.subr.mxu0 0.0
        %1855 = vmatpush1.xpose.msra.mxu0 %v1428
        %1856 = vmatprep.subr.mxu0 0.0
        %1857 = vmatpush1.xpose.msra.mxu0 %v1431
        %1858 = vmatprep.subr.mxu0 0.0
        %1859 = vmatpush1.xpose.msra.mxu0 %v1434
        %1860 = vmatprep.subr.mxu0 0.0
        %1861 = vmatpush1.xpose.msra.mxu0 %v1437
        %1862 = vmatprep.subr.mxu0 0.0
        %1863 = vmatpush1.xpose.msra.mxu0 %v1440
        %1864 = vmatprep.subr.mxu0 0.0
        %1865 = vmatpush1.xpose.msra.mxu0 %v1443
        %1866 = vmatprep.subr.mxu0 0.0
        %1867 = vmatpush1.xpose.msra.mxu0 %v1446
        %1868 = vmatprep.subr.mxu0 0.0
        %1869 = vmatpush1.xpose.msra.mxu0 %v1449
        %1870 = vmatprep.subr.mxu0 0.0
        %1871 = vmatpush1.xpose.msra.mxu0 %v1452
        %1872 = vmatprep.subr.mxu0 0.0
        %1873 = vmatpush1.xpose.msra.mxu0 %v1455
        %1874 = vmatprep.mubr.f32.mxu0 0.0
        %1875 = vmatmul.mubr.f32.gmra.mrb[0].mxu0 %v1808
        %v1876 = vpop.f32.mrb[0].mxu0
        %v1877 = vadd.f32 0.0, %v1876
        %v1878 = vpop.f32.mrb[0].mxu0
        %v1879 = vadd.f32 0.0, %v1878
        %1880 = vdwg.mxu0
        %1881 = vmatprep.subr.mxu0 0.0
        %1882 = vmatpush1.xpose.msra.mxu0 %v1458
        %1883 = vmatprep.subr.mxu0 0.0
        %1884 = vmatpush1.xpose.msra.mxu0 %v1461
        %1885 = vmatprep.subr.mxu0 0.0
        %1886 = vmatpush1.xpose.msra.mxu0 %v1464
        %1887 = vmatprep.subr.mxu0 0.0
        %1888 = vmatpush1.xpose.msra.mxu0 %v1467
        %1889 = vmatprep.subr.mxu0 0.0
        %1890 = vmatpush1.xpose.msra.mxu0 %v1470
        %1891 = vmatprep.subr.mxu0 0.0
        %1892 = vmatpush1.xpose.msra.mxu0 %v1473
        %1893 = vmatprep.subr.mxu0 0.0
        %1894 = vmatpush1.xpose.msra.mxu0 %v1476
        %1895 = vmatprep.subr.mxu0 0.0
        %1896 = vmatpush1.xpose.msra.mxu0 %v1479
        %1897 = vmatprep.subr.mxu0 0.0
        %1898 = vmatpush1.xpose.msra.mxu0 %v1482
        %1899 = vmatprep.subr.mxu0 0.0
        %1900 = vmatpush1.xpose.msra.mxu0 0.0
        %1901 = vmatprep.subr.mxu0 0.0
        %1902 = vmatpush1.xpose.msra.mxu0 0.0
        %1903 = vmatprep.subr.mxu0 0.0
        %1904 = vmatpush1.xpose.msra.mxu0 0.0
        %1905 = vmatprep.subr.mxu0 0.0
        %1906 = vmatpush1.xpose.msra.mxu0 0.0
        %1907 = vmatprep.subr.mxu0 0.0
        %1908 = vmatpush1.xpose.msra.mxu0 0.0
        %1909 = vmatprep.subr.mxu0 0.0
        %1910 = vmatpush1.xpose.msra.mxu0 0.0
        %1911 = vmatprep.subr.mxu0 0.0
        %1912 = vmatpush1.xpose.msra.mxu0 0.0
        %1913 = vmatprep.subr.mxu0 0.0
        %1914 = vmatpush1.xpose.msra.mxu0 0.0
        %1915 = vmatprep.subr.mxu0 0.0
        %1916 = vmatpush1.xpose.msra.mxu0 0.0
        %1917 = vmatprep.subr.mxu0 0.0
        %1918 = vmatpush1.xpose.msra.mxu0 0.0
        %1919 = vmatprep.subr.mxu0 0.0
        %1920 = vmatpush1.xpose.msra.mxu0 0.0
        %1921 = vmatprep.subr.mxu0 0.0
        %1922 = vmatpush1.xpose.msra.mxu0 0.0
        %1923 = vmatprep.subr.mxu0 0.0
        %1924 = vmatpush1.xpose.msra.mxu0 0.0
        %1925 = vmatprep.subr.mxu0 0.0
        %1926 = vmatpush1.xpose.msra.mxu0 0.0
        %1927 = vmatprep.subr.mxu0 0.0
        %1928 = vmatpush1.xpose.msra.mxu0 0.0
        %1929 = vmatprep.subr.mxu0 0.0
        %1930 = vmatpush1.xpose.msra.mxu0 0.0
        %1931 = vmatprep.subr.mxu0 0.0
        %1932 = vmatpush1.xpose.msra.mxu0 0.0
        %1933 = vmatprep.subr.mxu0 0.0
        %1934 = vmatpush1.xpose.msra.mxu0 0.0
        %1935 = vmatprep.subr.mxu0 0.0
        %1936 = vmatpush1.xpose.msra.mxu0 0.0
        %1937 = vmatprep.subr.mxu0 0.0
        %1938 = vmatpush1.xpose.msra.mxu0 0.0
        %1939 = vmatprep.subr.mxu0 0.0
        %1940 = vmatpush1.xpose.msra.mxu0 0.0
        %1941 = vmatprep.subr.mxu0 0.0
        %1942 = vmatpush1.xpose.msra.mxu0 0.0
        %1943 = vmatprep.subr.mxu0 0.0
        %1944 = vmatpush1.xpose.msra.mxu0 0.0
        %1945 = vmatprep.mubr.f32.mxu0 0.0
        %1946 = vmatmul.mubr.f32.gmra.mrb[0].mxu0 %v1808
        %v1947 = vpop.f32.mrb[0].mxu0
        %v1948 = vadd.f32 0.0, %v1947
        %v1949 = vpop.f32.mrb[0].mxu0
        %1950 = vdwg.mxu0
        %v1951 = vld [vmem:[#allocation2] sm:$0xff]
        %v1952 = vld [vmem:[#allocation2 + $0x8] sm:$0xff]
        %v1953 = vld [vmem:[#allocation2 + $0x10] sm:$0xff]
        %1957 = vrot.lane.b32.xlu0 %v1877, 126
        %v1958 = vpop.permute.xlu0 %1957
        %1959 = vrot.lane.b32.xlu0 %v1879, 126
        %v1960 = vpop.permute.xlu0 %1959
        %1961 = vrot.lane.b32.xlu0 %v1948, 126
        %v1962 = vpop.permute.xlu0 %1961
        %vm1963 = vcmask 1031168
        %v1964 = vsel %vm1963, %v1958, %v1960
        %v1965 = vsel %vm1963, %v1960, %v1962
        %v1969 = vadd.f32 %v1951, %v1964
        %v1970 = vadd.f32 %v1952, %v1965
        %v1971 = vadd.f32 %v1953, %v1962
        %1972 = vst [vmem:[#allocation2] sm:$0xff] %v1969
        %1973 = vst [vmem:[#allocation2 + $0x8] sm:$0xff] %v1970
        %1974 = vst.msk [vmem:[#allocation2 + $0x10] sm:$0xff] %vm1633, %v1971
        %s1975 = scalar_lea.vmem [#allocation11], 24
        %v1976 = vld [vmem:[%s1975] sm:$0xff]
        %v1978 = vsel %vm1357, %v1976, 0
        %1980 = vmatprep.subr.mxu0 0.0
        %1981 = vmatpush1.xpose.msra.mxu0 %v1362
        %1982 = vmatprep.subr.mxu0 0.0
        %1983 = vmatpush1.xpose.msra.mxu0 %v1365
        %1984 = vmatprep.subr.mxu0 0.0
        %1985 = vmatpush1.xpose.msra.mxu0 %v1368
        %1986 = vmatprep.subr.mxu0 0.0
        %1987 = vmatpush1.xpose.msra.mxu0 %v1371
        %1988 = vmatprep.subr.mxu0 0.0
        %1989 = vmatpush1.xpose.msra.mxu0 %v1374
        %1990 = vmatprep.subr.mxu0 0.0
        %1991 = vmatpush1.xpose.msra.mxu0 %v1377
        %1992 = vmatprep.subr.mxu0 0.0
        %1993 = vmatpush1.xpose.msra.mxu0 %v1380
        %1994 = vmatprep.subr.mxu0 0.0
        %1995 = vmatpush1.xpose.msra.mxu0 %v1383
        %1996 = vmatprep.subr.mxu0 0.0
        %1997 = vmatpush1.xpose.msra.mxu0 %v1386
        %1998 = vmatprep.subr.mxu0 0.0
        %1999 = vmatpush1.xpose.msra.mxu0 %v1389
        %2000 = vmatprep.subr.mxu0 0.0
        %2001 = vmatpush1.xpose.msra.mxu0 %v1392
        %2002 = vmatprep.subr.mxu0 0.0
        %2003 = vmatpush1.xpose.msra.mxu0 %v1395
        %2004 = vmatprep.subr.mxu0 0.0
        %2005 = vmatpush1.xpose.msra.mxu0 %v1398
        %2006 = vmatprep.subr.mxu0 0.0
        %2007 = vmatpush1.xpose.msra.mxu0 %v1401
        %2008 = vmatprep.subr.mxu0 0.0
        %2009 = vmatpush1.xpose.msra.mxu0 %v1404
        %2010 = vmatprep.subr.mxu0 0.0
        %2011 = vmatpush1.xpose.msra.mxu0 %v1407
        %2012 = vmatprep.subr.mxu0 0.0
        %2013 = vmatpush1.xpose.msra.mxu0 %v1410
        %2014 = vmatprep.subr.mxu0 0.0
        %2015 = vmatpush1.xpose.msra.mxu0 %v1413
        %2016 = vmatprep.subr.mxu0 0.0
        %2017 = vmatpush1.xpose.msra.mxu0 %v1416
        %2018 = vmatprep.subr.mxu0 0.0
        %2019 = vmatpush1.xpose.msra.mxu0 %v1419
        %2020 = vmatprep.subr.mxu0 0.0
        %2021 = vmatpush1.xpose.msra.mxu0 %v1422
        %2022 = vmatprep.subr.mxu0 0.0
        %2023 = vmatpush1.xpose.msra.mxu0 %v1425
        %2024 = vmatprep.subr.mxu0 0.0
        %2025 = vmatpush1.xpose.msra.mxu0 %v1428
        %2026 = vmatprep.subr.mxu0 0.0
        %2027 = vmatpush1.xpose.msra.mxu0 %v1431
        %2028 = vmatprep.subr.mxu0 0.0
        %2029 = vmatpush1.xpose.msra.mxu0 %v1434
        %2030 = vmatprep.subr.mxu0 0.0
        %2031 = vmatpush1.xpose.msra.mxu0 %v1437
        %2032 = vmatprep.subr.mxu0 0.0
        %2033 = vmatpush1.xpose.msra.mxu0 %v1440
        %2034 = vmatprep.subr.mxu0 0.0
        %2035 = vmatpush1.xpose.msra.mxu0 %v1443
        %2036 = vmatprep.subr.mxu0 0.0
        %2037 = vmatpush1.xpose.msra.mxu0 %v1446
        %2038 = vmatprep.subr.mxu0 0.0
        %2039 = vmatpush1.xpose.msra.mxu0 %v1449
        %2040 = vmatprep.subr.mxu0 0.0
        %2041 = vmatpush1.xpose.msra.mxu0 %v1452
        %2042 = vmatprep.subr.mxu0 0.0
        %2043 = vmatpush1.xpose.msra.mxu0 %v1455
        %2044 = vmatprep.mubr.f32.mxu0 0.0
        %2045 = vmatmul.mubr.f32.gmra.mrb[0].mxu0 %v1978
        %v2046 = vpop.f32.mrb[0].mxu0
        %v2047 = vadd.f32 0.0, %v2046
        %v2048 = vpop.f32.mrb[0].mxu0
        %v2049 = vadd.f32 0.0, %v2048
        %2050 = vdwg.mxu0
        %2051 = vmatprep.subr.mxu0 0.0
        %2052 = vmatpush1.xpose.msra.mxu0 %v1458
        %2053 = vmatprep.subr.mxu0 0.0
        %2054 = vmatpush1.xpose.msra.mxu0 %v1461
        %2055 = vmatprep.subr.mxu0 0.0
        %2056 = vmatpush1.xpose.msra.mxu0 %v1464
        %2057 = vmatprep.subr.mxu0 0.0
        %2058 = vmatpush1.xpose.msra.mxu0 %v1467
        %2059 = vmatprep.subr.mxu0 0.0
        %2060 = vmatpush1.xpose.msra.mxu0 %v1470
        %2061 = vmatprep.subr.mxu0 0.0
        %2062 = vmatpush1.xpose.msra.mxu0 %v1473
        %2063 = vmatprep.subr.mxu0 0.0
        %2064 = vmatpush1.xpose.msra.mxu0 %v1476
        %2065 = vmatprep.subr.mxu0 0.0
        %2066 = vmatpush1.xpose.msra.mxu0 %v1479
        %2067 = vmatprep.subr.mxu0 0.0
        %2068 = vmatpush1.xpose.msra.mxu0 %v1482
        %2069 = vmatprep.subr.mxu0 0.0
        %2070 = vmatpush1.xpose.msra.mxu0 0.0
        %2071 = vmatprep.subr.mxu0 0.0
        %2072 = vmatpush1.xpose.msra.mxu0 0.0
        %2073 = vmatprep.subr.mxu0 0.0
        %2074 = vmatpush1.xpose.msra.mxu0 0.0
        %2075 = vmatprep.subr.mxu0 0.0
        %2076 = vmatpush1.xpose.msra.mxu0 0.0
        %2077 = vmatprep.subr.mxu0 0.0
        %2078 = vmatpush1.xpose.msra.mxu0 0.0
        %2079 = vmatprep.subr.mxu0 0.0
        %2080 = vmatpush1.xpose.msra.mxu0 0.0
        %2081 = vmatprep.subr.mxu0 0.0
        %2082 = vmatpush1.xpose.msra.mxu0 0.0
        %2083 = vmatprep.subr.mxu0 0.0
        %2084 = vmatpush1.xpose.msra.mxu0 0.0
        %2085 = vmatprep.subr.mxu0 0.0
        %2086 = vmatpush1.xpose.msra.mxu0 0.0
        %2087 = vmatprep.subr.mxu0 0.0
        %2088 = vmatpush1.xpose.msra.mxu0 0.0
        %2089 = vmatprep.subr.mxu0 0.0
        %2090 = vmatpush1.xpose.msra.mxu0 0.0
        %2091 = vmatprep.subr.mxu0 0.0
        %2092 = vmatpush1.xpose.msra.mxu0 0.0
        %2093 = vmatprep.subr.mxu0 0.0
        %2094 = vmatpush1.xpose.msra.mxu0 0.0
        %2095 = vmatprep.subr.mxu0 0.0
        %2096 = vmatpush1.xpose.msra.mxu0 0.0
        %2097 = vmatprep.subr.mxu0 0.0
        %2098 = vmatpush1.xpose.msra.mxu0 0.0
        %2099 = vmatprep.subr.mxu0 0.0
        %2100 = vmatpush1.xpose.msra.mxu0 0.0
        %2101 = vmatprep.subr.mxu0 0.0
        %2102 = vmatpush1.xpose.msra.mxu0 0.0
        %2103 = vmatprep.subr.mxu0 0.0
        %2104 = vmatpush1.xpose.msra.mxu0 0.0
        %2105 = vmatprep.subr.mxu0 0.0
        %2106 = vmatpush1.xpose.msra.mxu0 0.0
        %2107 = vmatprep.subr.mxu0 0.0
        %2108 = vmatpush1.xpose.msra.mxu0 0.0
        %2109 = vmatprep.subr.mxu0 0.0
        %2110 = vmatpush1.xpose.msra.mxu0 0.0
        %2111 = vmatprep.subr.mxu0 0.0
        %2112 = vmatpush1.xpose.msra.mxu0 0.0
        %2113 = vmatprep.subr.mxu0 0.0
        %2114 = vmatpush1.xpose.msra.mxu0 0.0
        %2115 = vmatprep.mubr.f32.mxu0 0.0
        %2116 = vmatmul.mubr.f32.gmra.mrb[0].mxu0 %v1978
        %v2117 = vpop.f32.mrb[0].mxu0
        %v2118 = vadd.f32 0.0, %v2117
        %v2119 = vpop.f32.mrb[0].mxu0
        %2120 = vdwg.mxu0
        %v2121 = vld [vmem:[#allocation2] sm:$0xff]
        %v2122 = vld [vmem:[#allocation2 + $0x8] sm:$0xff]
        %v2123 = vld [vmem:[#allocation2 + $0x10] sm:$0xff]
        %2127 = vrot.lane.b32.xlu0 %v2047, 110
        %v2128 = vpop.permute.xlu0 %2127
        %2129 = vrot.lane.b32.xlu0 %v2049, 110
        %v2130 = vpop.permute.xlu0 %2129
        %2131 = vrot.lane.b32.xlu0 %v2118, 110
        %v2132 = vpop.permute.xlu0 %2131
        %vm2133 = vcmask 900096
        %v2134 = vsel %vm2133, %v2128, %v2130
        %v2135 = vsel %vm2133, %v2130, %v2132
        %v2139 = vadd.f32 %v2121, %v2134
        %v2140 = vadd.f32 %v2122, %v2135
        %v2141 = vadd.f32 %v2123, %v2132
        %2142 = vst [vmem:[#allocation2] sm:$0xff] %v2139
        %2143 = vst [vmem:[#allocation2 + $0x8] sm:$0xff] %v2140
        %2144 = vst.msk [vmem:[#allocation2 + $0x10] sm:$0xff] %vm1633, %v2141
        %s2145 = scalar_lea.vmem [#allocation11], 32
        %v2146 = vld [vmem:[%s2145] sm:$0xff]
        %v2148 = vsel %vm1357, %v2146, 0
        %2150 = vmatprep.subr.mxu0 0.0
        %2151 = vmatpush1.xpose.msra.mxu0 %v1362
        %2152 = vmatprep.subr.mxu0 0.0
        %2153 = vmatpush1.xpose.msra.mxu0 %v1365
        %2154 = vmatprep.subr.mxu0 0.0
        %2155 = vmatpush1.xpose.msra.mxu0 %v1368
        %2156 = vmatprep.subr.mxu0 0.0
        %2157 = vmatpush1.xpose.msra.mxu0 %v1371
        %2158 = vmatprep.subr.mxu0 0.0
        %2159 = vmatpush1.xpose.msra.mxu0 %v1374
        %2160 = vmatprep.subr.mxu0 0.0
        %2161 = vmatpush1.xpose.msra.mxu0 %v1377
        %2162 = vmatprep.subr.mxu0 0.0
        %2163 = vmatpush1.xpose.msra.mxu0 %v1380
        %2164 = vmatprep.subr.mxu0 0.0
        %2165 = vmatpush1.xpose.msra.mxu0 %v1383
        %2166 = vmatprep.subr.mxu0 0.0
        %2167 = vmatpush1.xpose.msra.mxu0 %v1386
        %2168 = vmatprep.subr.mxu0 0.0
        %2169 = vmatpush1.xpose.msra.mxu0 %v1389
        %2170 = vmatprep.subr.mxu0 0.0
        %2171 = vmatpush1.xpose.msra.mxu0 %v1392
        %2172 = vmatprep.subr.mxu0 0.0
        %2173 = vmatpush1.xpose.msra.mxu0 %v1395
        %2174 = vmatprep.subr.mxu0 0.0
        %2175 = vmatpush1.xpose.msra.mxu0 %v1398
        %2176 = vmatprep.subr.mxu0 0.0
        %2177 = vmatpush1.xpose.msra.mxu0 %v1401
        %2178 = vmatprep.subr.mxu0 0.0
        %2179 = vmatpush1.xpose.msra.mxu0 %v1404
        %2180 = vmatprep.subr.mxu0 0.0
        %2181 = vmatpush1.xpose.msra.mxu0 %v1407
        %2182 = vmatprep.subr.mxu0 0.0
        %2183 = vmatpush1.xpose.msra.mxu0 %v1410
        %2184 = vmatprep.subr.mxu0 0.0
        %2185 = vmatpush1.xpose.msra.mxu0 %v1413
        %2186 = vmatprep.subr.mxu0 0.0
        %2187 = vmatpush1.xpose.msra.mxu0 %v1416
        %2188 = vmatprep.subr.mxu0 0.0
        %2189 = vmatpush1.xpose.msra.mxu0 %v1419
        %2190 = vmatprep.subr.mxu0 0.0
        %2191 = vmatpush1.xpose.msra.mxu0 %v1422
        %2192 = vmatprep.subr.mxu0 0.0
        %2193 = vmatpush1.xpose.msra.mxu0 %v1425
        %2194 = vmatprep.subr.mxu0 0.0
        %2195 = vmatpush1.xpose.msra.mxu0 %v1428
        %2196 = vmatprep.subr.mxu0 0.0
        %2197 = vmatpush1.xpose.msra.mxu0 %v1431
        %2198 = vmatprep.subr.mxu0 0.0
        %2199 = vmatpush1.xpose.msra.mxu0 %v1434
        %2200 = vmatprep.subr.mxu0 0.0
        %2201 = vmatpush1.xpose.msra.mxu0 %v1437
        %2202 = vmatprep.subr.mxu0 0.0
        %2203 = vmatpush1.xpose.msra.mxu0 %v1440
        %2204 = vmatprep.subr.mxu0 0.0
        %2205 = vmatpush1.xpose.msra.mxu0 %v1443
        %2206 = vmatprep.subr.mxu0 0.0
        %2207 = vmatpush1.xpose.msra.mxu0 %v1446
        %2208 = vmatprep.subr.mxu0 0.0
        %2209 = vmatpush1.xpose.msra.mxu0 %v1449
        %2210 = vmatprep.subr.mxu0 0.0
        %2211 = vmatpush1.xpose.msra.mxu0 %v1452
        %2212 = vmatprep.subr.mxu0 0.0
        %2213 = vmatpush1.xpose.msra.mxu0 %v1455
        %2214 = vmatprep.mubr.f32.mxu0 0.0
        %2215 = vmatmul.mubr.f32.gmra.mrb[0].mxu0 %v2148
        %v2216 = vpop.f32.mrb[0].mxu0
        %v2217 = vadd.f32 0.0, %v2216
        %v2218 = vpop.f32.mrb[0].mxu0
        %v2219 = vadd.f32 0.0, %v2218
        %2220 = vdwg.mxu0
        %2221 = vmatprep.subr.mxu0 0.0
        %2222 = vmatpush1.xpose.msra.mxu0 %v1458
        %2223 = vmatprep.subr.mxu0 0.0
        %2224 = vmatpush1.xpose.msra.mxu0 %v1461
        %2225 = vmatprep.subr.mxu0 0.0
        %2226 = vmatpush1.xpose.msra.mxu0 %v1464
        %2227 = vmatprep.subr.mxu0 0.0
        %2228 = vmatpush1.xpose.msra.mxu0 %v1467
        %2229 = vmatprep.subr.mxu0 0.0
        %2230 = vmatpush1.xpose.msra.mxu0 %v1470
        %2231 = vmatprep.subr.mxu0 0.0
        %2232 = vmatpush1.xpose.msra.mxu0 %v1473
        %2233 = vmatprep.subr.mxu0 0.0
        %2234 = vmatpush1.xpose.msra.mxu0 %v1476
        %2235 = vmatprep.subr.mxu0 0.0
        %2236 = vmatpush1.xpose.msra.mxu0 %v1479
        %2237 = vmatprep.subr.mxu0 0.0
        %2238 = vmatpush1.xpose.msra.mxu0 %v1482
        %2239 = vmatprep.subr.mxu0 0.0
        %2240 = vmatpush1.xpose.msra.mxu0 0.0
        %2241 = vmatprep.subr.mxu0 0.0
        %2242 = vmatpush1.xpose.msra.mxu0 0.0
        %2243 = vmatprep.subr.mxu0 0.0
        %2244 = vmatpush1.xpose.msra.mxu0 0.0
        %2245 = vmatprep.subr.mxu0 0.0
        %2246 = vmatpush1.xpose.msra.mxu0 0.0
        %2247 = vmatprep.subr.mxu0 0.0
        %2248 = vmatpush1.xpose.msra.mxu0 0.0
        %2249 = vmatprep.subr.mxu0 0.0
        %2250 = vmatpush1.xpose.msra.mxu0 0.0
        %2251 = vmatprep.subr.mxu0 0.0
        %2252 = vmatpush1.xpose.msra.mxu0 0.0
        %2253 = vmatprep.subr.mxu0 0.0
        %2254 = vmatpush1.xpose.msra.mxu0 0.0
        %2255 = vmatprep.subr.mxu0 0.0
        %2256 = vmatpush1.xpose.msra.mxu0 0.0
        %2257 = vmatprep.subr.mxu0 0.0
        %2258 = vmatpush1.xpose.msra.mxu0 0.0
        %2259 = vmatprep.subr.mxu0 0.0
        %2260 = vmatpush1.xpose.msra.mxu0 0.0
        %2261 = vmatprep.subr.mxu0 0.0
        %2262 = vmatpush1.xpose.msra.mxu0 0.0
        %2263 = vmatprep.subr.mxu0 0.0
        %2264 = vmatpush1.xpose.msra.mxu0 0.0
        %2265 = vmatprep.subr.mxu0 0.0
        %2266 = vmatpush1.xpose.msra.mxu0 0.0
        %2267 = vmatprep.subr.mxu0 0.0
        %2268 = vmatpush1.xpose.msra.mxu0 0.0
        %2269 = vmatprep.subr.mxu0 0.0
        %2270 = vmatpush1.xpose.msra.mxu0 0.0
        %2271 = vmatprep.subr.mxu0 0.0
        %2272 = vmatpush1.xpose.msra.mxu0 0.0
        %2273 = vmatprep.subr.mxu0 0.0
        %2274 = vmatpush1.xpose.msra.mxu0 0.0
        %2275 = vmatprep.subr.mxu0 0.0
        %2276 = vmatpush1.xpose.msra.mxu0 0.0
        %2277 = vmatprep.subr.mxu0 0.0
        %2278 = vmatpush1.xpose.msra.mxu0 0.0
        %2279 = vmatprep.subr.mxu0 0.0
        %2280 = vmatpush1.xpose.msra.mxu0 0.0
        %2281 = vmatprep.subr.mxu0 0.0
        %2282 = vmatpush1.xpose.msra.mxu0 0.0
        %2283 = vmatprep.subr.mxu0 0.0
        %2284 = vmatpush1.xpose.msra.mxu0 0.0
        %2285 = vmatprep.mubr.f32.mxu0 0.0
        %2286 = vmatmul.mubr.f32.gmra.mrb[0].mxu0 %v2148
        %v2287 = vpop.f32.mrb[0].mxu0
        %v2288 = vadd.f32 0.0, %v2287
        %v2289 = vpop.f32.mrb[0].mxu0
        %2290 = vdwg.mxu0
        %v2291 = vld [vmem:[#allocation2] sm:$0xff]
        %v2292 = vld [vmem:[#allocation2 + $0x8] sm:$0xff]
        %v2293 = vld [vmem:[#allocation2 + $0x10] sm:$0xff]
        %2297 = vrot.lane.b32.xlu0 %v2217, 109
        %v2298 = vpop.permute.xlu0 %2297
        %2299 = vrot.lane.b32.xlu0 %v2219, 109
        %v2300 = vpop.permute.xlu0 %2299
        %2301 = vrot.lane.b32.xlu0 %v2288, 109
        %v2302 = vpop.permute.xlu0 %2301
        %vm2303 = vcmask 891904
        %v2304 = vsel %vm2303, %v2298, %v2300
        %v2305 = vsel %vm2303, %v2300, %v2302
        %v2309 = vadd.f32 %v2291, %v2304
        %v2310 = vadd.f32 %v2292, %v2305
        %v2311 = vadd.f32 %v2293, %v2302
        %2312 = vst [vmem:[#allocation2] sm:$0xff] %v2309
        %2313 = vst [vmem:[#allocation2 + $0x8] sm:$0xff] %v2310
        %2314 = vst.msk [vmem:[#allocation2 + $0x10] sm:$0xff] %vm1633, %v2311
        %s2315 = scalar_lea.vmem [#allocation11], 40
        %v2316 = vld [vmem:[%s2315] sm:$0xff]
        %v2318 = vsel %vm1357, %v2316, 0
        %2320 = vmatprep.subr.mxu0 0.0
        %2321 = vmatpush1.xpose.msra.mxu0 %v1362
        %2322 = vmatprep.subr.mxu0 0.0
        %2323 = vmatpush1.xpose.msra.mxu0 %v1365
        %2324 = vmatprep.subr.mxu0 0.0
        %2325 = vmatpush1.xpose.msra.mxu0 %v1368
        %2326 = vmatprep.subr.mxu0 0.0
        %2327 = vmatpush1.xpose.msra.mxu0 %v1371
        %2328 = vmatprep.subr.mxu0 0.0
        %2329 = vmatpush1.xpose.msra.mxu0 %v1374
        %2330 = vmatprep.subr.mxu0 0.0
        %2331 = vmatpush1.xpose.msra.mxu0 %v1377
        %2332 = vmatprep.subr.mxu0 0.0
        %2333 = vmatpush1.xpose.msra.mxu0 %v1380
        %2334 = vmatprep.subr.mxu0 0.0
        %2335 = vmatpush1.xpose.msra.mxu0 %v1383
        %2336 = vmatprep.subr.mxu0 0.0
        %2337 = vmatpush1.xpose.msra.mxu0 %v1386
        %2338 = vmatprep.subr.mxu0 0.0
        %2339 = vmatpush1.xpose.msra.mxu0 %v1389
        %2340 = vmatprep.subr.mxu0 0.0
        %2341 = vmatpush1.xpose.msra.mxu0 %v1392
        %2342 = vmatprep.subr.mxu0 0.0
        %2343 = vmatpush1.xpose.msra.mxu0 %v1395
        %2344 = vmatprep.subr.mxu0 0.0
        %2345 = vmatpush1.xpose.msra.mxu0 %v1398
        %2346 = vmatprep.subr.mxu0 0.0
        %2347 = vmatpush1.xpose.msra.mxu0 %v1401
        %2348 = vmatprep.subr.mxu0 0.0
        %2349 = vmatpush1.xpose.msra.mxu0 %v1404
        %2350 = vmatprep.subr.mxu0 0.0
        %2351 = vmatpush1.xpose.msra.mxu0 %v1407
        %2352 = vmatprep.subr.mxu0 0.0
        %2353 = vmatpush1.xpose.msra.mxu0 %v1410
        %2354 = vmatprep.subr.mxu0 0.0
        %2355 = vmatpush1.xpose.msra.mxu0 %v1413
        %2356 = vmatprep.subr.mxu0 0.0
        %2357 = vmatpush1.xpose.msra.mxu0 %v1416
        %2358 = vmatprep.subr.mxu0 0.0
        %2359 = vmatpush1.xpose.msra.mxu0 %v1419
        %2360 = vmatprep.subr.mxu0 0.0
        %2361 = vmatpush1.xpose.msra.mxu0 %v1422
        %2362 = vmatprep.subr.mxu0 0.0
        %2363 = vmatpush1.xpose.msra.mxu0 %v1425
        %2364 = vmatprep.subr.mxu0 0.0
        %2365 = vmatpush1.xpose.msra.mxu0 %v1428
        %2366 = vmatprep.subr.mxu0 0.0
        %2367 = vmatpush1.xpose.msra.mxu0 %v1431
        %2368 = vmatprep.subr.mxu0 0.0
        %2369 = vmatpush1.xpose.msra.mxu0 %v1434
        %2370 = vmatprep.subr.mxu0 0.0
        %2371 = vmatpush1.xpose.msra.mxu0 %v1437
        %2372 = vmatprep.subr.mxu0 0.0
        %2373 = vmatpush1.xpose.msra.mxu0 %v1440
        %2374 = vmatprep.subr.mxu0 0.0
        %2375 = vmatpush1.xpose.msra.mxu0 %v1443
        %2376 = vmatprep.subr.mxu0 0.0
        %2377 = vmatpush1.xpose.msra.mxu0 %v1446
        %2378 = vmatprep.subr.mxu0 0.0
        %2379 = vmatpush1.xpose.msra.mxu0 %v1449
        %2380 = vmatprep.subr.mxu0 0.0
        %2381 = vmatpush1.xpose.msra.mxu0 %v1452
        %2382 = vmatprep.subr.mxu0 0.0
        %2383 = vmatpush1.xpose.msra.mxu0 %v1455
        %2384 = vmatprep.mubr.f32.mxu0 0.0
        %2385 = vmatmul.mubr.f32.gmra.mrb[0].mxu0 %v2318
        %v2386 = vpop.f32.mrb[0].mxu0
        %v2387 = vadd.f32 0.0, %v2386
        %v2388 = vpop.f32.mrb[0].mxu0
        %v2389 = vadd.f32 0.0, %v2388
        %2390 = vdwg.mxu0
        %2391 = vmatprep.subr.mxu0 0.0
        %2392 = vmatpush1.xpose.msra.mxu0 %v1458
        %2393 = vmatprep.subr.mxu0 0.0
        %2394 = vmatpush1.xpose.msra.mxu0 %v1461
        %2395 = vmatprep.subr.mxu0 0.0
        %2396 = vmatpush1.xpose.msra.mxu0 %v1464
        %2397 = vmatprep.subr.mxu0 0.0
        %2398 = vmatpush1.xpose.msra.mxu0 %v1467
        %2399 = vmatprep.subr.mxu0 0.0
        %2400 = vmatpush1.xpose.msra.mxu0 %v1470
        %2401 = vmatprep.subr.mxu0 0.0
        %2402 = vmatpush1.xpose.msra.mxu0 %v1473
        %2403 = vmatprep.subr.mxu0 0.0
        %2404 = vmatpush1.xpose.msra.mxu0 %v1476
        %2405 = vmatprep.subr.mxu0 0.0
        %2406 = vmatpush1.xpose.msra.mxu0 %v1479
        %2407 = vmatprep.subr.mxu0 0.0
        %2408 = vmatpush1.xpose.msra.mxu0 %v1482
        %2409 = vmatprep.subr.mxu0 0.0
        %2410 = vmatpush1.xpose.msra.mxu0 0.0
        %2411 = vmatprep.subr.mxu0 0.0
        %2412 = vmatpush1.xpose.msra.mxu0 0.0
        %2413 = vmatprep.subr.mxu0 0.0
        %2414 = vmatpush1.xpose.msra.mxu0 0.0
        %2415 = vmatprep.subr.mxu0 0.0
        %2416 = vmatpush1.xpose.msra.mxu0 0.0
        %2417 = vmatprep.subr.mxu0 0.0
        %2418 = vmatpush1.xpose.msra.mxu0 0.0
        %2419 = vmatprep.subr.mxu0 0.0
        %2420 = vmatpush1.xpose.msra.mxu0 0.0
        %2421 = vmatprep.subr.mxu0 0.0
        %2422 = vmatpush1.xpose.msra.mxu0 0.0
        %2423 = vmatprep.subr.mxu0 0.0
        %2424 = vmatpush1.xpose.msra.mxu0 0.0
        %2425 = vmatprep.subr.mxu0 0.0
        %2426 = vmatpush1.xpose.msra.mxu0 0.0
        %2427 = vmatprep.subr.mxu0 0.0
        %2428 = vmatpush1.xpose.msra.mxu0 0.0
        %2429 = vmatprep.subr.mxu0 0.0
        %2430 = vmatpush1.xpose.msra.mxu0 0.0
        %2431 = vmatprep.subr.mxu0 0.0
        %2432 = vmatpush1.xpose.msra.mxu0 0.0
        %2433 = vmatprep.subr.mxu0 0.0
        %2434 = vmatpush1.xpose.msra.mxu0 0.0
        %2435 = vmatprep.subr.mxu0 0.0
        %2436 = vmatpush1.xpose.msra.mxu0 0.0
        %2437 = vmatprep.subr.mxu0 0.0
        %2438 = vmatpush1.xpose.msra.mxu0 0.0
        %2439 = vmatprep.subr.mxu0 0.0
        %2440 = vmatpush1.xpose.msra.mxu0 0.0
        %2441 = vmatprep.subr.mxu0 0.0
        %2442 = vmatpush1.xpose.msra.mxu0 0.0
        %2443 = vmatprep.subr.mxu0 0.0
        %2444 = vmatpush1.xpose.msra.mxu0 0.0
        %2445 = vmatprep.subr.mxu0 0.0
        %2446 = vmatpush1.xpose.msra.mxu0 0.0
        %2447 = vmatprep.subr.mxu0 0.0
        %2448 = vmatpush1.xpose.msra.mxu0 0.0
        %2449 = vmatprep.subr.mxu0 0.0
        %2450 = vmatpush1.xpose.msra.mxu0 0.0
        %2451 = vmatprep.subr.mxu0 0.0
        %2452 = vmatpush1.xpose.msra.mxu0 0.0
        %2453 = vmatprep.subr.mxu0 0.0
        %2454 = vmatpush1.xpose.msra.mxu0 0.0
        %2455 = vmatprep.mubr.f32.mxu0 0.0
        %2456 = vmatmul.mubr.f32.gmra.mrb[0].mxu0 %v2318
        %v2457 = vpop.f32.mrb[0].mxu0
        %v2458 = vadd.f32 0.0, %v2457
        %v2459 = vpop.f32.mrb[0].mxu0
        %2460 = vdwg.mxu0
        %v2461 = vld [vmem:[#allocation2] sm:$0xff]
        %v2462 = vld [vmem:[#allocation2 + $0x8] sm:$0xff]
        %v2463 = vld [vmem:[#allocation2 + $0x10] sm:$0xff]
        %2467 = vrot.lane.b32.xlu0 %v2387, 108
        %v2468 = vpop.permute.xlu0 %2467
        %2469 = vrot.lane.b32.xlu0 %v2389, 108
        %v2470 = vpop.permute.xlu0 %2469
        %2471 = vrot.lane.b32.xlu0 %v2458, 108
        %v2472 = vpop.permute.xlu0 %2471
        %vm2473 = vcmask 883712
        %v2474 = vsel %vm2473, %v2468, %v2470
        %v2475 = vsel %vm2473, %v2470, %v2472
        %v2479 = vadd.f32 %v2461, %v2474
        %v2480 = vadd.f32 %v2462, %v2475
        %v2481 = vadd.f32 %v2463, %v2472
        %2482 = vst [vmem:[#allocation2] sm:$0xff] %v2479
        %2483 = vst [vmem:[#allocation2 + $0x8] sm:$0xff] %v2480
        %2484 = vst.msk [vmem:[#allocation2 + $0x10] sm:$0xff] %vm1633, %v2481
        %s2485 = scalar_lea.vmem [#allocation11], 48
        %v2486 = vld [vmem:[%s2485] sm:$0xff]
        %v2488 = vsel %vm1357, %v2486, 0
        %2490 = vmatprep.subr.mxu0 0.0
        %2491 = vmatpush1.xpose.msra.mxu0 %v1362
        %2492 = vmatprep.subr.mxu0 0.0
        %2493 = vmatpush1.xpose.msra.mxu0 %v1365
        %2494 = vmatprep.subr.mxu0 0.0
        %2495 = vmatpush1.xpose.msra.mxu0 %v1368
        %2496 = vmatprep.subr.mxu0 0.0
        %2497 = vmatpush1.xpose.msra.mxu0 %v1371
        %2498 = vmatprep.subr.mxu0 0.0
        %2499 = vmatpush1.xpose.msra.mxu0 %v1374
        %2500 = vmatprep.subr.mxu0 0.0
        %2501 = vmatpush1.xpose.msra.mxu0 %v1377
        %2502 = vmatprep.subr.mxu0 0.0
        %2503 = vmatpush1.xpose.msra.mxu0 %v1380
        %2504 = vmatprep.subr.mxu0 0.0
        %2505 = vmatpush1.xpose.msra.mxu0 %v1383
        %2506 = vmatprep.subr.mxu0 0.0
        %2507 = vmatpush1.xpose.msra.mxu0 %v1386
        %2508 = vmatprep.subr.mxu0 0.0
        %2509 = vmatpush1.xpose.msra.mxu0 %v1389
        %2510 = vmatprep.subr.mxu0 0.0
        %2511 = vmatpush1.xpose.msra.mxu0 %v1392
        %2512 = vmatprep.subr.mxu0 0.0
        %2513 = vmatpush1.xpose.msra.mxu0 %v1395
        %2514 = vmatprep.subr.mxu0 0.0
        %2515 = vmatpush1.xpose.msra.mxu0 %v1398
        %2516 = vmatprep.subr.mxu0 0.0
        %2517 = vmatpush1.xpose.msra.mxu0 %v1401
        %2518 = vmatprep.subr.mxu0 0.0
        %2519 = vmatpush1.xpose.msra.mxu0 %v1404
        %2520 = vmatprep.subr.mxu0 0.0
        %2521 = vmatpush1.xpose.msra.mxu0 %v1407
        %2522 = vmatprep.subr.mxu0 0.0
        %2523 = vmatpush1.xpose.msra.mxu0 %v1410
        %2524 = vmatprep.subr.mxu0 0.0
        %2525 = vmatpush1.xpose.msra.mxu0 %v1413
        %2526 = vmatprep.subr.mxu0 0.0
        %2527 = vmatpush1.xpose.msra.mxu0 %v1416
        %2528 = vmatprep.subr.mxu0 0.0
        %2529 = vmatpush1.xpose.msra.mxu0 %v1419
        %2530 = vmatprep.subr.mxu0 0.0
        %2531 = vmatpush1.xpose.msra.mxu0 %v1422
        %2532 = vmatprep.subr.mxu0 0.0
        %2533 = vmatpush1.xpose.msra.mxu0 %v1425
        %2534 = vmatprep.subr.mxu0 0.0
        %2535 = vmatpush1.xpose.msra.mxu0 %v1428
        %2536 = vmatprep.subr.mxu0 0.0
        %2537 = vmatpush1.xpose.msra.mxu0 %v1431
        %2538 = vmatprep.subr.mxu0 0.0
        %2539 = vmatpush1.xpose.msra.mxu0 %v1434
        %2540 = vmatprep.subr.mxu0 0.0
        %2541 = vmatpush1.xpose.msra.mxu0 %v1437
        %2542 = vmatprep.subr.mxu0 0.0
        %2543 = vmatpush1.xpose.msra.mxu0 %v1440
        %2544 = vmatprep.subr.mxu0 0.0
        %2545 = vmatpush1.xpose.msra.mxu0 %v1443
        %2546 = vmatprep.subr.mxu0 0.0
        %2547 = vmatpush1.xpose.msra.mxu0 %v1446
        %2548 = vmatprep.subr.mxu0 0.0
        %2549 = vmatpush1.xpose.msra.mxu0 %v1449
        %2550 = vmatprep.subr.mxu0 0.0
        %2551 = vmatpush1.xpose.msra.mxu0 %v1452
        %2552 = vmatprep.subr.mxu0 0.0
        %2553 = vmatpush1.xpose.msra.mxu0 %v1455
        %2554 = vmatprep.mubr.f32.mxu0 0.0
        %2555 = vmatmul.mubr.f32.gmra.mrb[0].mxu0 %v2488
        %v2556 = vpop.f32.mrb[0].mxu0
        %v2557 = vadd.f32 0.0, %v2556
        %v2558 = vpop.f32.mrb[0].mxu0
        %v2559 = vadd.f32 0.0, %v2558
        %2560 = vdwg.mxu0
        %2561 = vmatprep.subr.mxu0 0.0
        %2562 = vmatpush1.xpose.msra.mxu0 %v1458
        %2563 = vmatprep.subr.mxu0 0.0
        %2564 = vmatpush1.xpose.msra.mxu0 %v1461
        %2565 = vmatprep.subr.mxu0 0.0
        %2566 = vmatpush1.xpose.msra.mxu0 %v1464
        %2567 = vmatprep.subr.mxu0 0.0
        %2568 = vmatpush1.xpose.msra.mxu0 %v1467
        %2569 = vmatprep.subr.mxu0 0.0
        %2570 = vmatpush1.xpose.msra.mxu0 %v1470
        %2571 = vmatprep.subr.mxu0 0.0
        %2572 = vmatpush1.xpose.msra.mxu0 %v1473
        %2573 = vmatprep.subr.mxu0 0.0
        %2574 = vmatpush1.xpose.msra.mxu0 %v1476
        %2575 = vmatprep.subr.mxu0 0.0
        %2576 = vmatpush1.xpose.msra.mxu0 %v1479
        %2577 = vmatprep.subr.mxu0 0.0
        %2578 = vmatpush1.xpose.msra.mxu0 %v1482
        %2579 = vmatprep.subr.mxu0 0.0
        %2580 = vmatpush1.xpose.msra.mxu0 0.0
        %2581 = vmatprep.subr.mxu0 0.0
        %2582 = vmatpush1.xpose.msra.mxu0 0.0
        %2583 = vmatprep.subr.mxu0 0.0
        %2584 = vmatpush1.xpose.msra.mxu0 0.0
        %2585 = vmatprep.subr.mxu0 0.0
        %2586 = vmatpush1.xpose.msra.mxu0 0.0
        %2587 = vmatprep.subr.mxu0 0.0
        %2588 = vmatpush1.xpose.msra.mxu0 0.0
        %2589 = vmatprep.subr.mxu0 0.0
        %2590 = vmatpush1.xpose.msra.mxu0 0.0
        %2591 = vmatprep.subr.mxu0 0.0
        %2592 = vmatpush1.xpose.msra.mxu0 0.0
        %2593 = vmatprep.subr.mxu0 0.0
        %2594 = vmatpush1.xpose.msra.mxu0 0.0
        %2595 = vmatprep.subr.mxu0 0.0
        %2596 = vmatpush1.xpose.msra.mxu0 0.0
        %2597 = vmatprep.subr.mxu0 0.0
        %2598 = vmatpush1.xpose.msra.mxu0 0.0
        %2599 = vmatprep.subr.mxu0 0.0
        %2600 = vmatpush1.xpose.msra.mxu0 0.0
        %2601 = vmatprep.subr.mxu0 0.0
        %2602 = vmatpush1.xpose.msra.mxu0 0.0
        %2603 = vmatprep.subr.mxu0 0.0
        %2604 = vmatpush1.xpose.msra.mxu0 0.0
        %2605 = vmatprep.subr.mxu0 0.0
        %2606 = vmatpush1.xpose.msra.mxu0 0.0
        %2607 = vmatprep.subr.mxu0 0.0
        %2608 = vmatpush1.xpose.msra.mxu0 0.0
        %2609 = vmatprep.subr.mxu0 0.0
        %2610 = vmatpush1.xpose.msra.mxu0 0.0
        %2611 = vmatprep.subr.mxu0 0.0
        %2612 = vmatpush1.xpose.msra.mxu0 0.0
        %2613 = vmatprep.subr.mxu0 0.0
        %2614 = vmatpush1.xpose.msra.mxu0 0.0
        %2615 = vmatprep.subr.mxu0 0.0
        %2616 = vmatpush1.xpose.msra.mxu0 0.0
        %2617 = vmatprep.subr.mxu0 0.0
        %2618 = vmatpush1.xpose.msra.mxu0 0.0
        %2619 = vmatprep.subr.mxu0 0.0
        %2620 = vmatpush1.xpose.msra.mxu0 0.0
        %2621 = vmatprep.subr.mxu0 0.0
        %2622 = vmatpush1.xpose.msra.mxu0 0.0
        %2623 = vmatprep.subr.mxu0 0.0
        %2624 = vmatpush1.xpose.msra.mxu0 0.0
        %2625 = vmatprep.mubr.f32.mxu0 0.0
        %2626 = vmatmul.mubr.f32.gmra.mrb[0].mxu0 %v2488
        %v2627 = vpop.f32.mrb[0].mxu0
        %v2628 = vadd.f32 0.0, %v2627
        %v2629 = vpop.f32.mrb[0].mxu0
        %2630 = vdwg.mxu0
        %v2631 = vld [vmem:[#allocation2] sm:$0xff]
        %v2632 = vld [vmem:[#allocation2 + $0x8] sm:$0xff]
        %v2633 = vld [vmem:[#allocation2 + $0x10] sm:$0xff]
        %2637 = vrot.lane.b32.xlu0 %v2557, 92
        %v2638 = vpop.permute.xlu0 %2637
        %2639 = vrot.lane.b32.xlu0 %v2559, 92
        %v2640 = vpop.permute.xlu0 %2639
        %2641 = vrot.lane.b32.xlu0 %v2628, 92
        %v2642 = vpop.permute.xlu0 %2641
        %vm2643 = vcmask 752640
        %v2644 = vsel %vm2643, %v2638, %v2640
        %v2645 = vsel %vm2643, %v2640, %v2642
        %v2649 = vadd.f32 %v2631, %v2644
        %v2650 = vadd.f32 %v2632, %v2645
        %v2651 = vadd.f32 %v2633, %v2642
        %2652 = vst [vmem:[#allocation2] sm:$0xff] %v2649
        %2653 = vst [vmem:[#allocation2 + $0x8] sm:$0xff] %v2650
        %2654 = vst.msk [vmem:[#allocation2 + $0x10] sm:$0xff] %vm1633, %v2651
        %s2655 = scalar_lea.vmem [#allocation11], 56
        %v2656 = vld [vmem:[%s2655] sm:$0xff]
        %v2658 = vsel %vm1357, %v2656, 0
        %2660 = vmatprep.subr.mxu0 0.0
        %2661 = vmatpush1.xpose.msra.mxu0 %v1362
        %2662 = vmatprep.subr.mxu0 0.0
        %2663 = vmatpush1.xpose.msra.mxu0 %v1365
        %2664 = vmatprep.subr.mxu0 0.0
        %2665 = vmatpush1.xpose.msra.mxu0 %v1368
        %2666 = vmatprep.subr.mxu0 0.0
        %2667 = vmatpush1.xpose.msra.mxu0 %v1371
        %2668 = vmatprep.subr.mxu0 0.0
        %2669 = vmatpush1.xpose.msra.mxu0 %v1374
        %2670 = vmatprep.subr.mxu0 0.0
        %2671 = vmatpush1.xpose.msra.mxu0 %v1377
        %2672 = vmatprep.subr.mxu0 0.0
        %2673 = vmatpush1.xpose.msra.mxu0 %v1380
        %2674 = vmatprep.subr.mxu0 0.0
        %2675 = vmatpush1.xpose.msra.mxu0 %v1383
        %2676 = vmatprep.subr.mxu0 0.0
        %2677 = vmatpush1.xpose.msra.mxu0 %v1386
        %2678 = vmatprep.subr.mxu0 0.0
        %2679 = vmatpush1.xpose.msra.mxu0 %v1389
        %2680 = vmatprep.subr.mxu0 0.0
        %2681 = vmatpush1.xpose.msra.mxu0 %v1392
        %2682 = vmatprep.subr.mxu0 0.0
        %2683 = vmatpush1.xpose.msra.mxu0 %v1395
        %2684 = vmatprep.subr.mxu0 0.0
        %2685 = vmatpush1.xpose.msra.mxu0 %v1398
        %2686 = vmatprep.subr.mxu0 0.0
        %2687 = vmatpush1.xpose.msra.mxu0 %v1401
        %2688 = vmatprep.subr.mxu0 0.0
        %2689 = vmatpush1.xpose.msra.mxu0 %v1404
        %2690 = vmatprep.subr.mxu0 0.0
        %2691 = vmatpush1.xpose.msra.mxu0 %v1407
        %2692 = vmatprep.subr.mxu0 0.0
        %2693 = vmatpush1.xpose.msra.mxu0 %v1410
        %2694 = vmatprep.subr.mxu0 0.0
        %2695 = vmatpush1.xpose.msra.mxu0 %v1413
        %2696 = vmatprep.subr.mxu0 0.0
        %2697 = vmatpush1.xpose.msra.mxu0 %v1416
        %2698 = vmatprep.subr.mxu0 0.0
        %2699 = vmatpush1.xpose.msra.mxu0 %v1419
        %2700 = vmatprep.subr.mxu0 0.0
        %2701 = vmatpush1.xpose.msra.mxu0 %v1422
        %2702 = vmatprep.subr.mxu0 0.0
        %2703 = vmatpush1.xpose.msra.mxu0 %v1425
        %2704 = vmatprep.subr.mxu0 0.0
        %2705 = vmatpush1.xpose.msra.mxu0 %v1428
        %2706 = vmatprep.subr.mxu0 0.0
        %2707 = vmatpush1.xpose.msra.mxu0 %v1431
        %2708 = vmatprep.subr.mxu0 0.0
        %2709 = vmatpush1.xpose.msra.mxu0 %v1434
        %2710 = vmatprep.subr.mxu0 0.0
        %2711 = vmatpush1.xpose.msra.mxu0 %v1437
        %2712 = vmatprep.subr.mxu0 0.0
        %2713 = vmatpush1.xpose.msra.mxu0 %v1440
        %2714 = vmatprep.subr.mxu0 0.0
        %2715 = vmatpush1.xpose.msra.mxu0 %v1443
        %2716 = vmatprep.subr.mxu0 0.0
        %2717 = vmatpush1.xpose.msra.mxu0 %v1446
        %2718 = vmatprep.subr.mxu0 0.0
        %2719 = vmatpush1.xpose.msra.mxu0 %v1449
        %2720 = vmatprep.subr.mxu0 0.0
        %2721 = vmatpush1.xpose.msra.mxu0 %v1452
        %2722 = vmatprep.subr.mxu0 0.0
        %2723 = vmatpush1.xpose.msra.mxu0 %v1455
        %2724 = vmatprep.mubr.f32.mxu0 0.0
        %2725 = vmatmul.mubr.f32.gmra.mrb[0].mxu0 %v2658
        %v2726 = vpop.f32.mrb[0].mxu0
        %v2727 = vadd.f32 0.0, %v2726
        %v2728 = vpop.f32.mrb[0].mxu0
        %v2729 = vadd.f32 0.0, %v2728
        %2730 = vdwg.mxu0
        %2731 = vmatprep.subr.mxu0 0.0
        %2732 = vmatpush1.xpose.msra.mxu0 %v1458
        %2733 = vmatprep.subr.mxu0 0.0
        %2734 = vmatpush1.xpose.msra.mxu0 %v1461
        %2735 = vmatprep.subr.mxu0 0.0
        %2736 = vmatpush1.xpose.msra.mxu0 %v1464
        %2737 = vmatprep.subr.mxu0 0.0
        %2738 = vmatpush1.xpose.msra.mxu0 %v1467
        %2739 = vmatprep.subr.mxu0 0.0
        %2740 = vmatpush1.xpose.msra.mxu0 %v1470
        %2741 = vmatprep.subr.mxu0 0.0
        %2742 = vmatpush1.xpose.msra.mxu0 %v1473
        %2743 = vmatprep.subr.mxu0 0.0
        %2744 = vmatpush1.xpose.msra.mxu0 %v1476
        %2745 = vmatprep.subr.mxu0 0.0
        %2746 = vmatpush1.xpose.msra.mxu0 %v1479
        %2747 = vmatprep.subr.mxu0 0.0
        %2748 = vmatpush1.xpose.msra.mxu0 %v1482
        %2749 = vmatprep.subr.mxu0 0.0
        %2750 = vmatpush1.xpose.msra.mxu0 0.0
        %2751 = vmatprep.subr.mxu0 0.0
        %2752 = vmatpush1.xpose.msra.mxu0 0.0
        %2753 = vmatprep.subr.mxu0 0.0
        %2754 = vmatpush1.xpose.msra.mxu0 0.0
        %2755 = vmatprep.subr.mxu0 0.0
        %2756 = vmatpush1.xpose.msra.mxu0 0.0
        %2757 = vmatprep.subr.mxu0 0.0
        %2758 = vmatpush1.xpose.msra.mxu0 0.0
        %2759 = vmatprep.subr.mxu0 0.0
        %2760 = vmatpush1.xpose.msra.mxu0 0.0
        %2761 = vmatprep.subr.mxu0 0.0
        %2762 = vmatpush1.xpose.msra.mxu0 0.0
        %2763 = vmatprep.subr.mxu0 0.0
        %2764 = vmatpush1.xpose.msra.mxu0 0.0
        %2765 = vmatprep.subr.mxu0 0.0
        %2766 = vmatpush1.xpose.msra.mxu0 0.0
        %2767 = vmatprep.subr.mxu0 0.0
        %2768 = vmatpush1.xpose.msra.mxu0 0.0
        %2769 = vmatprep.subr.mxu0 0.0
        %2770 = vmatpush1.xpose.msra.mxu0 0.0
        %2771 = vmatprep.subr.mxu0 0.0
        %2772 = vmatpush1.xpose.msra.mxu0 0.0
        %2773 = vmatprep.subr.mxu0 0.0
        %2774 = vmatpush1.xpose.msra.mxu0 0.0
        %2775 = vmatprep.subr.mxu0 0.0
        %2776 = vmatpush1.xpose.msra.mxu0 0.0
        %2777 = vmatprep.subr.mxu0 0.0
        %2778 = vmatpush1.xpose.msra.mxu0 0.0
        %2779 = vmatprep.subr.mxu0 0.0
        %2780 = vmatpush1.xpose.msra.mxu0 0.0
        %2781 = vmatprep.subr.mxu0 0.0
        %2782 = vmatpush1.xpose.msra.mxu0 0.0
        %2783 = vmatprep.subr.mxu0 0.0
        %2784 = vmatpush1.xpose.msra.mxu0 0.0
        %2785 = vmatprep.subr.mxu0 0.0
        %2786 = vmatpush1.xpose.msra.mxu0 0.0
        %2787 = vmatprep.subr.mxu0 0.0
        %2788 = vmatpush1.xpose.msra.mxu0 0.0
        %2789 = vmatprep.subr.mxu0 0.0
        %2790 = vmatpush1.xpose.msra.mxu0 0.0
        %2791 = vmatprep.subr.mxu0 0.0
        %2792 = vmatpush1.xpose.msra.mxu0 0.0
        %2793 = vmatprep.subr.mxu0 0.0
        %2794 = vmatpush1.xpose.msra.mxu0 0.0
        %2795 = vmatprep.mubr.f32.mxu0 0.0
        %2796 = vmatmul.mubr.f32.gmra.mrb[0].mxu0 %v2658
        %v2797 = vpop.f32.mrb[0].mxu0
        %v2798 = vadd.f32 0.0, %v2797
        %v2799 = vpop.f32.mrb[0].mxu0
        %2800 = vdwg.mxu0
        %v2801 = vld [vmem:[#allocation2] sm:$0xff]
        %v2802 = vld [vmem:[#allocation2 + $0x8] sm:$0xff]
        %v2803 = vld [vmem:[#allocation2 + $0x10] sm:$0xff]
        %2807 = vrot.lane.b32.xlu0 %v2727, 91
        %v2808 = vpop.permute.xlu0 %2807
        %2809 = vrot.lane.b32.xlu0 %v2729, 91
        %v2810 = vpop.permute.xlu0 %2809
        %2811 = vrot.lane.b32.xlu0 %v2798, 91
        %v2812 = vpop.permute.xlu0 %2811
        %vm2813 = vcmask 744448
        %v2814 = vsel %vm2813, %v2808, %v2810
        %v2815 = vsel %vm2813, %v2810, %v2812
        %v2819 = vadd.f32 %v2801, %v2814
        %v2820 = vadd.f32 %v2802, %v2815
        %v2821 = vadd.f32 %v2803, %v2812
        %2822 = vst [vmem:[#allocation2] sm:$0xff] %v2819
        %2823 = vst [vmem:[#allocation2 + $0x8] sm:$0xff] %v2820
        %2824 = vst.msk [vmem:[#allocation2 + $0x10] sm:$0xff] %vm1633, %v2821
        %s2825 = scalar_lea.vmem [#allocation11], 64
        %v2826 = vld [vmem:[%s2825] sm:$0xff]
        %v2828 = vsel %vm1357, %v2826, 0
        %2830 = vmatprep.subr.mxu0 0.0
        %2831 = vmatpush1.xpose.msra.mxu0 %v1362
        %2832 = vmatprep.subr.mxu0 0.0
        %2833 = vmatpush1.xpose.msra.mxu0 %v1365
        %2834 = vmatprep.subr.mxu0 0.0
        %2835 = vmatpush1.xpose.msra.mxu0 %v1368
        %2836 = vmatprep.subr.mxu0 0.0
        %2837 = vmatpush1.xpose.msra.mxu0 %v1371
        %2838 = vmatprep.subr.mxu0 0.0
        %2839 = vmatpush1.xpose.msra.mxu0 %v1374
        %2840 = vmatprep.subr.mxu0 0.0
        %2841 = vmatpush1.xpose.msra.mxu0 %v1377
        %2842 = vmatprep.subr.mxu0 0.0
        %2843 = vmatpush1.xpose.msra.mxu0 %v1380
        %2844 = vmatprep.subr.mxu0 0.0
        %2845 = vmatpush1.xpose.msra.mxu0 %v1383
        %2846 = vmatprep.subr.mxu0 0.0
        %2847 = vmatpush1.xpose.msra.mxu0 %v1386
        %2848 = vmatprep.subr.mxu0 0.0
        %2849 = vmatpush1.xpose.msra.mxu0 %v1389
        %2850 = vmatprep.subr.mxu0 0.0
        %2851 = vmatpush1.xpose.msra.mxu0 %v1392
        %2852 = vmatprep.subr.mxu0 0.0
        %2853 = vmatpush1.xpose.msra.mxu0 %v1395
        %2854 = vmatprep.subr.mxu0 0.0
        %2855 = vmatpush1.xpose.msra.mxu0 %v1398
        %2856 = vmatprep.subr.mxu0 0.0
        %2857 = vmatpush1.xpose.msra.mxu0 %v1401
        %2858 = vmatprep.subr.mxu0 0.0
        %2859 = vmatpush1.xpose.msra.mxu0 %v1404
        %2860 = vmatprep.subr.mxu0 0.0
        %2861 = vmatpush1.xpose.msra.mxu0 %v1407
        %2862 = vmatprep.subr.mxu0 0.0
        %2863 = vmatpush1.xpose.msra.mxu0 %v1410
        %2864 = vmatprep.subr.mxu0 0.0
        %2865 = vmatpush1.xpose.msra.mxu0 %v1413
        %2866 = vmatprep.subr.mxu0 0.0
        %2867 = vmatpush1.xpose.msra.mxu0 %v1416
        %2868 = vmatprep.subr.mxu0 0.0
        %2869 = vmatpush1.xpose.msra.mxu0 %v1419
        %2870 = vmatprep.subr.mxu0 0.0
        %2871 = vmatpush1.xpose.msra.mxu0 %v1422
        %2872 = vmatprep.subr.mxu0 0.0
        %2873 = vmatpush1.xpose.msra.mxu0 %v1425
        %2874 = vmatprep.subr.mxu0 0.0
        %2875 = vmatpush1.xpose.msra.mxu0 %v1428
        %2876 = vmatprep.subr.mxu0 0.0
        %2877 = vmatpush1.xpose.msra.mxu0 %v1431
        %2878 = vmatprep.subr.mxu0 0.0
        %2879 = vmatpush1.xpose.msra.mxu0 %v1434
        %2880 = vmatprep.subr.mxu0 0.0
        %2881 = vmatpush1.xpose.msra.mxu0 %v1437
        %2882 = vmatprep.subr.mxu0 0.0
        %2883 = vmatpush1.xpose.msra.mxu0 %v1440
        %2884 = vmatprep.subr.mxu0 0.0
        %2885 = vmatpush1.xpose.msra.mxu0 %v1443
        %2886 = vmatprep.subr.mxu0 0.0
        %2887 = vmatpush1.xpose.msra.mxu0 %v1446
        %2888 = vmatprep.subr.mxu0 0.0
        %2889 = vmatpush1.xpose.msra.mxu0 %v1449
        %2890 = vmatprep.subr.mxu0 0.0
        %2891 = vmatpush1.xpose.msra.mxu0 %v1452
        %2892 = vmatprep.subr.mxu0 0.0
        %2893 = vmatpush1.xpose.msra.mxu0 %v1455
        %2894 = vmatprep.mubr.f32.mxu0 0.0
        %2895 = vmatmul.mubr.f32.gmra.mrb[0].mxu0 %v2828
        %v2896 = vpop.f32.mrb[0].mxu0
        %v2897 = vadd.f32 0.0, %v2896
        %v2898 = vpop.f32.mrb[0].mxu0
        %v2899 = vadd.f32 0.0, %v2898
        %2900 = vdwg.mxu0
        %2901 = vmatprep.subr.mxu0 0.0
        %2902 = vmatpush1.xpose.msra.mxu0 %v1458
        %2903 = vmatprep.subr.mxu0 0.0
        %2904 = vmatpush1.xpose.msra.mxu0 %v1461
        %2905 = vmatprep.subr.mxu0 0.0
        %2906 = vmatpush1.xpose.msra.mxu0 %v1464
        %2907 = vmatprep.subr.mxu0 0.0
        %2908 = vmatpush1.xpose.msra.mxu0 %v1467
        %2909 = vmatprep.subr.mxu0 0.0
        %2910 = vmatpush1.xpose.msra.mxu0 %v1470
        %2911 = vmatprep.subr.mxu0 0.0
        %2912 = vmatpush1.xpose.msra.mxu0 %v1473
        %2913 = vmatprep.subr.mxu0 0.0
        %2914 = vmatpush1.xpose.msra.mxu0 %v1476
        %2915 = vmatprep.subr.mxu0 0.0
        %2916 = vmatpush1.xpose.msra.mxu0 %v1479
        %2917 = vmatprep.subr.mxu0 0.0
        %2918 = vmatpush1.xpose.msra.mxu0 %v1482
        %2919 = vmatprep.subr.mxu0 0.0
        %2920 = vmatpush1.xpose.msra.mxu0 0.0
        %2921 = vmatprep.subr.mxu0 0.0
        %2922 = vmatpush1.xpose.msra.mxu0 0.0
        %2923 = vmatprep.subr.mxu0 0.0
        %2924 = vmatpush1.xpose.msra.mxu0 0.0
        %2925 = vmatprep.subr.mxu0 0.0
        %2926 = vmatpush1.xpose.msra.mxu0 0.0
        %2927 = vmatprep.subr.mxu0 0.0
        %2928 = vmatpush1.xpose.msra.mxu0 0.0
        %2929 = vmatprep.subr.mxu0 0.0
        %2930 = vmatpush1.xpose.msra.mxu0 0.0
        %2931 = vmatprep.subr.mxu0 0.0
        %2932 = vmatpush1.xpose.msra.mxu0 0.0
        %2933 = vmatprep.subr.mxu0 0.0
        %2934 = vmatpush1.xpose.msra.mxu0 0.0
        %2935 = vmatprep.subr.mxu0 0.0
        %2936 = vmatpush1.xpose.msra.mxu0 0.0
        %2937 = vmatprep.subr.mxu0 0.0
        %2938 = vmatpush1.xpose.msra.mxu0 0.0
        %2939 = vmatprep.subr.mxu0 0.0
        %2940 = vmatpush1.xpose.msra.mxu0 0.0
        %2941 = vmatprep.subr.mxu0 0.0
        %2942 = vmatpush1.xpose.msra.mxu0 0.0
        %2943 = vmatprep.subr.mxu0 0.0
        %2944 = vmatpush1.xpose.msra.mxu0 0.0
        %2945 = vmatprep.subr.mxu0 0.0
        %2946 = vmatpush1.xpose.msra.mxu0 0.0
        %2947 = vmatprep.subr.mxu0 0.0
        %2948 = vmatpush1.xpose.msra.mxu0 0.0
        %2949 = vmatprep.subr.mxu0 0.0
        %2950 = vmatpush1.xpose.msra.mxu0 0.0
        %2951 = vmatprep.subr.mxu0 0.0
        %2952 = vmatpush1.xpose.msra.mxu0 0.0
        %2953 = vmatprep.subr.mxu0 0.0
        %2954 = vmatpush1.xpose.msra.mxu0 0.0
        %2955 = vmatprep.subr.mxu0 0.0
        %2956 = vmatpush1.xpose.msra.mxu0 0.0
        %2957 = vmatprep.subr.mxu0 0.0
        %2958 = vmatpush1.xpose.msra.mxu0 0.0
        %2959 = vmatprep.subr.mxu0 0.0
        %2960 = vmatpush1.xpose.msra.mxu0 0.0
        %2961 = vmatprep.subr.mxu0 0.0
        %2962 = vmatpush1.xpose.msra.mxu0 0.0
        %2963 = vmatprep.subr.mxu0 0.0
        %2964 = vmatpush1.xpose.msra.mxu0 0.0
        %2965 = vmatprep.mubr.f32.mxu0 0.0
        %2966 = vmatmul.mubr.f32.gmra.mrb[0].mxu0 %v2828
        %v2967 = vpop.f32.mrb[0].mxu0
        %v2968 = vadd.f32 0.0, %v2967
        %v2969 = vpop.f32.mrb[0].mxu0
        %2970 = vdwg.mxu0
        %v2971 = vld [vmem:[#allocation2] sm:$0xff]
        %v2972 = vld [vmem:[#allocation2 + $0x8] sm:$0xff]
        %v2973 = vld [vmem:[#allocation2 + $0x10] sm:$0xff]
        %2977 = vrot.lane.b32.xlu0 %v2897, 90
        %v2978 = vpop.permute.xlu0 %2977
        %2979 = vrot.lane.b32.xlu0 %v2899, 90
        %v2980 = vpop.permute.xlu0 %2979
        %2981 = vrot.lane.b32.xlu0 %v2968, 90
        %v2982 = vpop.permute.xlu0 %2981
        %vm2983 = vcmask 736256
        %v2984 = vsel %vm2983, %v2978, %v2980
        %v2985 = vsel %vm2983, %v2980, %v2982
        %v2989 = vadd.f32 %v2971, %v2984
        %v2990 = vadd.f32 %v2972, %v2985
        %v2991 = vadd.f32 %v2973, %v2982
        %2992 = vst [vmem:[#allocation2] sm:$0xff] %v2989
        %2993 = vst [vmem:[#allocation2 + $0x8] sm:$0xff] %v2990
        %2994 = vst.msk [vmem:[#allocation2 + $0x10] sm:$0xff] %vm1633, %v2991
        // Predicated region
        $region65: #{tpu_custom_call.1} parent=39 // pred_check
          %p2995 = pneg %p331
        $region66: #{tpu_custom_call.1} parent=39 // pred_check_branch
          %2997 = sbr.rel (%p2995) target = $region68
        $region67: #{tpu_custom_call.1} parent=39 // pred_region
          %v2998 = vld [vmem:[#allocation2] sm:$0xff]
          %v2999 = vld [vmem:[#allocation2 + $0x8] sm:$0xff]
          %v3000 = vld [vmem:[#allocation2 + $0x10] sm:$0xff]
          %3001 = vst [vmem:[%s330] sm:$0xff] %v2998
          %3002 = vst [vmem:[%s330 + $0x8] sm:$0xff] %v2999
          %vm3003 = vcmask 556032
          %3004 = vst.msk [vmem:[%s330 + $0x10] sm:$0xff] %vm3003, %v3000
        $region68: #{tpu_custom_call.1} parent=39 // pred_fallthru
          _
        %s3005 = sand.u32 %s169, 1
        %s3006 = scalar_lea.sflag [#allocation5], %s3005
        %s3007 = sand.u32 %s169, 1
        %s3008 = smul.addr %s3007, 24
        %s3009 = scalar_lea.vmem [#allocation12], %s3008
        // Predicated region
        $region69: #{tpu_custom_call.1} parent=39 // pred_check
          %p3010 = pneg %p179
        $region70: #{tpu_custom_call.1} parent=39 // pred_check_branch
          %3012 = sbr.rel (%p3010) target = $region72
        $region71: #{tpu_custom_call.1} parent=39 // pred_region
          %s3014 = ssub.s32 384, 384
          %3015 = vsyncadd %s3006, %s3014
          %s3016 = smul.addr %s28, 3
          %s3017 = smul.addr %s3016, 128
          %s3018 = scalar_lea.hbm %s5, %s3017
          %s3020 = sshll.u32 %s3009, 4
          %s3021 = int_to_ptr.vmem [resolvable:$true] %s3020
          %3023 = dma.vmem_to_hbm [thread:$0]  %s3021, 384, %s3018, %s3006
        $region72: #{tpu_custom_call.1} parent=39 // pred_fallthru
          _
      $region40: #{tpu_custom_call.1} parent=5 // pred_fallthru
        _
      %p3024 = scmp.le.s32.totalorder 2, %s19
      // Predicated region
      $region73: #{tpu_custom_call.1} parent=5 // pred_check
        %p3025 = pneg %p3024
      $region74: #{tpu_custom_call.1} parent=5 // pred_check_branch
        %3027 = sbr.rel (%p3025) target = $region76
      $region75: #{tpu_custom_call.1} parent=5 // pred_region
        %s3028 = ssub.s32 %s19, 2
        // Predicated region
        $region77: #{tpu_custom_call.1} parent=75 // pred_check
          %p3029 = pneg %p185
        $region78: #{tpu_custom_call.1} parent=75 // pred_check_branch
          %3031 = sbr.rel (%p3029) target = $region80
        $region79: #{tpu_custom_call.1} parent=75 // pred_region
          %s3032 = sand.u32 %s170, 1
          %s3033 = scalar_lea.sflag [#allocation5], %s3032
          %s3034 = sand.u32 %s170, 1
          %s3035 = smul.addr %s3034, 24
          %s3036 = scalar_lea.vmem [#allocation12], %s3035
          %3037 = dma.done %s3033, 384
        $region80: #{tpu_custom_call.1} parent=75 // pred_fallthru
          _
      $region76: #{tpu_custom_call.1} parent=5 // pred_fallthru
        _
    $region6: #{tpu_custom_call.1} parent=1 // loop_footer
      %s23 = sadd.s32 1, %s19
    $region7: #{tpu_custom_call.1} parent=1 // loop_footer_branch
      %18 = sbr.rel target = $region3
    $region8: #{tpu_custom_call.1} parent=1 // loop_exit
      _
    %3038 = vsyncpa [#allocation4], 1
    %s3039 = scalar_lea.sflag [#allocation4], 1
    %3040 = vsyncpa %s3039, 1
    %3041 = vsyncpa [#allocation7], 1
    %3042 = vsyncpa [#allocation10], 1
    %3043 = vsyncpa [#allocation5], 1
    %s3044 = scalar_lea.sflag [#allocation5], 1
    %3045 = vsyncpa %s3044, 1

</llo_original>
